<compile_context>
chip_gen: v7x
topology: tpu7x:2x2x1
jax: 0.10.0
libtpu: 0.0.40
codegen_flags: <defaults>
</compile_context>

<pallas_src>
import functools
from collections import namedtuple

import numpy as np
import jax
import jax.numpy as jnp
from jax.experimental import pallas as pl
from jax.experimental.pallas import tpu as pltpu


_Layer = namedtuple("_Layer", "h w c oh ow oc l_in l_out m")


def _act_fn(name):
    return {
        "relu": lambda x: jnp.maximum(x, 0.0),
        "elu": lambda x: jnp.where(x > 0, x, jnp.expm1(x)),
        "tanh": jnp.tanh,
        "leaky_relu": lambda x: jnp.where(x > 0, x, 0.01 * x),
        "sigmoid": jax.nn.sigmoid,
        "selu": jax.nn.selu,
        "softplus": jax.nn.softplus,
        "identity": lambda x: x,
    }[name]


# -----------------------------------------------------------------------------
# Fused kernel: all 4 conv layers for B_blk images per grid step.
#
# Activation layout everywhere: rows = image rows (sublane dim), lanes = W*C.
# For layer `li` with input rows src (h, W*C):
#   z[r, ow*OC+oc] = sum_kh  src[r+kh, :] @ T_kh        (4 contiguous band dots)
# gives the conv output for every *vertical offset* r; the true stride-2
# outputs are rows 0,2,4,...  which are extracted with an exact {0,1}
# row-selection matmul S (oh, 2*oh-1).  Bias + activation are applied in f32;
# the bf16 cast happens once, before the exact selection, so the stored
# activation equals bf16(act_f32) bit-for-bit (matches the reference numerics).
# -----------------------------------------------------------------------------
def _encoder_kernel(*refs, plan, b_blk, act):
    nl = len(plan)
    x_ref = refs[0]
    pos = 1
    t_refs, bias_refs = [], []
    for _ in range(nl):
        t_refs.append(refs[pos])
        bias_refs.append(refs[pos + 1])
        pos += 2
    s_refs = []
    for li in range(nl - 1):
        if plan[li].oh > 1:
            s_refs.append(refs[pos])
            pos += 1
        else:
            s_refs.append(None)
    out_ref = refs[pos]
    pos += 1
    a_refs = list(refs[pos:])          # nl-1 bf16 VMEM scratches (inter-layer acts)

    f = _act_fn(act)
    for b in range(b_blk):             # unrolled; B_blk kept small
        src = x_ref
        for li, p in enumerate(plan):
            # 4 accumulated band x Toeplitz matmuls (contiguous static windows).
            z = jnp.dot(src[b, 0:p.m, :], t_refs[li][0],
                        preferred_element_type=jnp.float32)
            for kh in range(1, 4):
                z = z + jnp.dot(src[b, kh:kh + p.m, :], t_refs[li][kh],
                                preferred_element_type=jnp.float32)
            y = f(z + bias_refs[li][...])                 # (m, l_out) f32 epilogue
            if li == nl - 1:
                # Store all m rows; host keeps rows ::2 (exact, f32).
                out_ref[b] = y.astype(out_ref.dtype)
            else:
                y16 = y.astype(jnp.bfloat16)
                if p.oh > 1:
                    # Exact {0,1} row selection on the MXU (no strided access).
                    y16 = jnp.dot(s_refs[li][...], y16,
                                  preferred_element_type=jnp.float32
                                  ).astype(jnp.bfloat16)
                a_refs[li][b] = y16                       # (oh, l_out) bf16
                src = a_refs[li]


def _pick_batch_block(n):
    for b in (8, 4, 2):
        if n % b == 0 and n // b >= 2:   # amortize step overhead, keep >=2 steps
            return b
    return 1


def _forward(inputs, params, *, plan, input_shape, activation):
    toeplitz, biases, selects = params
    C0, H0, W0 = input_shape
    x = inputs.reshape((-1,) + tuple(input_shape))            # (N, C0, H0, W0)
    n = x.shape[0]
    # One NCHW -> (N, H, W*C) layout change, once, outside the conv stack.
    x = jnp.transpose(x, (0, 2, 3, 1)).reshape(n, H0, W0 * C0).astype(jnp.bfloat16)

    b_blk = _pick_batch_block(n)
    grid = (n // b_blk,)
    last = plan[-1]

    in_specs = [pl.BlockSpec((b_blk, H0, W0 * C0), lambda g: (g, 0, 0))]
    operands = [x]
    for t, bb in zip(toeplitz, biases):                       # resident in VMEM
        in_specs.append(pl.BlockSpec(t.shape, lambda g: (0, 0, 0)))
        operands.append(t)
        in_specs.append(pl.BlockSpec(bb.shape, lambda g: (0, 0)))
        operands.append(bb)
    for s in selects:
        in_specs.append(pl.BlockSpec(s.shape, lambda g: (0, 0)))
        operands.append(s)

    out_shape = jax.ShapeDtypeStruct((n, last.m, last.l_out), jnp.float32)
    out_spec = pl.BlockSpec((b_blk, last.m, last.l_out), lambda g: (g, 0, 0))
    scratch = [pltpu.VMEM((b_blk, p.oh, p.l_out), jnp.bfloat16) for p in plan[:-1]]

    flops = 0
    bytes_accessed = n * H0 * W0 * C0 * 2 + n * last.m * last.l_out * 4
    for p in plan:
        flops += n * 2 * 4 * p.m * p.l_in * p.l_out
    for p in plan[:-1]:
        if p.oh > 1:
            flops += n * 2 * p.oh * p.m * p.l_out
    for t in toeplitz:
        bytes_accessed += int(np.prod(t.shape)) * 2
    for bb in biases:
        bytes_accessed += int(np.prod(bb.shape)) * 4
    for s in selects:
        bytes_accessed += int(np.prod(s.shape)) * 2

    kernel = functools.partial(_encoder_kernel, plan=plan, b_blk=b_blk,
                               act=activation)
    y = pl.pallas_call(
        kernel,
        out_shape=out_shape,
        grid=grid,
        in_specs=in_specs,
        out_specs=out_spec,
        scratch_shapes=scratch,
        compiler_params=pltpu.CompilerParams(dimension_semantics=("parallel",)),
        cost_estimate=pl.CostEstimate(flops=int(flops), transcendentals=0,
                                      bytes_accessed=int(bytes_accessed)),
    )(*operands)

    y = y[:, ::2, :]                                   # final stride-2 row select
    y = y.reshape(n, last.oh, last.ow, last.oc)
    return jnp.transpose(y, (0, 3, 1, 2))              # NHWC -> NCHW, once


# ------------------------------- ConvEncoder ----------------------------------
class ConvEncoderPallas:
    def __init__(self, input_shape, embed_size, activation="relu", depth=8, key=None):
        self.input_shape = tuple(input_shape)
        self.embed_size = embed_size        # kept for parity (unused in forward, as in torch)
        self.depth = depth
        self.activation = activation
        self.kernels = [4, 4, 4, 4]
        C0, H0, W0 = self.input_shape

        key = key if key is not None else jax.random.PRNGKey(0)
        self.raw_params = []                # PyTorch-layout (OC, C, 4, 4) / (OC,) f32 params
        for i, k in enumerate(self.kernels):
            in_ch = C0 if i == 0 else depth * 2 ** (i - 1)
            out_ch = depth * 2 ** i
            key, wk, bk = jax.random.split(key, 3)
            bound = 1.0 / np.sqrt(in_ch * k * k)        # PyTorch fan-in bound
            w = jax.random.uniform(wk, (out_ch, in_ch, k, k), jnp.float32, -bound, bound)
            b = jax.random.uniform(bk, (out_ch,), jnp.float32, -bound, bound)
            self.raw_params.append((w, b))

        # ---- static per-layer geometry ---------------------------------------
        plan = []
        h, w_, c = H0, W0, C0
        for i in range(4):
            assert h >= 4 and w_ >= 4, "input too small for 4 stride-2 k=4 convs"
            oh, ow = (h - 4) // 2 + 1, (w_ - 4) // 2 + 1
            oc = depth * 2 ** i
            plan.append(_Layer(h=h, w=w_, c=c, oh=oh, ow=ow, oc=oc,
                               l_in=w_ * c, l_out=ow * oc, m=2 * oh - 1))
            h, w_, c = oh, ow, oc
        self.plan = tuple(plan)

        # ---- fold weights ONCE: per-row-tap Toeplitz (width taps + channels in K)
        #   T[kh, wi*C + c, ow*OC + oc] = W[oc, c, kh, wi - 2*ow]   (0 <= wi-2*ow < 4)
        toeplitz, biases, selects = [], [], []
        for p, (w, b) in zip(self.plan, self.raw_params):
            wnp = np.asarray(w)                                  # (OC, C, 4, 4)
            T = np.zeros((4, p.l_in, p.l_out), np.float32)
            for kh in range(4):
                for ow in range(p.ow):
                    for kw in range(4):
                        wi = 2 * ow + kw
                        T[kh, wi * p.c:(wi + 1) * p.c, ow * p.oc:(ow + 1) * p.oc] = \
                            wnp[:, :, kh, kw].T                  # (C, OC) block
            toeplitz.append(jnp.asarray(T, jnp.bfloat16))
            biases.append(jnp.asarray(np.tile(np.asarray(b), p.ow)[None, :], jnp.float32))
        for p in self.plan[:-1]:
            if p.oh > 1:                                          # exact row-select matrix
                S = np.zeros((p.oh, p.m), np.float32)
                S[np.arange(p.oh), 2 * np.arange(p.oh)] = 1.0
                selects.append(jnp.asarray(S, jnp.bfloat16))
        self.params = (tuple(toeplitz), tuple(biases), tuple(selects))

        self._fwd = jax.jit(functools.partial(
            _forward, plan=self.plan, input_shape=self.input_shape,
            activation=activation))

    def __call__(self, inputs):
        return self._fwd(inputs, self.params)


# ------------------------------ reference check -------------------------------
def _ref_forward(inputs, raw_params, input_shape):
    """Mirrors the kernel's numerics: bf16 MXU inputs, f32 accumulation/epilogue."""
    x = inputs.reshape((-1,) + tuple(input_shape))
    for w, b in raw_params:
        y = jax.lax.conv_general_dilated(
            x.astype(jnp.bfloat16), w.astype(jnp.bfloat16),
            window_strides=(2, 2), padding="VALID",
            dimension_numbers=("NCHW", "OIHW", "NCHW"),
            preferred_element_type=jnp.float32)
        x = jnp.maximum(y + b[None, :, None, None], 0.0)
    return x


if __name__ == "__main__":
    # Small 4-conv-compatible spatial size: 48 -> 23 -> 10 -> 4 -> 1.
    input_shape = (3, 48, 48)
    batch = 2
    depth = 8                         # channel progression: 8, 16, 32, 64
    key = jax.random.PRNGKey(0)
    kx, kp = jax.random.split(key)
    x = jax.random.normal(kx, (batch,) + input_shape, dtype=jnp.float32)

    enc = ConvEncoderPallas(input_shape, embed_size=1024, activation="relu",
                            depth=depth, key=kp)

    out = jax.block_until_ready(enc(x))
    ref = jax.block_until_ready(_ref_forward(x, enc.raw_params, input_shape))

    assert out.shape == (batch, depth * 8, 1, 1), out.shape
    # Both sides use bf16 MXU inputs with f32 accumulation; only summation order differs.
    np.testing.assert_allclose(np.asarray(out), np.asarray(ref), rtol=1e-3, atol=1e-3)

    print("KERNEL_OK")
</pallas_src>

<mosaic_0001>
module attributes {stable_mosaic.version = 11 : i64} {
  func.func @_encoder_kernel(%arg0: i32, %arg1: memref<1x48x144xbf16, #tpu.memory_space<vmem>>, %arg2: memref<4x144x184xbf16, #tpu.memory_space<vmem>>, %arg3: memref<1x184xf32, #tpu.memory_space<vmem>>, %arg4: memref<4x184x160xbf16, #tpu.memory_space<vmem>>, %arg5: memref<1x160xf32, #tpu.memory_space<vmem>>, %arg6: memref<4x160x128xbf16, #tpu.memory_space<vmem>>, %arg7: memref<1x128xf32, #tpu.memory_space<vmem>>, %arg8: memref<4x128x64xbf16, #tpu.memory_space<vmem>>, %arg9: memref<1x64xf32, #tpu.memory_space<vmem>>, %arg10: memref<23x45xbf16, #tpu.memory_space<vmem>>, %arg11: memref<10x19xbf16, #tpu.memory_space<vmem>>, %arg12: memref<4x7xbf16, #tpu.memory_space<vmem>>, %arg13: memref<1x1x64xf32, #tpu.memory_space<vmem>>, %arg14: memref<1x23x184xbf16, #tpu.memory_space<vmem>>, %arg15: memref<1x10x160xbf16, #tpu.memory_space<vmem>>, %arg16: memref<1x4x128xbf16, #tpu.memory_space<vmem>>) attributes {dimension_semantics = [#tpu.dimension_semantics<parallel>], iteration_bounds = array<i64: 2>, scalar_prefetch = 0 : i64, scratch_operands = 3 : i64, tpu.core_type = #tpu.core_type<tc>, window_params = [{transform_indices = @transform_0, window_bounds = array<i64: 1, 48, 144>}, {pipeline_mode = #tpu.pipeline_mode<synchronous>, transform_indices = @transform_1, window_bounds = array<i64: 4, 144, 184>}, {pipeline_mode = #tpu.pipeline_mode<synchronous>, transform_indices = @transform_2, window_bounds = array<i64: 1, 184>}, {pipeline_mode = #tpu.pipeline_mode<synchronous>, transform_indices = @transform_3, window_bounds = array<i64: 4, 184, 160>}, {pipeline_mode = #tpu.pipeline_mode<synchronous>, transform_indices = @transform_4, window_bounds = array<i64: 1, 160>}, {pipeline_mode = #tpu.pipeline_mode<synchronous>, transform_indices = @transform_5, window_bounds = array<i64: 4, 160, 128>}, {pipeline_mode = #tpu.pipeline_mode<synchronous>, transform_indices = @transform_6, window_bounds = array<i64: 1, 128>}, {pipeline_mode = #tpu.pipeline_mode<synchronous>, transform_indices = @transform_7, window_bounds = array<i64: 4, 128, 64>}, {pipeline_mode = #tpu.pipeline_mode<synchronous>, transform_indices = @transform_8, window_bounds = array<i64: 1, 64>}, {pipeline_mode = #tpu.pipeline_mode<synchronous>, transform_indices = @transform_9, window_bounds = array<i64: 23, 45>}, {pipeline_mode = #tpu.pipeline_mode<synchronous>, transform_indices = @transform_10, window_bounds = array<i64: 10, 19>}, {pipeline_mode = #tpu.pipeline_mode<synchronous>, transform_indices = @transform_11, window_bounds = array<i64: 4, 7>}, {transform_indices = @transform_12, window_bounds = array<i64: 1, 1, 64>}]} {
    %c0 = arith.constant 0 : index
    %c0_0 = arith.constant 0 : index
    %c0_1 = arith.constant 0 : index
    %0 = vector.load %arg1[%c0, %c0_0, %c0_1] : memref<1x48x144xbf16, #tpu.memory_space<vmem>>, vector<1x45x144xbf16>
    %1 = vector.shape_cast %0 : vector<1x45x144xbf16> to vector<45x144xbf16>
    %c0_2 = arith.constant 0 : index
    %c0_3 = arith.constant 0 : index
    %c0_4 = arith.constant 0 : index
    %2 = vector.load %arg2[%c0_2, %c0_3, %c0_4] : memref<4x144x184xbf16, #tpu.memory_space<vmem>>, vector<1x144x184xbf16>
    %3 = vector.shape_cast %2 : vector<1x144x184xbf16> to vector<144x184xbf16>
    %cst = arith.constant dense<0.000000e+00> : vector<45x184xf32>
    %4 = tpu.matmul %1, %3, %cst {dimension_numbers = #tpu.dot_dimension_numbers<[1], [0], [0], [1], [0, 0, 1, 1], [], []>} : vector<45x144xbf16>, vector<144x184xbf16>, vector<45x184xf32> -> vector<45x184xf32>
    %c0_5 = arith.constant 0 : index
    %c1 = arith.constant 1 : index
    %c0_6 = arith.constant 0 : index
    %5 = vector.load %arg1[%c0_5, %c1, %c0_6] : memref<1x48x144xbf16, #tpu.memory_space<vmem>>, vector<1x45x144xbf16>
    %6 = vector.shape_cast %5 : vector<1x45x144xbf16> to vector<45x144xbf16>
    %c1_7 = arith.constant 1 : index
    %c0_8 = arith.constant 0 : index
    %c0_9 = arith.constant 0 : index
    %7 = vector.load %arg2[%c1_7, %c0_8, %c0_9] : memref<4x144x184xbf16, #tpu.memory_space<vmem>>, vector<1x144x184xbf16>
    %8 = vector.shape_cast %7 : vector<1x144x184xbf16> to vector<144x184xbf16>
    %cst_10 = arith.constant dense<0.000000e+00> : vector<45x184xf32>
    %9 = tpu.matmul %6, %8, %cst_10 {dimension_numbers = #tpu.dot_dimension_numbers<[1], [0], [0], [1], [0, 0, 1, 1], [], []>} : vector<45x144xbf16>, vector<144x184xbf16>, vector<45x184xf32> -> vector<45x184xf32>
    %10 = arith.addf %4, %9 : vector<45x184xf32>
    %c0_11 = arith.constant 0 : index
    %c2 = arith.constant 2 : index
    %c0_12 = arith.constant 0 : index
    %11 = vector.load %arg1[%c0_11, %c2, %c0_12] : memref<1x48x144xbf16, #tpu.memory_space<vmem>>, vector<1x45x144xbf16>
    %12 = vector.shape_cast %11 : vector<1x45x144xbf16> to vector<45x144xbf16>
    %c2_13 = arith.constant 2 : index
    %c0_14 = arith.constant 0 : index
    %c0_15 = arith.constant 0 : index
    %13 = vector.load %arg2[%c2_13, %c0_14, %c0_15] : memref<4x144x184xbf16, #tpu.memory_space<vmem>>, vector<1x144x184xbf16>
    %14 = vector.shape_cast %13 : vector<1x144x184xbf16> to vector<144x184xbf16>
    %cst_16 = arith.constant dense<0.000000e+00> : vector<45x184xf32>
    %15 = tpu.matmul %12, %14, %cst_16 {dimension_numbers = #tpu.dot_dimension_numbers<[1], [0], [0], [1], [0, 0, 1, 1], [], []>} : vector<45x144xbf16>, vector<144x184xbf16>, vector<45x184xf32> -> vector<45x184xf32>
    %16 = arith.addf %10, %15 : vector<45x184xf32>
    %c0_17 = arith.constant 0 : index
    %c3 = arith.constant 3 : index
    %c0_18 = arith.constant 0 : index
    %17 = vector.load %arg1[%c0_17, %c3, %c0_18] : memref<1x48x144xbf16, #tpu.memory_space<vmem>>, vector<1x45x144xbf16>
    %18 = vector.shape_cast %17 : vector<1x45x144xbf16> to vector<45x144xbf16>
    %c3_19 = arith.constant 3 : index
    %c0_20 = arith.constant 0 : index
    %c0_21 = arith.constant 0 : index
    %19 = vector.load %arg2[%c3_19, %c0_20, %c0_21] : memref<4x144x184xbf16, #tpu.memory_space<vmem>>, vector<1x144x184xbf16>
    %20 = vector.shape_cast %19 : vector<1x144x184xbf16> to vector<144x184xbf16>
    %cst_22 = arith.constant dense<0.000000e+00> : vector<45x184xf32>
    %21 = tpu.matmul %18, %20, %cst_22 {dimension_numbers = #tpu.dot_dimension_numbers<[1], [0], [0], [1], [0, 0, 1, 1], [], []>} : vector<45x144xbf16>, vector<144x184xbf16>, vector<45x184xf32> -> vector<45x184xf32>
    %22 = arith.addf %16, %21 : vector<45x184xf32>
    %c0_23 = arith.constant 0 : index
    %c0_24 = arith.constant 0 : index
    %23 = vector.load %arg3[%c0_23, %c0_24] : memref<1x184xf32, #tpu.memory_space<vmem>>, vector<1x184xf32>
    %24 = vector.broadcast %23 : vector<1x184xf32> to vector<45x184xf32>
    %25 = arith.addf %22, %24 : vector<45x184xf32>
    %cst_25 = arith.constant 0.000000e+00 : f32
    %26 = vector.broadcast %cst_25 : f32 to vector<45x184xf32>
    %27 = arith.maximumf %25, %26 : vector<45x184xf32>
    %28 = arith.truncf %27 : vector<45x184xf32> to vector<45x184xbf16>
    %c0_26 = arith.constant 0 : index
    %c0_27 = arith.constant 0 : index
    %29 = vector.load %arg10[%c0_26, %c0_27] : memref<23x45xbf16, #tpu.memory_space<vmem>>, vector<23x45xbf16>
    %cst_28 = arith.constant dense<0.000000e+00> : vector<23x184xf32>
    %30 = tpu.matmul %29, %28, %cst_28 {dimension_numbers = #tpu.dot_dimension_numbers<[1], [0], [0], [1], [0, 0, 1, 1], [], []>} : vector<23x45xbf16>, vector<45x184xbf16>, vector<23x184xf32> -> vector<23x184xf32>
    %31 = arith.truncf %30 : vector<23x184xf32> to vector<23x184xbf16>
    %c0_29 = arith.constant 0 : index
    %c0_30 = arith.constant 0 : index
    %c0_31 = arith.constant 0 : index
    %32 = vector.load %arg14[%c0_29, %c0_30, %c0_31] : memref<1x23x184xbf16, #tpu.memory_space<vmem>>, vector<1x23x184xbf16>
    %33 = vector.shape_cast %32 : vector<1x23x184xbf16> to vector<23x184xbf16>
    %34 = vector.shape_cast %31 : vector<23x184xbf16> to vector<1x23x184xbf16>
    tpu.vector_store %arg14[%c0_29, %c0_30, %c0_31], %34 {strides = array<i32>} : memref<1x23x184xbf16, #tpu.memory_space<vmem>>, vector<1x23x184xbf16>,
    %c0_32 = arith.constant 0 : index
    %c0_33 = arith.constant 0 : index
    %c0_34 = arith.constant 0 : index
    %35 = vector.load %arg14[%c0_32, %c0_33, %c0_34] : memref<1x23x184xbf16, #tpu.memory_space<vmem>>, vector<1x19x184xbf16>
    %36 = vector.shape_cast %35 : vector<1x19x184xbf16> to vector<19x184xbf16>
    %c0_35 = arith.constant 0 : index
    %c0_36 = arith.constant 0 : index
    %c0_37 = arith.constant 0 : index
    %37 = vector.load %arg4[%c0_35, %c0_36, %c0_37] : memref<4x184x160xbf16, #tpu.memory_space<vmem>>, vector<1x184x160xbf16>
    %38 = vector.shape_cast %37 : vector<1x184x160xbf16> to vector<184x160xbf16>
    %cst_38 = arith.constant dense<0.000000e+00> : vector<19x160xf32>
    %39 = tpu.matmul %36, %38, %cst_38 {dimension_numbers = #tpu.dot_dimension_numbers<[1], [0], [0], [1], [0, 0, 1, 1], [], []>} : vector<19x184xbf16>, vector<184x160xbf16>, vector<19x160xf32> -> vector<19x160xf32>
    %c0_39 = arith.constant 0 : index
    %c1_40 = arith.constant 1 : index
    %c0_41 = arith.constant 0 : index
    %40 = vector.load %arg14[%c0_39, %c1_40, %c0_41] : memref<1x23x184xbf16, #tpu.memory_space<vmem>>, vector<1x19x184xbf16>
    %41 = vector.shape_cast %40 : vector<1x19x184xbf16> to vector<19x184xbf16>
    %c1_42 = arith.constant 1 : index
    %c0_43 = arith.constant 0 : index
    %c0_44 = arith.constant 0 : index
    %42 = vector.load %arg4[%c1_42, %c0_43, %c0_44] : memref<4x184x160xbf16, #tpu.memory_space<vmem>>, vector<1x184x160xbf16>
    %43 = vector.shape_cast %42 : vector<1x184x160xbf16> to vector<184x160xbf16>
    %cst_45 = arith.constant dense<0.000000e+00> : vector<19x160xf32>
    %44 = tpu.matmul %41, %43, %cst_45 {dimension_numbers = #tpu.dot_dimension_numbers<[1], [0], [0], [1], [0, 0, 1, 1], [], []>} : vector<19x184xbf16>, vector<184x160xbf16>, vector<19x160xf32> -> vector<19x160xf32>
    %45 = arith.addf %39, %44 : vector<19x160xf32>
    %c0_46 = arith.constant 0 : index
    %c2_47 = arith.constant 2 : index
    %c0_48 = arith.constant 0 : index
    %46 = vector.load %arg14[%c0_46, %c2_47, %c0_48] : memref<1x23x184xbf16, #tpu.memory_space<vmem>>, vector<1x19x184xbf16>
    %47 = vector.shape_cast %46 : vector<1x19x184xbf16> to vector<19x184xbf16>
    %c2_49 = arith.constant 2 : index
    %c0_50 = arith.constant 0 : index
    %c0_51 = arith.constant 0 : index
    %48 = vector.load %arg4[%c2_49, %c0_50, %c0_51] : memref<4x184x160xbf16, #tpu.memory_space<vmem>>, vector<1x184x160xbf16>
    %49 = vector.shape_cast %48 : vector<1x184x160xbf16> to vector<184x160xbf16>
    %cst_52 = arith.constant dense<0.000000e+00> : vector<19x160xf32>
    %50 = tpu.matmul %47, %49, %cst_52 {dimension_numbers = #tpu.dot_dimension_numbers<[1], [0], [0], [1], [0, 0, 1, 1], [], []>} : vector<19x184xbf16>, vector<184x160xbf16>, vector<19x160xf32> -> vector<19x160xf32>
    %51 = arith.addf %45, %50 : vector<19x160xf32>
    %c0_53 = arith.constant 0 : index
    %c3_54 = arith.constant 3 : index
    %c0_55 = arith.constant 0 : index
    %52 = vector.load %arg14[%c0_53, %c3_54, %c0_55] : memref<1x23x184xbf16, #tpu.memory_space<vmem>>, vector<1x19x184xbf16>
    %53 = vector.shape_cast %52 : vector<1x19x184xbf16> to vector<19x184xbf16>
    %c3_56 = arith.constant 3 : index
    %c0_57 = arith.constant 0 : index
    %c0_58 = arith.constant 0 : index
    %54 = vector.load %arg4[%c3_56, %c0_57, %c0_58] : memref<4x184x160xbf16, #tpu.memory_space<vmem>>, vector<1x184x160xbf16>
    %55 = vector.shape_cast %54 : vector<1x184x160xbf16> to vector<184x160xbf16>
    %cst_59 = arith.constant dense<0.000000e+00> : vector<19x160xf32>
    %56 = tpu.matmul %53, %55, %cst_59 {dimension_numbers = #tpu.dot_dimension_numbers<[1], [0], [0], [1], [0, 0, 1, 1], [], []>} : vector<19x184xbf16>, vector<184x160xbf16>, vector<19x160xf32> -> vector<19x160xf32>
    %57 = arith.addf %51, %56 : vector<19x160xf32>
    %c0_60 = arith.constant 0 : index
    %c0_61 = arith.constant 0 : index
    %58 = vector.load %arg5[%c0_60, %c0_61] : memref<1x160xf32, #tpu.memory_space<vmem>>, vector<1x160xf32>
    %59 = vector.broadcast %58 : vector<1x160xf32> to vector<19x160xf32>
    %60 = arith.addf %57, %59 : vector<19x160xf32>
    %cst_62 = arith.constant 0.000000e+00 : f32
    %61 = vector.broadcast %cst_62 : f32 to vector<19x160xf32>
    %62 = arith.maximumf %60, %61 : vector<19x160xf32>
    %63 = arith.truncf %62 : vector<19x160xf32> to vector<19x160xbf16>
    %c0_63 = arith.constant 0 : index
    %c0_64 = arith.constant 0 : index
    %64 = vector.load %arg11[%c0_63, %c0_64] : memref<10x19xbf16, #tpu.memory_space<vmem>>, vector<10x19xbf16>
    %cst_65 = arith.constant dense<0.000000e+00> : vector<10x160xf32>
    %65 = tpu.matmul %64, %63, %cst_65 {dimension_numbers = #tpu.dot_dimension_numbers<[1], [0], [0], [1], [0, 0, 1, 1], [], []>} : vector<10x19xbf16>, vector<19x160xbf16>, vector<10x160xf32> -> vector<10x160xf32>
    %66 = arith.truncf %65 : vector<10x160xf32> to vector<10x160xbf16>
    %c0_66 = arith.constant 0 : index
    %c0_67 = arith.constant 0 : index
    %c0_68 = arith.constant 0 : index
    %67 = vector.load %arg15[%c0_66, %c0_67, %c0_68] : memref<1x10x160xbf16, #tpu.memory_space<vmem>>, vector<1x10x160xbf16>
    %68 = vector.shape_cast %67 : vector<1x10x160xbf16> to vector<10x160xbf16>
    %69 = vector.shape_cast %66 : vector<10x160xbf16> to vector<1x10x160xbf16>
    tpu.vector_store %arg15[%c0_66, %c0_67, %c0_68], %69 {strides = array<i32>} : memref<1x10x160xbf16, #tpu.memory_space<vmem>>, vector<1x10x160xbf16>,
    %c0_69 = arith.constant 0 : index
    %c0_70 = arith.constant 0 : index
    %c0_71 = arith.constant 0 : index
    %70 = vector.load %arg15[%c0_69, %c0_70, %c0_71] : memref<1x10x160xbf16, #tpu.memory_space<vmem>>, vector<1x7x160xbf16>
    %71 = vector.shape_cast %70 : vector<1x7x160xbf16> to vector<7x160xbf16>
    %c0_72 = arith.constant 0 : index
    %c0_73 = arith.constant 0 : index
    %c0_74 = arith.constant 0 : index
    %72 = vector.load %arg6[%c0_72, %c0_73, %c0_74] : memref<4x160x128xbf16, #tpu.memory_space<vmem>>, vector<1x160x128xbf16>
    %73 = vector.shape_cast %72 : vector<1x160x128xbf16> to vector<160x128xbf16>
    %cst_75 = arith.constant dense<0.000000e+00> : vector<7x128xf32>
    %74 = tpu.matmul %71, %73, %cst_75 {dimension_numbers = #tpu.dot_dimension_numbers<[1], [0], [0], [1], [0, 0, 1, 1], [], []>} : vector<7x160xbf16>, vector<160x128xbf16>, vector<7x128xf32> -> vector<7x128xf32>
    %c0_76 = arith.constant 0 : index
    %c1_77 = arith.constant 1 : index
    %c0_78 = arith.constant 0 : index
    %75 = vector.load %arg15[%c0_76, %c1_77, %c0_78] : memref<1x10x160xbf16, #tpu.memory_space<vmem>>, vector<1x7x160xbf16>
    %76 = vector.shape_cast %75 : vector<1x7x160xbf16> to vector<7x160xbf16>
    %c1_79 = arith.constant 1 : index
    %c0_80 = arith.constant 0 : index
    %c0_81 = arith.constant 0 : index
    %77 = vector.load %arg6[%c1_79, %c0_80, %c0_81] : memref<4x160x128xbf16, #tpu.memory_space<vmem>>, vector<1x160x128xbf16>
    %78 = vector.shape_cast %77 : vector<1x160x128xbf16> to vector<160x128xbf16>
    %cst_82 = arith.constant dense<0.000000e+00> : vector<7x128xf32>
    %79 = tpu.matmul %76, %78, %cst_82 {dimension_numbers = #tpu.dot_dimension_numbers<[1], [0], [0], [1], [0, 0, 1, 1], [], []>} : vector<7x160xbf16>, vector<160x128xbf16>, vector<7x128xf32> -> vector<7x128xf32>
    %80 = arith.addf %74, %79 : vector<7x128xf32>
    %c0_83 = arith.constant 0 : index
    %c2_84 = arith.constant 2 : index
    %c0_85 = arith.constant 0 : index
    %81 = vector.load %arg15[%c0_83, %c2_84, %c0_85] : memref<1x10x160xbf16, #tpu.memory_space<vmem>>, vector<1x7x160xbf16>
    %82 = vector.shape_cast %81 : vector<1x7x160xbf16> to vector<7x160xbf16>
    %c2_86 = arith.constant 2 : index
    %c0_87 = arith.constant 0 : index
    %c0_88 = arith.constant 0 : index
    %83 = vector.load %arg6[%c2_86, %c0_87, %c0_88] : memref<4x160x128xbf16, #tpu.memory_space<vmem>>, vector<1x160x128xbf16>
    %84 = vector.shape_cast %83 : vector<1x160x128xbf16> to vector<160x128xbf16>
    %cst_89 = arith.constant dense<0.000000e+00> : vector<7x128xf32>
    %85 = tpu.matmul %82, %84, %cst_89 {dimension_numbers = #tpu.dot_dimension_numbers<[1], [0], [0], [1], [0, 0, 1, 1], [], []>} : vector<7x160xbf16>, vector<160x128xbf16>, vector<7x128xf32> -> vector<7x128xf32>
    %86 = arith.addf %80, %85 : vector<7x128xf32>
    %c0_90 = arith.constant 0 : index
    %c3_91 = arith.constant 3 : index
    %c0_92 = arith.constant 0 : index
    %87 = vector.load %arg15[%c0_90, %c3_91, %c0_92] : memref<1x10x160xbf16, #tpu.memory_space<vmem>>, vector<1x7x160xbf16>
    %88 = vector.shape_cast %87 : vector<1x7x160xbf16> to vector<7x160xbf16>
    %c3_93 = arith.constant 3 : index
    %c0_94 = arith.constant 0 : index
    %c0_95 = arith.constant 0 : index
    %89 = vector.load %arg6[%c3_93, %c0_94, %c0_95] : memref<4x160x128xbf16, #tpu.memory_space<vmem>>, vector<1x160x128xbf16>
    %90 = vector.shape_cast %89 : vector<1x160x128xbf16> to vector<160x128xbf16>
    %cst_96 = arith.constant dense<0.000000e+00> : vector<7x128xf32>
    %91 = tpu.matmul %88, %90, %cst_96 {dimension_numbers = #tpu.dot_dimension_numbers<[1], [0], [0], [1], [0, 0, 1, 1], [], []>} : vector<7x160xbf16>, vector<160x128xbf16>, vector<7x128xf32> -> vector<7x128xf32>
    %92 = arith.addf %86, %91 : vector<7x128xf32>
    %c0_97 = arith.constant 0 : index
    %c0_98 = arith.constant 0 : index
    %93 = vector.load %arg7[%c0_97, %c0_98] : memref<1x128xf32, #tpu.memory_space<vmem>>, vector<1x128xf32>
    %94 = vector.broadcast %93 : vector<1x128xf32> to vector<7x128xf32>
    %95 = arith.addf %92, %94 : vector<7x128xf32>
    %cst_99 = arith.constant 0.000000e+00 : f32
    %96 = vector.broadcast %cst_99 : f32 to vector<7x128xf32>
    %97 = arith.maximumf %95, %96 : vector<7x128xf32>
    %98 = arith.truncf %97 : vector<7x128xf32> to vector<7x128xbf16>
    %c0_100 = arith.constant 0 : index
    %c0_101 = arith.constant 0 : index
    %99 = vector.load %arg12[%c0_100, %c0_101] : memref<4x7xbf16, #tpu.memory_space<vmem>>, vector<4x7xbf16>
    %cst_102 = arith.constant dense<0.000000e+00> : vector<4x128xf32>
    %100 = tpu.matmul %99, %98, %cst_102 {dimension_numbers = #tpu.dot_dimension_numbers<[1], [0], [0], [1], [0, 0, 1, 1], [], []>} : vector<4x7xbf16>, vector<7x128xbf16>, vector<4x128xf32> -> vector<4x128xf32>
    %101 = arith.truncf %100 : vector<4x128xf32> to vector<4x128xbf16>
    %c0_103 = arith.constant 0 : index
    %c0_104 = arith.constant 0 : index
    %c0_105 = arith.constant 0 : index
    %102 = vector.load %arg16[%c0_103, %c0_104, %c0_105] : memref<1x4x128xbf16, #tpu.memory_space<vmem>>, vector<1x4x128xbf16>
    %103 = vector.shape_cast %102 : vector<1x4x128xbf16> to vector<4x128xbf16>
    %104 = vector.shape_cast %101 : vector<4x128xbf16> to vector<1x4x128xbf16>
    tpu.vector_store %arg16[%c0_103, %c0_104, %c0_105], %104 {strides = array<i32>} : memref<1x4x128xbf16, #tpu.memory_space<vmem>>, vector<1x4x128xbf16>,
    %c0_106 = arith.constant 0 : index
    %c0_107 = arith.constant 0 : index
    %c0_108 = arith.constant 0 : index
    %105 = vector.load %arg16[%c0_106, %c0_107, %c0_108] : memref<1x4x128xbf16, #tpu.memory_space<vmem>>, vector<1x1x128xbf16>
    %106 = vector.shape_cast %105 : vector<1x1x128xbf16> to vector<1x128xbf16>
    %c0_109 = arith.constant 0 : index
    %c0_110 = arith.constant 0 : index
    %c0_111 = arith.constant 0 : index
    %107 = vector.load %arg8[%c0_109, %c0_110, %c0_111] : memref<4x128x64xbf16, #tpu.memory_space<vmem>>, vector<1x128x64xbf16>
    %108 = vector.shape_cast %107 : vector<1x128x64xbf16> to vector<128x64xbf16>
    %cst_112 = arith.constant dense<0.000000e+00> : vector<1x64xf32>
    %109 = tpu.matmul %106, %108, %cst_112 {dimension_numbers = #tpu.dot_dimension_numbers<[1], [0], [0], [1], [0, 0, 1, 1], [], []>} : vector<1x128xbf16>, vector<128x64xbf16>, vector<1x64xf32> -> vector<1x64xf32>
    %c0_113 = arith.constant 0 : index
    %c1_114 = arith.constant 1 : index
    %c0_115 = arith.constant 0 : index
    %110 = vector.load %arg16[%c0_113, %c1_114, %c0_115] : memref<1x4x128xbf16, #tpu.memory_space<vmem>>, vector<1x1x128xbf16>
    %111 = vector.shape_cast %110 : vector<1x1x128xbf16> to vector<1x128xbf16>
    %c1_116 = arith.constant 1 : index
    %c0_117 = arith.constant 0 : index
    %c0_118 = arith.constant 0 : index
    %112 = vector.load %arg8[%c1_116, %c0_117, %c0_118] : memref<4x128x64xbf16, #tpu.memory_space<vmem>>, vector<1x128x64xbf16>
    %113 = vector.shape_cast %112 : vector<1x128x64xbf16> to vector<128x64xbf16>
    %cst_119 = arith.constant dense<0.000000e+00> : vector<1x64xf32>
    %114 = tpu.matmul %111, %113, %cst_119 {dimension_numbers = #tpu.dot_dimension_numbers<[1], [0], [0], [1], [0, 0, 1, 1], [], []>} : vector<1x128xbf16>, vector<128x64xbf16>, vector<1x64xf32> -> vector<1x64xf32>
    %115 = arith.addf %109, %114 : vector<1x64xf32>
    %c0_120 = arith.constant 0 : index
    %c2_121 = arith.constant 2 : index
    %c0_122 = arith.constant 0 : index
    %116 = vector.load %arg16[%c0_120, %c2_121, %c0_122] : memref<1x4x128xbf16, #tpu.memory_space<vmem>>, vector<1x1x128xbf16>
    %117 = vector.shape_cast %116 : vector<1x1x128xbf16> to vector<1x128xbf16>
    %c2_123 = arith.constant 2 : index
    %c0_124 = arith.constant 0 : index
    %c0_125 = arith.constant 0 : index
    %118 = vector.load %arg8[%c2_123, %c0_124, %c0_125] : memref<4x128x64xbf16, #tpu.memory_space<vmem>>, vector<1x128x64xbf16>
    %119 = vector.shape_cast %118 : vector<1x128x64xbf16> to vector<128x64xbf16>
    %cst_126 = arith.constant dense<0.000000e+00> : vector<1x64xf32>
    %120 = tpu.matmul %117, %119, %cst_126 {dimension_numbers = #tpu.dot_dimension_numbers<[1], [0], [0], [1], [0, 0, 1, 1], [], []>} : vector<1x128xbf16>, vector<128x64xbf16>, vector<1x64xf32> -> vector<1x64xf32>
    %121 = arith.addf %115, %120 : vector<1x64xf32>
    %c0_127 = arith.constant 0 : index
    %c3_128 = arith.constant 3 : index
    %c0_129 = arith.constant 0 : index
    %122 = vector.load %arg16[%c0_127, %c3_128, %c0_129] : memref<1x4x128xbf16, #tpu.memory_space<vmem>>, vector<1x1x128xbf16>
    %123 = vector.shape_cast %122 : vector<1x1x128xbf16> to vector<1x128xbf16>
    %c3_130 = arith.constant 3 : index
    %c0_131 = arith.constant 0 : index
    %c0_132 = arith.constant 0 : index
    %124 = vector.load %arg8[%c3_130, %c0_131, %c0_132] : memref<4x128x64xbf16, #tpu.memory_space<vmem>>, vector<1x128x64xbf16>
    %125 = vector.shape_cast %124 : vector<1x128x64xbf16> to vector<128x64xbf16>
    %cst_133 = arith.constant dense<0.000000e+00> : vector<1x64xf32>
    %126 = tpu.matmul %123, %125, %cst_133 {dimension_numbers = #tpu.dot_dimension_numbers<[1], [0], [0], [1], [0, 0, 1, 1], [], []>} : vector<1x128xbf16>, vector<128x64xbf16>, vector<1x64xf32> -> vector<1x64xf32>
    %127 = arith.addf %121, %126 : vector<1x64xf32>
    %c0_134 = arith.constant 0 : index
    %c0_135 = arith.constant 0 : index
    %128 = vector.load %arg9[%c0_134, %c0_135] : memref<1x64xf32, #tpu.memory_space<vmem>>, vector<1x64xf32>
    %129 = arith.addf %127, %128 : vector<1x64xf32>
    %cst_136 = arith.constant 0.000000e+00 : f32
    %130 = vector.broadcast %cst_136 : f32 to vector<1x64xf32>
    %131 = arith.maximumf %129, %130 : vector<1x64xf32>
    %c0_137 = arith.constant 0 : index
    %c0_138 = arith.constant 0 : index
    %c0_139 = arith.constant 0 : index
    %132 = vector.load %arg13[%c0_137, %c0_138, %c0_139] : memref<1x1x64xf32, #tpu.memory_space<vmem>>, vector<1x1x64xf32>
    %133 = vector.shape_cast %132 : vector<1x1x64xf32> to vector<1x64xf32>
    %134 = vector.shape_cast %131 : vector<1x64xf32> to vector<1x1x64xf32>
    tpu.vector_store %arg13[%c0_137, %c0_138, %c0_139], %134 {strides = array<i32>} : memref<1x1x64xf32, #tpu.memory_space<vmem>>, vector<1x1x64xf32>,
    return
  }
  func.func @transform_0(%arg0: i32) -> (i32, i32, i32) {
    %c0_i32 = arith.constant 0 : i32
    %c0_i32_0 = arith.constant 0 : i32
    %c0_i32_1 = arith.constant 0 : i32
    return %arg0, %c0_i32, %c0_i32_0 : i32, i32, i32
  }
  func.func @transform_1(%arg0: i32) -> (i32, i32, i32) {
    %c0_i32 = arith.constant 0 : i32
    %c0_i32_0 = arith.constant 0 : i32
    %c0_i32_1 = arith.constant 0 : i32
    %c0_i32_2 = arith.constant 0 : i32
    return %c0_i32, %c0_i32_0, %c0_i32_1 : i32, i32, i32
  }
  func.func @transform_2(%arg0: i32) -> (i32, i32) {
    %c0_i32 = arith.constant 0 : i32
    %c0_i32_0 = arith.constant 0 : i32
    %c0_i32_1 = arith.constant 0 : i32
    return %c0_i32, %c0_i32_0 : i32, i32
  }
  func.func @transform_3(%arg0: i32) -> (i32, i32, i32) {
    %c0_i32 = arith.constant 0 : i32
    %c0_i32_0 = arith.constant 0 : i32
    %c0_i32_1 = arith.constant 0 : i32
    %c0_i32_2 = arith.constant 0 : i32
    return %c0_i32, %c0_i32_0, %c0_i32_1 : i32, i32, i32
  }
  func.func @transform_4(%arg0: i32) -> (i32, i32) {
    %c0_i32 = arith.constant 0 : i32
    %c0_i32_0 = arith.constant 0 : i32
    %c0_i32_1 = arith.constant 0 : i32
    return %c0_i32, %c0_i32_0 : i32, i32
  }
  func.func @transform_5(%arg0: i32) -> (i32, i32, i32) {
    %c0_i32 = arith.constant 0 : i32
    %c0_i32_0 = arith.constant 0 : i32
    %c0_i32_1 = arith.constant 0 : i32
    %c0_i32_2 = arith.constant 0 : i32
    return %c0_i32, %c0_i32_0, %c0_i32_1 : i32, i32, i32
  }
  func.func @transform_6(%arg0: i32) -> (i32, i32) {
    %c0_i32 = arith.constant 0 : i32
    %c0_i32_0 = arith.constant 0 : i32
    %c0_i32_1 = arith.constant 0 : i32
    return %c0_i32, %c0_i32_0 : i32, i32
  }
  func.func @transform_7(%arg0: i32) -> (i32, i32, i32) {
    %c0_i32 = arith.constant 0 : i32
    %c0_i32_0 = arith.constant 0 : i32
    %c0_i32_1 = arith.constant 0 : i32
    %c0_i32_2 = arith.constant 0 : i32
    return %c0_i32, %c0_i32_0, %c0_i32_1 : i32, i32, i32
  }
  func.func @transform_8(%arg0: i32) -> (i32, i32) {
    %c0_i32 = arith.constant 0 : i32
    %c0_i32_0 = arith.constant 0 : i32
    %c0_i32_1 = arith.constant 0 : i32
    return %c0_i32, %c0_i32_0 : i32, i32
  }
  func.func @transform_9(%arg0: i32) -> (i32, i32) {
    %c0_i32 = arith.constant 0 : i32
    %c0_i32_0 = arith.constant 0 : i32
    %c0_i32_1 = arith.constant 0 : i32
    return %c0_i32, %c0_i32_0 : i32, i32
  }
  func.func @transform_10(%arg0: i32) -> (i32, i32) {
    %c0_i32 = arith.constant 0 : i32
    %c0_i32_0 = arith.constant 0 : i32
    %c0_i32_1 = arith.constant 0 : i32
    return %c0_i32, %c0_i32_0 : i32, i32
  }
  func.func @transform_11(%arg0: i32) -> (i32, i32) {
    %c0_i32 = arith.constant 0 : i32
    %c0_i32_0 = arith.constant 0 : i32
    %c0_i32_1 = arith.constant 0 : i32
    return %c0_i32, %c0_i32_0 : i32, i32
  }
  func.func @transform_12(%arg0: i32) -> (i32, i32, i32) {
    %c0_i32 = arith.constant 0 : i32
    %c0_i32_0 = arith.constant 0 : i32
    %c0_i32_1 = arith.constant 0 : i32
    return %arg0, %c0_i32, %c0_i32_0 : i32, i32, i32
  }
}

</mosaic_0001>

<llo_original>
// kernel: _forward.1
$region0: #{_forward.1}
  #allocation0 [shape = 'u32[]', space=smem, size = 0x4, offset = 0x4, fixed_abs, tag = 'smem constant byte address 0x4 - core index']
  #allocation1 [shape = 'u32[144,128]{1,0:T(1,128)}', space=vmem, size = 0x12000, scoped, tag = 'internal scratch']
  #allocation2 [shape = 'bf16[1,23,184]{2,1,0:T(8,128)(2,1)}', space=vmem, size = 0x3000, scoped, tag = 'scratch operand']
  #allocation3 [shape = 'bf16[1,10,160]{2,1,0:T(8,128)(2,1)}', space=vmem, size = 0x2000, scoped, tag = 'scratch operand']
  #allocation4 [shape = 'bf16[1,4,128]{2,1,0:T(4,128)(2,1)}', space=vmem, size = 0x400, scoped, tag = 'scratch operand']
  %s0 = inlined_call_operand.vmem [shape: bf16[2,48,144], index: 0, kind: input, shape index: {}]
  %s1 = inlined_call_operand.vmem [shape: bf16[4,144,184], index: 1, kind: input, shape index: {}]
  %s2 = inlined_call_operand.vmem [shape: f32[1,184], index: 2, kind: input, shape index: {}]
  %s3 = inlined_call_operand.vmem [shape: bf16[4,184,160], index: 3, kind: input, shape index: {}]
  %s4 = inlined_call_operand.vmem [shape: f32[1,160], index: 4, kind: input, shape index: {}]
  %s5 = inlined_call_operand.vmem [shape: bf16[4,160,128], index: 5, kind: input, shape index: {}]
  %s6 = inlined_call_operand.vmem [shape: f32[1,128], index: 6, kind: input, shape index: {}]
  %s7 = inlined_call_operand.vmem [shape: bf16[4,128,64], index: 7, kind: input, shape index: {}]
  %s8 = inlined_call_operand.vmem [shape: f32[1,64], index: 8, kind: input, shape index: {}]
  %s9 = inlined_call_operand.vmem [shape: bf16[23,45], index: 9, kind: input, shape index: {}]
  %s10 = inlined_call_operand.vmem [shape: bf16[10,19], index: 10, kind: input, shape index: {}]
  %s11 = inlined_call_operand.vmem [shape: bf16[4,7], index: 11, kind: input, shape index: {}]
  %s12 = inlined_call_operand.hbm [shape: f32[2,1,64], index: 12, kind: output, shape index: {}]
  %s13 = sld [smem:[#allocation0]]
  $region81: #{_forward.1} parent=0
    _
  %s15 = ssub.s32 1, %s13
  %s16 = scalar_select 0, %s15, %s13
  $region1: #{_forward.1} parent=0
    #allocation5 [shape = 'u8[1024]{0}', space=vmem, size = 0x400, scoped, tag = 'output window, operand 0']
    #allocation6 [shape = 's32[2]{0}', space=sflag, size = 0x8, scoped, tag = 'scoped memory for _forward.1']
    %17 = vsyncpa [#allocation6], 0
    %s18 = scalar_lea.sflag [#allocation6], 1
    %19 = vsyncpa %s18, 0
    loop: start=0, step=1, limit=4
    $region2: #{_forward.1} parent=1 // loop_pre_header
      _
    $region3: #{_forward.1} parent=1 // loop_header
      %s21 = sphi 0, %s25
      %p22 = scmp.ge.s32.totalorder %s21, 4
      %s31 = sphi 0, %s33
      %s34 = sphi 0, %s31
      %s35 = sphi 0, %s34
      %s51 = sphi 0, %s35
      %s55 = sphi 0, %s55
      %s57 = sphi 0, %s55
      %s58 = sphi 0, %s57
      %s72 = sphi 0, %s58
      %s76 = sphi 0, %s76
      %s78 = sphi 0, %s76
      %s79 = sphi 0, %s78
      %s93 = sphi 0, %s79
      %s97 = sphi 0, %s97
      %s99 = sphi 0, %s97
      %s100 = sphi 0, %s99
      %s114 = sphi 0, %s100
      %s118 = sphi 0, %s118
      %s120 = sphi 0, %s118
      %s121 = sphi 0, %s120
      %s135 = sphi 0, %s121
      %s139 = sphi 0, %s139
      %s141 = sphi 0, %s139
      %s142 = sphi 0, %s141
      %s156 = sphi 0, %s142
      %s160 = sphi 0, %s160
      %s162 = sphi 0, %s160
      %s163 = sphi 0, %s162
      %s177 = sphi 0, %s163
      %s181 = sphi 0, %s181
      %s183 = sphi 0, %s181
      %s184 = sphi 0, %s183
      %s198 = sphi 0, %s184
      %s202 = sphi 0, %s202
      %s204 = sphi 0, %s202
      %s205 = sphi 0, %s204
      %s219 = sphi 0, %s205
      %s223 = sphi 0, %s223
      %s225 = sphi 0, %s223
      %s226 = sphi 0, %s225
      %s240 = sphi 0, %s226
      %s244 = sphi 0, %s244
      %s246 = sphi 0, %s244
      %s247 = sphi 0, %s246
      %s261 = sphi 0, %s247
      %s265 = sphi 0, %s265
      %s267 = sphi 0, %s265
      %s268 = sphi 0, %s267
      %s282 = sphi 0, %s268
      %s288 = sphi 0, %s290
      %s291 = sphi 0, %s288
      %s292 = sphi 0, %s291
      %s308 = sphi 0, %s292
    $region4: #{_forward.1} parent=1 // loop_header_branch
      %24 = sbr.rel (%p22) target = $region8
    $region5: #{_forward.1} parent=1 // loop_body
      %s26 = ssub.s32 %s21, 1
      %s27 = ssub.s32 %s21, 2
      %s28 = sadd.s32 %s21, 1
      %s29 = ssub.s32 %s21, %s28
      %p30 = scmp.eq.s32.totalorder %s29, 0
      %s32 = sadd.s32 %s31, 1
      %s33 = scalar_select %p30, %s31, %s32
      %p36 = pneg %p30
      %p37 = scmp.eq.s32.totalorder %s21, 1
      %p38 = por %p36, %p37
      %p39 = scmp.ne.s32.totalorder %s31, %s34
      %p40 = scmp.eq.s32.totalorder %s21, 0
      %p41 = por %p39, %p40
      %p42 = scmp.ne.s32.totalorder %s31, %s34
      %p43 = scmp.eq.s32.totalorder %s26, 1
      %p44 = por %p42, %p43
      %p45 = scmp.ne.s32.totalorder %s34, %s35
      %p46 = scmp.eq.s32.totalorder %s26, 0
      %p47 = por %p45, %p46
      %p48 = scmp.ne.s32.totalorder %s34, %s35
      %p49 = scmp.eq.s32.totalorder %s27, 1
      %p50 = por %p48, %p49
      %p52 = scmp.ne.s32.totalorder %s35, %s51
      %p53 = scmp.eq.s32.totalorder %s27, 0
      %p54 = por %p52, %p53
      %s56 = sadd.s32 %s55, 1
      %p59 = scmp.eq.s32.totalorder %s21, 1
      %p60 = scmp.ne.s32.totalorder %s55, %s57
      %p61 = scmp.eq.s32.totalorder %s21, 0
      %p62 = por %p60, %p61
      %p63 = scmp.ne.s32.totalorder %s55, %s57
      %p64 = scmp.eq.s32.totalorder %s26, 1
      %p65 = por %p63, %p64
      %p66 = scmp.ne.s32.totalorder %s57, %s58
      %p67 = scmp.eq.s32.totalorder %s26, 0
      %p68 = por %p66, %p67
      %p69 = scmp.ne.s32.totalorder %s57, %s58
      %p70 = scmp.eq.s32.totalorder %s27, 1
      %p71 = por %p69, %p70
      %p73 = scmp.ne.s32.totalorder %s58, %s72
      %p74 = scmp.eq.s32.totalorder %s27, 0
      %p75 = por %p73, %p74
      %s77 = sadd.s32 %s76, 1
      %p80 = scmp.eq.s32.totalorder %s21, 1
      %p81 = scmp.ne.s32.totalorder %s76, %s78
      %p82 = scmp.eq.s32.totalorder %s21, 0
      %p83 = por %p81, %p82
      %p84 = scmp.ne.s32.totalorder %s76, %s78
      %p85 = scmp.eq.s32.totalorder %s26, 1
      %p86 = por %p84, %p85
      %p87 = scmp.ne.s32.totalorder %s78, %s79
      %p88 = scmp.eq.s32.totalorder %s26, 0
      %p89 = por %p87, %p88
      %p90 = scmp.ne.s32.totalorder %s78, %s79
      %p91 = scmp.eq.s32.totalorder %s27, 1
      %p92 = por %p90, %p91
      %p94 = scmp.ne.s32.totalorder %s79, %s93
      %p95 = scmp.eq.s32.totalorder %s27, 0
      %p96 = por %p94, %p95
      %s98 = sadd.s32 %s97, 1
      %p101 = scmp.eq.s32.totalorder %s21, 1
      %p102 = scmp.ne.s32.totalorder %s97, %s99
      %p103 = scmp.eq.s32.totalorder %s21, 0
      %p104 = por %p102, %p103
      %p105 = scmp.ne.s32.totalorder %s97, %s99
      %p106 = scmp.eq.s32.totalorder %s26, 1
      %p107 = por %p105, %p106
      %p108 = scmp.ne.s32.totalorder %s99, %s100
      %p109 = scmp.eq.s32.totalorder %s26, 0
      %p110 = por %p108, %p109
      %p111 = scmp.ne.s32.totalorder %s99, %s100
      %p112 = scmp.eq.s32.totalorder %s27, 1
      %p113 = por %p111, %p112
      %p115 = scmp.ne.s32.totalorder %s100, %s114
      %p116 = scmp.eq.s32.totalorder %s27, 0
      %p117 = por %p115, %p116
      %s119 = sadd.s32 %s118, 1
      %p122 = scmp.eq.s32.totalorder %s21, 1
      %p123 = scmp.ne.s32.totalorder %s118, %s120
      %p124 = scmp.eq.s32.totalorder %s21, 0
      %p125 = por %p123, %p124
      %p126 = scmp.ne.s32.totalorder %s118, %s120
      %p127 = scmp.eq.s32.totalorder %s26, 1
      %p128 = por %p126, %p127
      %p129 = scmp.ne.s32.totalorder %s120, %s121
      %p130 = scmp.eq.s32.totalorder %s26, 0
      %p131 = por %p129, %p130
      %p132 = scmp.ne.s32.totalorder %s120, %s121
      %p133 = scmp.eq.s32.totalorder %s27, 1
      %p134 = por %p132, %p133
      %p136 = scmp.ne.s32.totalorder %s121, %s135
      %p137 = scmp.eq.s32.totalorder %s27, 0
      %p138 = por %p136, %p137
      %s140 = sadd.s32 %s139, 1
      %p143 = scmp.eq.s32.totalorder %s21, 1
      %p144 = scmp.ne.s32.totalorder %s139, %s141
      %p145 = scmp.eq.s32.totalorder %s21, 0
      %p146 = por %p144, %p145
      %p147 = scmp.ne.s32.totalorder %s139, %s141
      %p148 = scmp.eq.s32.totalorder %s26, 1
      %p149 = por %p147, %p148
      %p150 = scmp.ne.s32.totalorder %s141, %s142
      %p151 = scmp.eq.s32.totalorder %s26, 0
      %p152 = por %p150, %p151
      %p153 = scmp.ne.s32.totalorder %s141, %s142
      %p154 = scmp.eq.s32.totalorder %s27, 1
      %p155 = por %p153, %p154
      %p157 = scmp.ne.s32.totalorder %s142, %s156
      %p158 = scmp.eq.s32.totalorder %s27, 0
      %p159 = por %p157, %p158
      %s161 = sadd.s32 %s160, 1
      %p164 = scmp.eq.s32.totalorder %s21, 1
      %p165 = scmp.ne.s32.totalorder %s160, %s162
      %p166 = scmp.eq.s32.totalorder %s21, 0
      %p167 = por %p165, %p166
      %p168 = scmp.ne.s32.totalorder %s160, %s162
      %p169 = scmp.eq.s32.totalorder %s26, 1
      %p170 = por %p168, %p169
      %p171 = scmp.ne.s32.totalorder %s162, %s163
      %p172 = scmp.eq.s32.totalorder %s26, 0
      %p173 = por %p171, %p172
      %p174 = scmp.ne.s32.totalorder %s162, %s163
      %p175 = scmp.eq.s32.totalorder %s27, 1
      %p176 = por %p174, %p175
      %p178 = scmp.ne.s32.totalorder %s163, %s177
      %p179 = scmp.eq.s32.totalorder %s27, 0
      %p180 = por %p178, %p179
      %s182 = sadd.s32 %s181, 1
      %p185 = scmp.eq.s32.totalorder %s21, 1
      %p186 = scmp.ne.s32.totalorder %s181, %s183
      %p187 = scmp.eq.s32.totalorder %s21, 0
      %p188 = por %p186, %p187
      %p189 = scmp.ne.s32.totalorder %s181, %s183
      %p190 = scmp.eq.s32.totalorder %s26, 1
      %p191 = por %p189, %p190
      %p192 = scmp.ne.s32.totalorder %s183, %s184
      %p193 = scmp.eq.s32.totalorder %s26, 0
      %p194 = por %p192, %p193
      %p195 = scmp.ne.s32.totalorder %s183, %s184
      %p196 = scmp.eq.s32.totalorder %s27, 1
      %p197 = por %p195, %p196
      %p199 = scmp.ne.s32.totalorder %s184, %s198
      %p200 = scmp.eq.s32.totalorder %s27, 0
      %p201 = por %p199, %p200
      %s203 = sadd.s32 %s202, 1
      %p206 = scmp.eq.s32.totalorder %s21, 1
      %p207 = scmp.ne.s32.totalorder %s202, %s204
      %p208 = scmp.eq.s32.totalorder %s21, 0
      %p209 = por %p207, %p208
      %p210 = scmp.ne.s32.totalorder %s202, %s204
      %p211 = scmp.eq.s32.totalorder %s26, 1
      %p212 = por %p210, %p211
      %p213 = scmp.ne.s32.totalorder %s204, %s205
      %p214 = scmp.eq.s32.totalorder %s26, 0
      %p215 = por %p213, %p214
      %p216 = scmp.ne.s32.totalorder %s204, %s205
      %p217 = scmp.eq.s32.totalorder %s27, 1
      %p218 = por %p216, %p217
      %p220 = scmp.ne.s32.totalorder %s205, %s219
      %p221 = scmp.eq.s32.totalorder %s27, 0
      %p222 = por %p220, %p221
      %s224 = sadd.s32 %s223, 1
      %p227 = scmp.eq.s32.totalorder %s21, 1
      %p228 = scmp.ne.s32.totalorder %s223, %s225
      %p229 = scmp.eq.s32.totalorder %s21, 0
      %p230 = por %p228, %p229
      %p231 = scmp.ne.s32.totalorder %s223, %s225
      %p232 = scmp.eq.s32.totalorder %s26, 1
      %p233 = por %p231, %p232
      %p234 = scmp.ne.s32.totalorder %s225, %s226
      %p235 = scmp.eq.s32.totalorder %s26, 0
      %p236 = por %p234, %p235
      %p237 = scmp.ne.s32.totalorder %s225, %s226
      %p238 = scmp.eq.s32.totalorder %s27, 1
      %p239 = por %p237, %p238
      %p241 = scmp.ne.s32.totalorder %s226, %s240
      %p242 = scmp.eq.s32.totalorder %s27, 0
      %p243 = por %p241, %p242
      %s245 = sadd.s32 %s244, 1
      %p248 = scmp.eq.s32.totalorder %s21, 1
      %p249 = scmp.ne.s32.totalorder %s244, %s246
      %p250 = scmp.eq.s32.totalorder %s21, 0
      %p251 = por %p249, %p250
      %p252 = scmp.ne.s32.totalorder %s244, %s246
      %p253 = scmp.eq.s32.totalorder %s26, 1
      %p254 = por %p252, %p253
      %p255 = scmp.ne.s32.totalorder %s246, %s247
      %p256 = scmp.eq.s32.totalorder %s26, 0
      %p257 = por %p255, %p256
      %p258 = scmp.ne.s32.totalorder %s246, %s247
      %p259 = scmp.eq.s32.totalorder %s27, 1
      %p260 = por %p258, %p259
      %p262 = scmp.ne.s32.totalorder %s247, %s261
      %p263 = scmp.eq.s32.totalorder %s27, 0
      %p264 = por %p262, %p263
      %s266 = sadd.s32 %s265, 1
      %p269 = scmp.eq.s32.totalorder %s21, 1
      %p270 = scmp.ne.s32.totalorder %s265, %s267
      %p271 = scmp.eq.s32.totalorder %s21, 0
      %p272 = por %p270, %p271
      %p273 = scmp.ne.s32.totalorder %s265, %s267
      %p274 = scmp.eq.s32.totalorder %s26, 1
      %p275 = por %p273, %p274
      %p276 = scmp.ne.s32.totalorder %s267, %s268
      %p277 = scmp.eq.s32.totalorder %s26, 0
      %p278 = por %p276, %p277
      %p279 = scmp.ne.s32.totalorder %s267, %s268
      %p280 = scmp.eq.s32.totalorder %s27, 1
      %p281 = por %p279, %p280
      %p283 = scmp.ne.s32.totalorder %s268, %s282
      %p284 = scmp.eq.s32.totalorder %s27, 0
      %p285 = por %p283, %p284
      %s286 = ssub.s32 %s21, %s28
      %p287 = scmp.eq.s32.totalorder %s286, 0
      %s289 = sadd.s32 %s288, 1
      %s290 = scalar_select %p287, %s288, %s289
      %p293 = pneg %p287
      %p294 = scmp.eq.s32.totalorder %s21, 1
      %p295 = por %p293, %p294
      %p296 = scmp.ne.s32.totalorder %s288, %s291
      %p297 = scmp.eq.s32.totalorder %s21, 0
      %p298 = por %p296, %p297
      %p299 = scmp.ne.s32.totalorder %s288, %s291
      %p300 = scmp.eq.s32.totalorder %s26, 1
      %p301 = por %p299, %p300
      %p302 = scmp.ne.s32.totalorder %s291, %s292
      %p303 = scmp.eq.s32.totalorder %s26, 0
      %p304 = por %p302, %p303
      %p305 = scmp.ne.s32.totalorder %s291, %s292
      %p306 = scmp.eq.s32.totalorder %s27, 1
      %p307 = por %p305, %p306
      %p309 = scmp.ne.s32.totalorder %s292, %s308
      %p310 = scmp.eq.s32.totalorder %s27, 0
      %p311 = por %p309, %p310
      %p312 = scmp.le.s32.totalorder 1, %s21
      %p313 = scmp.lt.s32.totalorder %s21, 3
      %p314 = pnand %p312, %p313
      %p315 = pneg %p314
      // Predicated region
      $region9: #{_forward.1} parent=5 // pred_check
        _
      $region10: #{_forward.1} parent=5 // pred_check_branch
        %317 = sbr.rel (%p314) target = $region12
      $region11: #{_forward.1} parent=5 // pred_region
        %s318 = ssub.s32 %s21, 1
        // Predicated region
        $region13: #{_forward.1} parent=11 // pred_check
          %p319 = pneg %p68
        $region14: #{_forward.1} parent=11 // pred_check_branch
          %321 = sbr.rel (%p319) target = $region16
        $region15: #{_forward.1} parent=11 // pred_region
          _
        $region16: #{_forward.1} parent=11 // pred_fallthru
          _
        // Predicated region
        $region17: #{_forward.1} parent=11 // pred_check
          %p322 = pneg %p89
        $region18: #{_forward.1} parent=11 // pred_check_branch
          %324 = sbr.rel (%p322) target = $region20
        $region19: #{_forward.1} parent=11 // pred_region
          _
        $region20: #{_forward.1} parent=11 // pred_fallthru
          _
        // Predicated region
        $region21: #{_forward.1} parent=11 // pred_check
          %p325 = pneg %p110
        $region22: #{_forward.1} parent=11 // pred_check_branch
          %327 = sbr.rel (%p325) target = $region24
        $region23: #{_forward.1} parent=11 // pred_region
          _
        $region24: #{_forward.1} parent=11 // pred_fallthru
          _
        // Predicated region
        $region25: #{_forward.1} parent=11 // pred_check
          %p328 = pneg %p131
        $region26: #{_forward.1} parent=11 // pred_check_branch
          %330 = sbr.rel (%p328) target = $region28
        $region27: #{_forward.1} parent=11 // pred_region
          _
        $region28: #{_forward.1} parent=11 // pred_fallthru
          _
        // Predicated region
        $region29: #{_forward.1} parent=11 // pred_check
          %p331 = pneg %p152
        $region30: #{_forward.1} parent=11 // pred_check_branch
          %333 = sbr.rel (%p331) target = $region32
        $region31: #{_forward.1} parent=11 // pred_region
          _
        $region32: #{_forward.1} parent=11 // pred_fallthru
          _
        // Predicated region
        $region33: #{_forward.1} parent=11 // pred_check
          %p334 = pneg %p173
        $region34: #{_forward.1} parent=11 // pred_check_branch
          %336 = sbr.rel (%p334) target = $region36
        $region35: #{_forward.1} parent=11 // pred_region
          _
        $region36: #{_forward.1} parent=11 // pred_fallthru
          _
        // Predicated region
        $region37: #{_forward.1} parent=11 // pred_check
          %p337 = pneg %p194
        $region38: #{_forward.1} parent=11 // pred_check_branch
          %339 = sbr.rel (%p337) target = $region40
        $region39: #{_forward.1} parent=11 // pred_region
          _
        $region40: #{_forward.1} parent=11 // pred_fallthru
          _
        // Predicated region
        $region41: #{_forward.1} parent=11 // pred_check
          %p340 = pneg %p215
        $region42: #{_forward.1} parent=11 // pred_check_branch
          %342 = sbr.rel (%p340) target = $region44
        $region43: #{_forward.1} parent=11 // pred_region
          _
        $region44: #{_forward.1} parent=11 // pred_fallthru
          _
        // Predicated region
        $region45: #{_forward.1} parent=11 // pred_check
          %p343 = pneg %p236
        $region46: #{_forward.1} parent=11 // pred_check_branch
          %345 = sbr.rel (%p343) target = $region48
        $region47: #{_forward.1} parent=11 // pred_region
          _
        $region48: #{_forward.1} parent=11 // pred_fallthru
          _
        // Predicated region
        $region49: #{_forward.1} parent=11 // pred_check
          %p346 = pneg %p257
        $region50: #{_forward.1} parent=11 // pred_check_branch
          %348 = sbr.rel (%p346) target = $region52
        $region51: #{_forward.1} parent=11 // pred_region
          _
        $region52: #{_forward.1} parent=11 // pred_fallthru
          _
        // Predicated region
        $region53: #{_forward.1} parent=11 // pred_check
          %p349 = pneg %p278
        $region54: #{_forward.1} parent=11 // pred_check_branch
          %351 = sbr.rel (%p349) target = $region56
        $region55: #{_forward.1} parent=11 // pred_region
          _
        $region56: #{_forward.1} parent=11 // pred_fallthru
          _
      $region12: #{_forward.1} parent=5 // pred_fallthru
        _
      %p352 = scmp.lt.s32.totalorder %s21, 2
      // Predicated region
      $region57: #{_forward.1} parent=5 // pred_check
        %p353 = pneg %p352
      $region58: #{_forward.1} parent=5 // pred_check_branch
        %355 = sbr.rel (%p353) target = $region60
      $region59: #{_forward.1} parent=5 // pred_region
        // Predicated region
        $region61: #{_forward.1} parent=59 // pred_check
          %p356 = pneg %p41
        $region62: #{_forward.1} parent=59 // pred_check_branch
          %358 = sbr.rel (%p356) target = $region64
        $region63: #{_forward.1} parent=59 // pred_region
          %p359 = scmp.lt.s32.totalorder %s21, 1
          %s360 = scalar_select %p359, %s21, 1
          %s361 = smul.addr %s360, 12
          %s362 = smul.addr %s361, 4
          %s363 = scalar_lea.vmem %s0, %s362
        $region64: #{_forward.1} parent=59 // pred_fallthru
          _
      $region60: #{_forward.1} parent=5 // pred_fallthru
        _
      %p364 = scmp.le.s32.totalorder 1, %s21
      %p365 = scmp.lt.s32.totalorder %s21, 3
      %p366 = pnand %p364, %p365
      %p367 = pneg %p366
      // Predicated region
      $region65: #{_forward.1} parent=5 // pred_check
        _
      $region66: #{_forward.1} parent=5 // pred_check_branch
        %369 = sbr.rel (%p366) target = $region68
      $region67: #{_forward.1} parent=5 // pred_region
        %s370 = ssub.s32 %s21, 1
        %p371 = scmp.lt.s32.totalorder %s26, 1
        %s372 = scalar_select %p371, %s26, 1
        %s373 = smul.addr %s372, 12
        %s374 = smul.addr %s373, 4
        %s375 = scalar_lea.vmem %s0, %s374
        %p376 = pneg %p47
        %p377 = pneg %p44
        %p378 = pneg %p68
        %p379 = pneg %p65
        %p380 = pneg %p89
        %p381 = pneg %p86
        %p382 = pneg %p110
        %p383 = pneg %p107
        %p384 = pneg %p131
        %p385 = pneg %p128
        %p386 = pneg %p152
        %p387 = pneg %p149
        %p388 = pneg %p173
        %p389 = pneg %p170
        %p390 = pneg %p194
        %p391 = pneg %p191
        %p392 = pneg %p215
        %p393 = pneg %p212
        %p394 = pneg %p236
        %p395 = pneg %p233
        %p396 = pneg %p257
        %p397 = pneg %p254
        %p398 = pneg %p278
        %p399 = pneg %p275
        %p400 = pneg %p304
        %p401 = pneg %p301
        %s402 = sand.u32 %s291, 1
        %s403 = scalar_lea.sflag [#allocation6], %s402
        %s404 = sand.u32 %s291, 1
        %s405 = scalar_lea.vmem [#allocation5], %s404
        %p406 = scmp.lt.s32.totalorder %s26, 1
        %s407 = scalar_select %p406, %s26, 1
        %s408 = smul.addr %s407, 12
        %s409 = smul.addr %s408, 4
        %s410 = scalar_lea.vmem %s0, %s409
        %v412 = vld [vmem:[%s410] sm:$0xff]
        %v413 = vld [vmem:[%s410 + $0x8] sm:$0xff]
        %v414 = vld [vmem:[%s410 + $0x10] sm:$0xff]
        %v415 = vld [vmem:[%s410 + $0x18] sm:$0xff]
        %v416 = vld [vmem:[%s410 + $0x20] sm:$0xff]
        %v417 = vld [vmem:[%s410 + $0x28] sm:$0x77]
        %v418 = vld [vmem:[%s1] sm:$0xff]
        %v419 = vld [vmem:[%s1 + $0x8] sm:$0xff]
        %v420 = vld [vmem:[%s1 + $0x10] sm:$0xff]
        %v421 = vld [vmem:[%s1 + $0x18] sm:$0xff]
        %v422 = vld [vmem:[%s1 + $0x20] sm:$0xff]
        %v423 = vld [vmem:[%s1 + $0x28] sm:$0xff]
        %v424 = vld [vmem:[%s1 + $0x30] sm:$0xff]
        %v425 = vld [vmem:[%s1 + $0x38] sm:$0xff]
        %v426 = vld [vmem:[%s1 + $0x40] sm:$0xff]
        %v427 = vld [vmem:[%s1 + $0x48] sm:$0xff]
        %v428 = vld [vmem:[%s1 + $0x50] sm:$0xff]
        %v429 = vld [vmem:[%s1 + $0x58] sm:$0xff]
        %v430 = vld [vmem:[%s1 + $0x60] sm:$0xff]
        %v431 = vld [vmem:[%s1 + $0x68] sm:$0xff]
        %v432 = vld [vmem:[%s1 + $0x70] sm:$0xff]
        %v433 = vld [vmem:[%s1 + $0x78] sm:$0xff]
        %v434 = vld [vmem:[%s1 + $0x80] sm:$0xff]
        %v435 = vld [vmem:[%s1 + $0x88] sm:$0xff]
        %s436 = scalar_lea.vmem %s1, 144
        %v437 = vld [vmem:[%s436] sm:$0xff]
        %v438 = vld [vmem:[%s436 + $0x8] sm:$0xff]
        %v439 = vld [vmem:[%s436 + $0x10] sm:$0xff]
        %v440 = vld [vmem:[%s436 + $0x18] sm:$0xff]
        %v441 = vld [vmem:[%s436 + $0x20] sm:$0xff]
        %v442 = vld [vmem:[%s436 + $0x28] sm:$0xff]
        %v443 = vld [vmem:[%s436 + $0x30] sm:$0xff]
        %v444 = vld [vmem:[%s436 + $0x38] sm:$0xff]
        %v445 = vld [vmem:[%s436 + $0x40] sm:$0xff]
        %v446 = vld [vmem:[%s436 + $0x48] sm:$0xff]
        %v447 = vld [vmem:[%s436 + $0x50] sm:$0xff]
        %v448 = vld [vmem:[%s436 + $0x58] sm:$0xff]
        %v449 = vld [vmem:[%s436 + $0x60] sm:$0xff]
        %v450 = vld [vmem:[%s436 + $0x68] sm:$0xff]
        %v451 = vld [vmem:[%s436 + $0x70] sm:$0xff]
        %v452 = vld [vmem:[%s436 + $0x78] sm:$0xff]
        %v453 = vld [vmem:[%s436 + $0x80] sm:$0xff]
        %v454 = vld [vmem:[%s436 + $0x88] sm:$0xff]
        %v461 = vunpack.c.l.b16 %v412
        %v462 = vunpack.c.h.b16 %v412
        %v463 = vunpack.c.l.b16 %v413
        %v464 = vunpack.c.h.b16 %v413
        %v465 = vunpack.c.l.b16 %v414
        %v466 = vunpack.c.h.b16 %v414
        %v467 = vunpack.c.l.b16 %v415
        %v468 = vunpack.c.h.b16 %v415
        %v469 = vunpack.c.l.b16 %v416
        %v470 = vunpack.c.h.b16 %v416
        %v471 = vunpack.c.l.b16 %v417
        %v472 = vunpack.c.h.b16 %v417
        %v473 = vpack.c.b16 %v463, %v461
        %v474 = vpack.c.b16 %v464, %v462
        %v475 = vpack.c.b16 %v467, %v465
        %v476 = vpack.c.b16 %v468, %v466
        %v477 = vpack.c.b16 %v471, %v469
        %v478 = vpack.c.b16 %v472, %v470
        %vm479 = vsmask.f32 7424
        %v481 = vshrl.u32 %v473, 16
        %v483 = vshll.u32 %v473, 16
        %v485 = vrot.slane %v483, 1
        %v486 = vor.u32 %v481, %v485
        %v488 = vshll.u32 %v475, 16
        %v490 = vrot.slane %v488, 1
        %v491 = vsel %vm479, %v486, %v490
        %v493 = vshrl.u32 %v474, 16
        %v495 = vshll.u32 %v474, 16
        %v497 = vrot.slane %v495, 1
        %v498 = vor.u32 %v493, %v497
        %v500 = vshll.u32 %v476, 16
        %v502 = vrot.slane %v500, 1
        %v503 = vsel %vm479, %v498, %v502
        %v504 = vshrl.u32 %v475, 16
        %v506 = vor.u32 %v504, %v490
        %v508 = vshll.u32 %v477, 16
        %v510 = vrot.slane %v508, 1
        %v511 = vsel %vm479, %v506, %v510
        %v512 = vshrl.u32 %v476, 16
        %v514 = vor.u32 %v512, %v502
        %v516 = vshll.u32 %v478, 16
        %v518 = vrot.slane %v516, 1
        %v519 = vsel %vm479, %v514, %v518
        %v520 = vshrl.u32 %v477, 16
        %v522 = vor.u32 %v520, %v510
        %v523 = vshrl.u32 %v478, 16
        %v525 = vor.u32 %v523, %v518
        %v547 = vunpack.c.l.b16 %v437
        %v548 = vunpack.c.h.b16 %v437
        %v549 = vunpack.c.l.b16 %v438
        %v550 = vunpack.c.h.b16 %v438
        %v551 = vunpack.c.l.b16 %v439
        %v552 = vunpack.c.h.b16 %v439
        %v553 = vunpack.c.l.b16 %v440
        %v554 = vunpack.c.h.b16 %v440
        %v555 = vunpack.c.l.b16 %v441
        %v556 = vunpack.c.h.b16 %v441
        %v557 = vunpack.c.l.b16 %v442
        %v558 = vunpack.c.h.b16 %v442
        %v559 = vunpack.c.l.b16 %v443
        %v560 = vunpack.c.h.b16 %v443
        %v561 = vunpack.c.l.b16 %v444
        %v562 = vunpack.c.h.b16 %v444
        %v563 = vunpack.c.l.b16 %v445
        %v564 = vunpack.c.h.b16 %v445
        %v565 = vunpack.c.l.b16 %v446
        %v566 = vunpack.c.h.b16 %v446
        %v567 = vunpack.c.l.b16 %v447
        %v568 = vunpack.c.h.b16 %v447
        %v569 = vunpack.c.l.b16 %v448
        %v570 = vunpack.c.h.b16 %v448
        %v571 = vunpack.c.l.b16 %v449
        %v572 = vunpack.c.h.b16 %v449
        %v573 = vunpack.c.l.b16 %v450
        %v574 = vunpack.c.h.b16 %v450
        %v575 = vunpack.c.l.b16 %v451
        %v576 = vunpack.c.h.b16 %v451
        %v577 = vunpack.c.l.b16 %v452
        %v578 = vunpack.c.h.b16 %v452
        %v579 = vunpack.c.l.b16 %v453
        %v580 = vunpack.c.h.b16 %v453
        %v581 = vunpack.c.l.b16 %v454
        %v582 = vunpack.c.h.b16 %v454
        %v583 = vpack.c.b16 %v549, %v547
        %v584 = vpack.c.b16 %v550, %v548
        %v585 = vpack.c.b16 %v553, %v551
        %v586 = vpack.c.b16 %v554, %v552
        %v587 = vpack.c.b16 %v557, %v555
        %v588 = vpack.c.b16 %v558, %v556
        %v589 = vpack.c.b16 %v561, %v559
        %v590 = vpack.c.b16 %v562, %v560
        %v591 = vpack.c.b16 %v565, %v563
        %v592 = vpack.c.b16 %v566, %v564
        %v593 = vpack.c.b16 %v569, %v567
        %v594 = vpack.c.b16 %v570, %v568
        %v595 = vpack.c.b16 %v573, %v571
        %v596 = vpack.c.b16 %v574, %v572
        %v597 = vpack.c.b16 %v577, %v575
        %v598 = vpack.c.b16 %v578, %v576
        %v599 = vpack.c.b16 %v581, %v579
        %v600 = vpack.c.b16 %v582, %v580
        %vm619 = vcmask 130048
        %v621 = vsel %vm619, %v503, 0
        %v624 = vsel %vm619, %v519, 0
        %v627 = vsel %vm619, %v525, 0
        %629 = vmatprep.subr.bf16.mxu0 %v584
        %630 = vmatpush1.bf16.msra.mxu0 %v583
        %631 = vmatprep.subr.bf16.mxu0 %v586
        %632 = vmatpush1.bf16.msra.mxu0 %v585
        %633 = vmatprep.subr.bf16.mxu0 %v588
        %634 = vmatpush1.bf16.msra.mxu0 %v587
        %635 = vmatprep.subr.bf16.mxu0 %v590
        %636 = vmatpush1.bf16.msra.mxu0 %v589
        %637 = vmatprep.subr.bf16.mxu0 %v592
        %638 = vmatpush1.bf16.msra.mxu0 %v591
        %639 = vmatprep.subr.bf16.mxu0 %v594
        %640 = vmatpush1.bf16.msra.mxu0 %v593
        %641 = vmatprep.subr.bf16.mxu0 %v596
        %642 = vmatpush1.bf16.msra.mxu0 %v595
        %643 = vmatprep.subr.bf16.mxu0 %v598
        %644 = vmatpush1.bf16.msra.mxu0 %v597
        %645 = vmatprep.subr.bf16.mxu0 %v600
        %646 = vmatpush1.bf16.msra.mxu0 %v599
        %647 = vmatprep.subr.bf16.mxu0 0
        %648 = vmatpush1.bf16.msra.mxu0 0
        %649 = vmatprep.subr.bf16.mxu0 0
        %650 = vmatpush1.bf16.msra.mxu0 0
        %651 = vmatprep.subr.bf16.mxu0 0
        %652 = vmatpush1.bf16.msra.mxu0 0
        %653 = vmatprep.subr.bf16.mxu0 0
        %654 = vmatpush1.bf16.msra.mxu0 0
        %655 = vmatprep.subr.bf16.mxu0 0
        %656 = vmatpush1.bf16.msra.mxu0 0
        %657 = vmatprep.subr.bf16.mxu0 0
        %658 = vmatpush1.bf16.msra.mxu0 0
        %659 = vmatprep.subr.bf16.mxu0 0
        %660 = vmatpush1.bf16.msra.mxu0 0
        %661 = vmatprep.mubr.bf16.mxu0 %v621
        %662 = vmatmul.mubr.bf16.gmra.mrb[0].mxu0 %v491
        %v663 = vpop.f32.mrb[0].mxu0
        %v664 = vadd.f32 0.0, %v663
        %v665 = vpop.f32.mrb[0].mxu0
        %v666 = vadd.f32 0.0, %v665
        %v667 = vpop.f32.mrb[0].mxu0
        %v668 = vadd.f32 0.0, %v667
        %v669 = vpop.f32.mrb[0].mxu0
        %v670 = vadd.f32 0.0, %v669
        %671 = vmatprep.mubr.bf16.mxu0 %v624
        %672 = vmatmul.mubr.bf16.gmra.mrb[0].mxu0 %v511
        %v673 = vpop.f32.mrb[0].mxu0
        %v674 = vadd.f32 0.0, %v673
        %v675 = vpop.f32.mrb[0].mxu0
        %v676 = vadd.f32 0.0, %v675
        %v677 = vpop.f32.mrb[0].mxu0
        %v678 = vadd.f32 0.0, %v677
        %v679 = vpop.f32.mrb[0].mxu0
        %v680 = vadd.f32 0.0, %v679
        %681 = vmatprep.mubr.bf16.mxu0 %v627
        %682 = vmatmul.mubr.bf16.gmra.mrb[0].mxu0 %v522
        %v683 = vpop.f32.mrb[0].mxu0
        %v684 = vadd.f32 0.0, %v683
        %v685 = vpop.f32.mrb[0].mxu0
        %v686 = vadd.f32 0.0, %v685
        %v687 = vpop.f32.mrb[0].mxu0
        %v688 = vadd.f32 0.0, %v687
        %v689 = vpop.f32.mrb[0].mxu0
        %v690 = vadd.f32 0.0, %v689
        %691 = vdwg.mxu0
        %v713 = vunpack.c.l.b16 %v418
        %v714 = vunpack.c.h.b16 %v418
        %v715 = vunpack.c.l.b16 %v419
        %v716 = vunpack.c.h.b16 %v419
        %v717 = vunpack.c.l.b16 %v420
        %v718 = vunpack.c.h.b16 %v420
        %v719 = vunpack.c.l.b16 %v421
        %v720 = vunpack.c.h.b16 %v421
        %v721 = vunpack.c.l.b16 %v422
        %v722 = vunpack.c.h.b16 %v422
        %v723 = vunpack.c.l.b16 %v423
        %v724 = vunpack.c.h.b16 %v423
        %v725 = vunpack.c.l.b16 %v424
        %v726 = vunpack.c.h.b16 %v424
        %v727 = vunpack.c.l.b16 %v425
        %v728 = vunpack.c.h.b16 %v425
        %v729 = vunpack.c.l.b16 %v426
        %v730 = vunpack.c.h.b16 %v426
        %v731 = vunpack.c.l.b16 %v427
        %v732 = vunpack.c.h.b16 %v427
        %v733 = vunpack.c.l.b16 %v428
        %v734 = vunpack.c.h.b16 %v428
        %v735 = vunpack.c.l.b16 %v429
        %v736 = vunpack.c.h.b16 %v429
        %v737 = vunpack.c.l.b16 %v430
        %v738 = vunpack.c.h.b16 %v430
        %v739 = vunpack.c.l.b16 %v431
        %v740 = vunpack.c.h.b16 %v431
        %v741 = vunpack.c.l.b16 %v432
        %v742 = vunpack.c.h.b16 %v432
        %v743 = vunpack.c.l.b16 %v433
        %v744 = vunpack.c.h.b16 %v433
        %v745 = vunpack.c.l.b16 %v434
        %v746 = vunpack.c.h.b16 %v434
        %v747 = vunpack.c.l.b16 %v435
        %v748 = vunpack.c.h.b16 %v435
        %v749 = vpack.c.b16 %v715, %v713
        %v750 = vpack.c.b16 %v716, %v714
        %v751 = vpack.c.b16 %v719, %v717
        %v752 = vpack.c.b16 %v720, %v718
        %v753 = vpack.c.b16 %v723, %v721
        %v754 = vpack.c.b16 %v724, %v722
        %v755 = vpack.c.b16 %v727, %v725
        %v756 = vpack.c.b16 %v728, %v726
        %v757 = vpack.c.b16 %v731, %v729
        %v758 = vpack.c.b16 %v732, %v730
        %v759 = vpack.c.b16 %v735, %v733
        %v760 = vpack.c.b16 %v736, %v734
        %v761 = vpack.c.b16 %v739, %v737
        %v762 = vpack.c.b16 %v740, %v738
        %v763 = vpack.c.b16 %v743, %v741
        %v764 = vpack.c.b16 %v744, %v742
        %v765 = vpack.c.b16 %v747, %v745
        %v766 = vpack.c.b16 %v748, %v746
        %v785 = vsel %vm619, %v474, 0
        %v787 = vsel %vm619, %v476, 0
        %v789 = vsel %vm619, %v478, 0
        %791 = vmatprep.subr.bf16.mxu0 %v750
        %792 = vmatpush1.bf16.msra.mxu0 %v749
        %793 = vmatprep.subr.bf16.mxu0 %v752
        %794 = vmatpush1.bf16.msra.mxu0 %v751
        %795 = vmatprep.subr.bf16.mxu0 %v754
        %796 = vmatpush1.bf16.msra.mxu0 %v753
        %797 = vmatprep.subr.bf16.mxu0 %v756
        %798 = vmatpush1.bf16.msra.mxu0 %v755
        %799 = vmatprep.subr.bf16.mxu0 %v758
        %800 = vmatpush1.bf16.msra.mxu0 %v757
        %801 = vmatprep.subr.bf16.mxu0 %v760
        %802 = vmatpush1.bf16.msra.mxu0 %v759
        %803 = vmatprep.subr.bf16.mxu0 %v762
        %804 = vmatpush1.bf16.msra.mxu0 %v761
        %805 = vmatprep.subr.bf16.mxu0 %v764
        %806 = vmatpush1.bf16.msra.mxu0 %v763
        %807 = vmatprep.subr.bf16.mxu0 %v766
        %808 = vmatpush1.bf16.msra.mxu0 %v765
        %809 = vmatprep.subr.bf16.mxu0 0
        %810 = vmatpush1.bf16.msra.mxu0 0
        %811 = vmatprep.subr.bf16.mxu0 0
        %812 = vmatpush1.bf16.msra.mxu0 0
        %813 = vmatprep.subr.bf16.mxu0 0
        %814 = vmatpush1.bf16.msra.mxu0 0
        %815 = vmatprep.subr.bf16.mxu0 0
        %816 = vmatpush1.bf16.msra.mxu0 0
        %817 = vmatprep.subr.bf16.mxu0 0
        %818 = vmatpush1.bf16.msra.mxu0 0
        %819 = vmatprep.subr.bf16.mxu0 0
        %820 = vmatpush1.bf16.msra.mxu0 0
        %821 = vmatprep.subr.bf16.mxu0 0
        %822 = vmatpush1.bf16.msra.mxu0 0
        %823 = vmatprep.mubr.bf16.mxu0 %v785
        %824 = vmatmul.mubr.bf16.gmra.mrb[0].mxu0 %v473
        %v825 = vpop.f32.mrb[0].mxu0
        %v826 = vadd.f32 %v664, %v825
        %v827 = vpop.f32.mrb[0].mxu0
        %v828 = vadd.f32 %v666, %v827
        %v829 = vpop.f32.mrb[0].mxu0
        %v830 = vadd.f32 %v668, %v829
        %v831 = vpop.f32.mrb[0].mxu0
        %v832 = vadd.f32 %v670, %v831
        %833 = vmatprep.mubr.bf16.mxu0 %v787
        %834 = vmatmul.mubr.bf16.gmra.mrb[0].mxu0 %v475
        %v835 = vpop.f32.mrb[0].mxu0
        %v836 = vadd.f32 %v674, %v835
        %v837 = vpop.f32.mrb[0].mxu0
        %v838 = vadd.f32 %v676, %v837
        %v839 = vpop.f32.mrb[0].mxu0
        %v840 = vadd.f32 %v678, %v839
        %v841 = vpop.f32.mrb[0].mxu0
        %v842 = vadd.f32 %v680, %v841
        %843 = vmatprep.mubr.bf16.mxu0 %v789
        %844 = vmatmul.mubr.bf16.gmra.mrb[0].mxu0 %v477
        %v845 = vpop.f32.mrb[0].mxu0
        %v846 = vadd.f32 %v684, %v845
        %v847 = vpop.f32.mrb[0].mxu0
        %v848 = vadd.f32 %v686, %v847
        %v849 = vpop.f32.mrb[0].mxu0
        %v850 = vadd.f32 %v688, %v849
        %v851 = vpop.f32.mrb[0].mxu0
        %v852 = vadd.f32 %v690, %v851
        %853 = vdwg.mxu0
        %v854 = vld [vmem:[%s410] sm:$0xee]
        %v855 = vld [vmem:[%s410 + $0x28] sm:$0xff]
        %s856 = scalar_lea.vmem %s1, 288
        %v857 = vld [vmem:[%s856] sm:$0xff]
        %v858 = vld [vmem:[%s856 + $0x8] sm:$0xff]
        %v859 = vld [vmem:[%s856 + $0x10] sm:$0xff]
        %v860 = vld [vmem:[%s856 + $0x18] sm:$0xff]
        %v861 = vld [vmem:[%s856 + $0x20] sm:$0xff]
        %v862 = vld [vmem:[%s856 + $0x28] sm:$0xff]
        %v863 = vld [vmem:[%s856 + $0x30] sm:$0xff]
        %v864 = vld [vmem:[%s856 + $0x38] sm:$0xff]
        %v865 = vld [vmem:[%s856 + $0x40] sm:$0xff]
        %v866 = vld [vmem:[%s856 + $0x48] sm:$0xff]
        %v867 = vld [vmem:[%s856 + $0x50] sm:$0xff]
        %v868 = vld [vmem:[%s856 + $0x58] sm:$0xff]
        %v869 = vld [vmem:[%s856 + $0x60] sm:$0xff]
        %v870 = vld [vmem:[%s856 + $0x68] sm:$0xff]
        %v871 = vld [vmem:[%s856 + $0x70] sm:$0xff]
        %v872 = vld [vmem:[%s856 + $0x78] sm:$0xff]
        %v873 = vld [vmem:[%s856 + $0x80] sm:$0xff]
        %v874 = vld [vmem:[%s856 + $0x88] sm:$0xff]
        %v877 = vunpack.c.l.b16 %v854
        %v878 = vunpack.c.h.b16 %v854
        %v879 = vunpack.c.l.b16 %v855
        %v880 = vunpack.c.h.b16 %v855
        %v881 = vpack.c.b16 %v463, %v877
        %v882 = vpack.c.b16 %v464, %v878
        %v883 = vpack.c.b16 %v879, %v469
        %v884 = vpack.c.b16 %v880, %v470
        %vm885 = vcmask 1046528
        %v886 = vrot.slane %v881, 1
        %v887 = vrot.slane %v475, 1
        %v888 = vsel %vm885, %v886, %v887
        %v889 = vrot.slane %v882, 1
        %v890 = vrot.slane %v476, 1
        %v891 = vsel %vm885, %v889, %v890
        %v892 = vrot.slane %v883, 1
        %v893 = vsel %vm885, %v887, %v892
        %v894 = vrot.slane %v884, 1
        %v895 = vsel %vm885, %v890, %v894
        %v917 = vunpack.c.l.b16 %v857
        %v918 = vunpack.c.h.b16 %v857
        %v919 = vunpack.c.l.b16 %v858
        %v920 = vunpack.c.h.b16 %v858
        %v921 = vunpack.c.l.b16 %v859
        %v922 = vunpack.c.h.b16 %v859
        %v923 = vunpack.c.l.b16 %v860
        %v924 = vunpack.c.h.b16 %v860
        %v925 = vunpack.c.l.b16 %v861
        %v926 = vunpack.c.h.b16 %v861
        %v927 = vunpack.c.l.b16 %v862
        %v928 = vunpack.c.h.b16 %v862
        %v929 = vunpack.c.l.b16 %v863
        %v930 = vunpack.c.h.b16 %v863
        %v931 = vunpack.c.l.b16 %v864
        %v932 = vunpack.c.h.b16 %v864
        %v933 = vunpack.c.l.b16 %v865
        %v934 = vunpack.c.h.b16 %v865
        %v935 = vunpack.c.l.b16 %v866
        %v936 = vunpack.c.h.b16 %v866
        %v937 = vunpack.c.l.b16 %v867
        %v938 = vunpack.c.h.b16 %v867
        %v939 = vunpack.c.l.b16 %v868
        %v940 = vunpack.c.h.b16 %v868
        %v941 = vunpack.c.l.b16 %v869
        %v942 = vunpack.c.h.b16 %v869
        %v943 = vunpack.c.l.b16 %v870
        %v944 = vunpack.c.h.b16 %v870
        %v945 = vunpack.c.l.b16 %v871
        %v946 = vunpack.c.h.b16 %v871
        %v947 = vunpack.c.l.b16 %v872
        %v948 = vunpack.c.h.b16 %v872
        %v949 = vunpack.c.l.b16 %v873
        %v950 = vunpack.c.h.b16 %v873
        %v951 = vunpack.c.l.b16 %v874
        %v952 = vunpack.c.h.b16 %v874
        %v953 = vpack.c.b16 %v919, %v917
        %v954 = vpack.c.b16 %v920, %v918
        %v955 = vpack.c.b16 %v923, %v921
        %v956 = vpack.c.b16 %v924, %v922
        %v957 = vpack.c.b16 %v927, %v925
        %v958 = vpack.c.b16 %v928, %v926
        %v959 = vpack.c.b16 %v931, %v929
        %v960 = vpack.c.b16 %v932, %v930
        %v961 = vpack.c.b16 %v935, %v933
        %v962 = vpack.c.b16 %v936, %v934
        %v963 = vpack.c.b16 %v939, %v937
        %v964 = vpack.c.b16 %v940, %v938
        %v965 = vpack.c.b16 %v943, %v941
        %v966 = vpack.c.b16 %v944, %v942
        %v967 = vpack.c.b16 %v947, %v945
        %v968 = vpack.c.b16 %v948, %v946
        %v969 = vpack.c.b16 %v951, %v949
        %v970 = vpack.c.b16 %v952, %v950
        %v990 = vsel %vm619, %v891, 0
        %v993 = vsel %vm619, %v895, 0
        %v996 = vsel %vm619, %v894, 0
        %998 = vmatprep.subr.bf16.mxu0 %v954
        %999 = vmatpush1.bf16.msra.mxu0 %v953
        %1000 = vmatprep.subr.bf16.mxu0 %v956
        %1001 = vmatpush1.bf16.msra.mxu0 %v955
        %1002 = vmatprep.subr.bf16.mxu0 %v958
        %1003 = vmatpush1.bf16.msra.mxu0 %v957
        %1004 = vmatprep.subr.bf16.mxu0 %v960
        %1005 = vmatpush1.bf16.msra.mxu0 %v959
        %1006 = vmatprep.subr.bf16.mxu0 %v962
        %1007 = vmatpush1.bf16.msra.mxu0 %v961
        %1008 = vmatprep.subr.bf16.mxu0 %v964
        %1009 = vmatpush1.bf16.msra.mxu0 %v963
        %1010 = vmatprep.subr.bf16.mxu0 %v966
        %1011 = vmatpush1.bf16.msra.mxu0 %v965
        %1012 = vmatprep.subr.bf16.mxu0 %v968
        %1013 = vmatpush1.bf16.msra.mxu0 %v967
        %1014 = vmatprep.subr.bf16.mxu0 %v970
        %1015 = vmatpush1.bf16.msra.mxu0 %v969
        %1016 = vmatprep.subr.bf16.mxu0 0
        %1017 = vmatpush1.bf16.msra.mxu0 0
        %1018 = vmatprep.subr.bf16.mxu0 0
        %1019 = vmatpush1.bf16.msra.mxu0 0
        %1020 = vmatprep.subr.bf16.mxu0 0
        %1021 = vmatpush1.bf16.msra.mxu0 0
        %1022 = vmatprep.subr.bf16.mxu0 0
        %1023 = vmatpush1.bf16.msra.mxu0 0
        %1024 = vmatprep.subr.bf16.mxu0 0
        %1025 = vmatpush1.bf16.msra.mxu0 0
        %1026 = vmatprep.subr.bf16.mxu0 0
        %1027 = vmatpush1.bf16.msra.mxu0 0
        %1028 = vmatprep.subr.bf16.mxu0 0
        %1029 = vmatpush1.bf16.msra.mxu0 0
        %1030 = vmatprep.mubr.bf16.mxu0 %v990
        %1031 = vmatmul.mubr.bf16.gmra.mrb[0].mxu0 %v888
        %v1032 = vpop.f32.mrb[0].mxu0
        %v1033 = vadd.f32 0.0, %v1032
        %v1034 = vpop.f32.mrb[0].mxu0
        %v1035 = vadd.f32 0.0, %v1034
        %v1036 = vpop.f32.mrb[0].mxu0
        %v1037 = vadd.f32 0.0, %v1036
        %v1038 = vpop.f32.mrb[0].mxu0
        %v1039 = vadd.f32 0.0, %v1038
        %1040 = vmatprep.mubr.bf16.mxu0 %v993
        %1041 = vmatmul.mubr.bf16.gmra.mrb[0].mxu0 %v893
        %v1042 = vpop.f32.mrb[0].mxu0
        %v1043 = vadd.f32 0.0, %v1042
        %v1044 = vpop.f32.mrb[0].mxu0
        %v1045 = vadd.f32 0.0, %v1044
        %v1046 = vpop.f32.mrb[0].mxu0
        %v1047 = vadd.f32 0.0, %v1046
        %v1048 = vpop.f32.mrb[0].mxu0
        %v1049 = vadd.f32 0.0, %v1048
        %1050 = vmatprep.mubr.bf16.mxu0 %v996
        %1051 = vmatmul.mubr.bf16.gmra.mrb[0].mxu0 %v892
        %v1052 = vpop.f32.mrb[0].mxu0
        %v1053 = vadd.f32 0.0, %v1052
        %v1054 = vpop.f32.mrb[0].mxu0
        %v1055 = vadd.f32 0.0, %v1054
        %v1056 = vpop.f32.mrb[0].mxu0
        %v1057 = vadd.f32 0.0, %v1056
        %v1058 = vpop.f32.mrb[0].mxu0
        %v1059 = vadd.f32 0.0, %v1058
        %1060 = vdwg.mxu0
        %v1061 = vadd.f32 %v826, %v1033
        %v1062 = vadd.f32 %v828, %v1035
        %v1063 = vadd.f32 %v830, %v1037
        %v1064 = vadd.f32 %v832, %v1039
        %v1065 = vadd.f32 %v836, %v1043
        %v1066 = vadd.f32 %v838, %v1045
        %v1067 = vadd.f32 %v840, %v1047
        %v1068 = vadd.f32 %v842, %v1049
        %v1069 = vadd.f32 %v846, %v1053
        %v1070 = vadd.f32 %v848, %v1055
        %v1071 = vadd.f32 %v850, %v1057
        %v1072 = vadd.f32 %v852, %v1059
        %s1073 = scalar_lea.vmem %s1, 432
        %v1074 = vld [vmem:[%s1073] sm:$0xff]
        %v1075 = vld [vmem:[%s1073 + $0x8] sm:$0xff]
        %v1076 = vld [vmem:[%s1073 + $0x10] sm:$0xff]
        %v1077 = vld [vmem:[%s1073 + $0x18] sm:$0xff]
        %v1078 = vld [vmem:[%s1073 + $0x20] sm:$0xff]
        %v1079 = vld [vmem:[%s1073 + $0x28] sm:$0xff]
        %v1080 = vld [vmem:[%s1073 + $0x30] sm:$0xff]
        %v1081 = vld [vmem:[%s1073 + $0x38] sm:$0xff]
        %v1082 = vld [vmem:[%s1073 + $0x40] sm:$0xff]
        %v1083 = vld [vmem:[%s1073 + $0x48] sm:$0xff]
        %v1084 = vld [vmem:[%s1073 + $0x50] sm:$0xff]
        %v1085 = vld [vmem:[%s1073 + $0x58] sm:$0xff]
        %v1086 = vld [vmem:[%s1073 + $0x60] sm:$0xff]
        %v1087 = vld [vmem:[%s1073 + $0x68] sm:$0xff]
        %v1088 = vld [vmem:[%s1073 + $0x70] sm:$0xff]
        %v1089 = vld [vmem:[%s1073 + $0x78] sm:$0xff]
        %v1090 = vld [vmem:[%s1073 + $0x80] sm:$0xff]
        %v1091 = vld [vmem:[%s1073 + $0x88] sm:$0xff]
        %vm1092 = vsmask.f32 6400
        %v1094 = vshrl.u32 %v881, 16
        %v1096 = vrot.slane %v1094, 1
        %v1097 = vshll.u32 %v881, 16
        %v1099 = vrot.slane %v1097, 2
        %v1100 = vor.u32 %v1096, %v1099
        %v1101 = vrot.slane %v504, 1
        %v1102 = vrot.slane %v488, 2
        %v1103 = vor.u32 %v1101, %v1102
        %v1104 = vsel %vm1092, %v1100, %v1103
        %v1106 = vshrl.u32 %v882, 16
        %v1108 = vrot.slane %v1106, 1
        %v1109 = vshll.u32 %v882, 16
        %v1111 = vrot.slane %v1109, 2
        %v1112 = vor.u32 %v1108, %v1111
        %v1113 = vrot.slane %v512, 1
        %v1114 = vrot.slane %v500, 2
        %v1115 = vor.u32 %v1113, %v1114
        %v1116 = vsel %vm1092, %v1112, %v1115
        %v1118 = vshrl.u32 %v883, 16
        %v1120 = vrot.slane %v1118, 1
        %v1121 = vshll.u32 %v883, 16
        %v1123 = vrot.slane %v1121, 2
        %v1124 = vor.u32 %v1120, %v1123
        %v1125 = vsel %vm1092, %v1103, %v1124
        %v1127 = vshrl.u32 %v884, 16
        %v1129 = vrot.slane %v1127, 1
        %v1130 = vshll.u32 %v884, 16
        %v1132 = vrot.slane %v1130, 2
        %v1133 = vor.u32 %v1129, %v1132
        %v1134 = vsel %vm1092, %v1115, %v1133
        %v1156 = vunpack.c.l.b16 %v1074
        %v1157 = vunpack.c.h.b16 %v1074
        %v1158 = vunpack.c.l.b16 %v1075
        %v1159 = vunpack.c.h.b16 %v1075
        %v1160 = vunpack.c.l.b16 %v1076
        %v1161 = vunpack.c.h.b16 %v1076
        %v1162 = vunpack.c.l.b16 %v1077
        %v1163 = vunpack.c.h.b16 %v1077
        %v1164 = vunpack.c.l.b16 %v1078
        %v1165 = vunpack.c.h.b16 %v1078
        %v1166 = vunpack.c.l.b16 %v1079
        %v1167 = vunpack.c.h.b16 %v1079
        %v1168 = vunpack.c.l.b16 %v1080
        %v1169 = vunpack.c.h.b16 %v1080
        %v1170 = vunpack.c.l.b16 %v1081
        %v1171 = vunpack.c.h.b16 %v1081
        %v1172 = vunpack.c.l.b16 %v1082
        %v1173 = vunpack.c.h.b16 %v1082
        %v1174 = vunpack.c.l.b16 %v1083
        %v1175 = vunpack.c.h.b16 %v1083
        %v1176 = vunpack.c.l.b16 %v1084
        %v1177 = vunpack.c.h.b16 %v1084
        %v1178 = vunpack.c.l.b16 %v1085
        %v1179 = vunpack.c.h.b16 %v1085
        %v1180 = vunpack.c.l.b16 %v1086
        %v1181 = vunpack.c.h.b16 %v1086
        %v1182 = vunpack.c.l.b16 %v1087
        %v1183 = vunpack.c.h.b16 %v1087
        %v1184 = vunpack.c.l.b16 %v1088
        %v1185 = vunpack.c.h.b16 %v1088
        %v1186 = vunpack.c.l.b16 %v1089
        %v1187 = vunpack.c.h.b16 %v1089
        %v1188 = vunpack.c.l.b16 %v1090
        %v1189 = vunpack.c.h.b16 %v1090
        %v1190 = vunpack.c.l.b16 %v1091
        %v1191 = vunpack.c.h.b16 %v1091
        %v1192 = vpack.c.b16 %v1158, %v1156
        %v1193 = vpack.c.b16 %v1159, %v1157
        %v1194 = vpack.c.b16 %v1162, %v1160
        %v1195 = vpack.c.b16 %v1163, %v1161
        %v1196 = vpack.c.b16 %v1166, %v1164
        %v1197 = vpack.c.b16 %v1167, %v1165
        %v1198 = vpack.c.b16 %v1170, %v1168
        %v1199 = vpack.c.b16 %v1171, %v1169
        %v1200 = vpack.c.b16 %v1174, %v1172
        %v1201 = vpack.c.b16 %v1175, %v1173
        %v1202 = vpack.c.b16 %v1178, %v1176
        %v1203 = vpack.c.b16 %v1179, %v1177
        %v1204 = vpack.c.b16 %v1182, %v1180
        %v1205 = vpack.c.b16 %v1183, %v1181
        %v1206 = vpack.c.b16 %v1186, %v1184
        %v1207 = vpack.c.b16 %v1187, %v1185
        %v1208 = vpack.c.b16 %v1190, %v1188
        %v1209 = vpack.c.b16 %v1191, %v1189
        %v1229 = vsel %vm619, %v1116, 0
        %v1232 = vsel %vm619, %v1134, 0
        %v1235 = vsel %vm619, %v1133, 0
        %1237 = vmatprep.subr.bf16.mxu0 %v1193
        %1238 = vmatpush1.bf16.msra.mxu0 %v1192
        %1239 = vmatprep.subr.bf16.mxu0 %v1195
        %1240 = vmatpush1.bf16.msra.mxu0 %v1194
        %1241 = vmatprep.subr.bf16.mxu0 %v1197
        %1242 = vmatpush1.bf16.msra.mxu0 %v1196
        %1243 = vmatprep.subr.bf16.mxu0 %v1199
        %1244 = vmatpush1.bf16.msra.mxu0 %v1198
        %1245 = vmatprep.subr.bf16.mxu0 %v1201
        %1246 = vmatpush1.bf16.msra.mxu0 %v1200
        %1247 = vmatprep.subr.bf16.mxu0 %v1203
        %1248 = vmatpush1.bf16.msra.mxu0 %v1202
        %1249 = vmatprep.subr.bf16.mxu0 %v1205
        %1250 = vmatpush1.bf16.msra.mxu0 %v1204
        %1251 = vmatprep.subr.bf16.mxu0 %v1207
        %1252 = vmatpush1.bf16.msra.mxu0 %v1206
        %1253 = vmatprep.subr.bf16.mxu0 %v1209
        %1254 = vmatpush1.bf16.msra.mxu0 %v1208
        %1255 = vmatprep.subr.bf16.mxu0 0
        %1256 = vmatpush1.bf16.msra.mxu0 0
        %1257 = vmatprep.subr.bf16.mxu0 0
        %1258 = vmatpush1.bf16.msra.mxu0 0
        %1259 = vmatprep.subr.bf16.mxu0 0
        %1260 = vmatpush1.bf16.msra.mxu0 0
        %1261 = vmatprep.subr.bf16.mxu0 0
        %1262 = vmatpush1.bf16.msra.mxu0 0
        %1263 = vmatprep.subr.bf16.mxu0 0
        %1264 = vmatpush1.bf16.msra.mxu0 0
        %1265 = vmatprep.subr.bf16.mxu0 0
        %1266 = vmatpush1.bf16.msra.mxu0 0
        %1267 = vmatprep.subr.bf16.mxu0 0
        %1268 = vmatpush1.bf16.msra.mxu0 0
        %1269 = vmatprep.mubr.bf16.mxu0 %v1229
        %1270 = vmatmul.mubr.bf16.gmra.mrb[0].mxu0 %v1104
        %v1271 = vpop.f32.mrb[0].mxu0
        %v1272 = vadd.f32 0.0, %v1271
        %v1273 = vpop.f32.mrb[0].mxu0
        %v1274 = vadd.f32 0.0, %v1273
        %v1275 = vpop.f32.mrb[0].mxu0
        %v1276 = vadd.f32 0.0, %v1275
        %v1277 = vpop.f32.mrb[0].mxu0
        %v1278 = vadd.f32 0.0, %v1277
        %1279 = vmatprep.mubr.bf16.mxu0 %v1232
        %1280 = vmatmul.mubr.bf16.gmra.mrb[0].mxu0 %v1125
        %v1281 = vpop.f32.mrb[0].mxu0
        %v1282 = vadd.f32 0.0, %v1281
        %v1283 = vpop.f32.mrb[0].mxu0
        %v1284 = vadd.f32 0.0, %v1283
        %v1285 = vpop.f32.mrb[0].mxu0
        %v1286 = vadd.f32 0.0, %v1285
        %v1287 = vpop.f32.mrb[0].mxu0
        %v1288 = vadd.f32 0.0, %v1287
        %1289 = vmatprep.mubr.bf16.mxu0 %v1235
        %1290 = vmatmul.mubr.bf16.gmra.mrb[0].mxu0 %v1124
        %v1291 = vpop.f32.mrb[0].mxu0
        %v1292 = vadd.f32 0.0, %v1291
        %v1293 = vpop.f32.mrb[0].mxu0
        %v1294 = vadd.f32 0.0, %v1293
        %v1295 = vpop.f32.mrb[0].mxu0
        %v1296 = vadd.f32 0.0, %v1295
        %v1297 = vpop.f32.mrb[0].mxu0
        %v1298 = vadd.f32 0.0, %v1297
        %1299 = vdwg.mxu0
        %v1300 = vadd.f32 %v1061, %v1272
        %v1301 = vadd.f32 %v1062, %v1274
        %v1302 = vadd.f32 %v1063, %v1276
        %v1303 = vadd.f32 %v1064, %v1278
        %v1304 = vadd.f32 %v1065, %v1282
        %v1305 = vadd.f32 %v1066, %v1284
        %v1306 = vadd.f32 %v1067, %v1286
        %v1307 = vadd.f32 %v1068, %v1288
        %v1308 = vadd.f32 %v1069, %v1292
        %v1309 = vadd.f32 %v1070, %v1294
        %v1310 = vadd.f32 %v1071, %v1296
        %v1311 = vadd.f32 %v1072, %v1298
        %v1312 = vld [vmem:[%s2] sm:$0x3]
        %v1314 = vlaneseq
        %v1315 = vshrl.u32 %v1314, 7
        %v1316 = vsub.s32 0, %v1315
        %v1317 = vrot.slane %v1312, %v1316
        %v1318 = vlaneseq
        %v1319 = vshrl.u32 %v1318, 7
        %v1320 = vsub.s32 1, %v1319
        %v1321 = vrot.slane %v1312, %v1320
        %v1324 = vadd.f32 %v1300, %v1317
        %v1325 = vadd.f32 %v1301, %v1321
        %v1326 = vadd.f32 %v1302, %v1317
        %v1327 = vadd.f32 %v1303, %v1321
        %v1328 = vadd.f32 %v1304, %v1317
        %v1329 = vadd.f32 %v1305, %v1321
        %v1330 = vadd.f32 %v1306, %v1317
        %v1331 = vadd.f32 %v1307, %v1321
        %v1332 = vadd.f32 %v1308, %v1317
        %v1333 = vadd.f32 %v1309, %v1321
        %v1334 = vadd.f32 %v1310, %v1317
        %v1335 = vadd.f32 %v1311, %v1321
        %v1336 = vmax.f32 %v1324, 0.0
        %v1337 = vmax.f32 %v1325, 0.0
        %v1338 = vmax.f32 %v1326, 0.0
        %v1339 = vmax.f32 %v1327, 0.0
        %v1340 = vmax.f32 %v1328, 0.0
        %v1341 = vmax.f32 %v1329, 0.0
        %v1342 = vmax.f32 %v1330, 0.0
        %v1343 = vmax.f32 %v1331, 0.0
        %v1344 = vmax.f32 %v1332, 0.0
        %v1345 = vmax.f32 %v1333, 0.0
        %v1346 = vmax.f32 %v1334, 0.0
        %v1347 = vmax.f32 %v1335, 0.0
        %v1348 = vpack.c.bf16 %v1338, %v1336
        %v1349 = vpack.c.bf16 %v1339, %v1337
        %v1350 = vpack.c.bf16 %v1342, %v1340
        %v1351 = vpack.c.bf16 %v1343, %v1341
        %v1352 = vpack.c.bf16 %v1346, %v1344
        %v1353 = vpack.c.bf16 %v1347, %v1345
        %v1354 = vld [vmem:[%s9] sm:$0xf]
        %v1355 = vld [vmem:[%s9 + $0x4] sm:$0xf]
        %v1356 = vld [vmem:[%s9 + $0x8] sm:$0xf]
        %v1360 = vunpack.c.l.b16 %v1354
        %v1361 = vunpack.c.l.b16 %v1355
        %v1362 = vunpack.c.l.b16 %v1356
        %v1363 = vpack.c.b16 %v1361, %v1360
        %v1364 = vpack.c.b16 %v1362, %v1362
        %vm1365 = vcmask 367616
        %v1367 = vsel %vm1365, %v1363, 0
        %v1370 = vsel %vm1365, %v1364, 0
        %vm1372 = vcmask 1045504
        %vm1373 = vcmask 1046528
        %v1374 = vsel %vm1372, 4294967295, 65535
        %v1375 = vsel %vm1373, %v1374, 0
        %v1377 = vand.u32 %v1352, %v1375
        %v1380 = vand.u32 %v1353, %v1375
        %1382 = vmatprep.subr.bf16.mxu0 %v1349
        %1383 = vmatpush1.bf16.msra.mxu0 %v1348
        %1384 = vmatprep.subr.bf16.mxu0 %v1351
        %1385 = vmatpush1.bf16.msra.mxu0 %v1350
        %1386 = vmatprep.subr.bf16.mxu0 %v1380
        %1387 = vmatpush1.bf16.msra.mxu0 %v1377
        %1388 = vmatprep.subr.bf16.mxu0 0
        %1389 = vmatpush1.bf16.msra.mxu0 0
        %1390 = vmatprep.subr.bf16.mxu0 0
        %1391 = vmatpush1.bf16.msra.mxu0 0
        %1392 = vmatprep.subr.bf16.mxu0 0
        %1393 = vmatpush1.bf16.msra.mxu0 0
        %1394 = vmatprep.subr.bf16.mxu0 0
        %1395 = vmatpush1.bf16.msra.mxu0 0
        %1396 = vmatprep.subr.bf16.mxu0 0
        %1397 = vmatpush1.bf16.msra.mxu0 0
        %1398 = vmatprep.subr.bf16.mxu0 0
        %1399 = vmatpush1.bf16.msra.mxu0 0
        %1400 = vmatprep.subr.bf16.mxu0 0
        %1401 = vmatpush1.bf16.msra.mxu0 0
        %1402 = vmatprep.subr.bf16.mxu0 0
        %1403 = vmatpush1.bf16.msra.mxu0 0
        %1404 = vmatprep.subr.bf16.mxu0 0
        %1405 = vmatpush1.bf16.msra.mxu0 0
        %1406 = vmatprep.subr.bf16.mxu0 0
        %1407 = vmatpush1.bf16.msra.mxu0 0
        %1408 = vmatprep.subr.bf16.mxu0 0
        %1409 = vmatpush1.bf16.msra.mxu0 0
        %1410 = vmatprep.subr.bf16.mxu0 0
        %1411 = vmatpush1.bf16.msra.mxu0 0
        %1412 = vmatprep.subr.bf16.mxu0 0
        %1413 = vmatpush1.bf16.msra.mxu0 0
        %1414 = vmatprep.mubr.bf16.mxu0 0
        %1415 = vmatmul.mubr.bf16.gmra.mrb[0].mxu0 %v1367
        %v1416 = vpop.f32.mrb[0].mxu0
        %v1417 = vadd.f32 0.0, %v1416
        %v1418 = vpop.f32.mrb[0].mxu0
        %v1419 = vadd.f32 0.0, %v1418
        %v1420 = vpop.f32.mrb[0].mxu0
        %v1421 = vadd.f32 0.0, %v1420
        %v1422 = vpop.f32.mrb[0].mxu0
        %v1423 = vadd.f32 0.0, %v1422
        %1424 = vmatprep.mubr.bf16.mxu0 0
        %1425 = vmatmul.mubr.bf16.gmra.mrb[0].mxu0 %v1370
        %v1426 = vpop.f32.mrb[0].mxu0
        %v1427 = vadd.f32 0.0, %v1426
        %v1428 = vpop.f32.mrb[0].mxu0
        %v1429 = vadd.f32 0.0, %v1428
        %v1430 = vpop.f32.mrb[0].mxu0
        %v1431 = vpop.f32.mrb[0].mxu0
        %1432 = vdwg.mxu0
        %v1433 = vpack.c.bf16 %v1421, %v1417
        %v1434 = vpack.c.bf16 %v1423, %v1419
        %v1435 = vpack.c.bf16 %v1427, %v1427
        %v1436 = vpack.c.bf16 %v1429, %v1429
        %v1441 = vunpack.c.l.b16 %v1433
        %v1442 = vunpack.c.l.b16 %v1434
        %v1443 = vunpack.c.h.b16 %v1433
        %v1444 = vunpack.c.h.b16 %v1434
        %v1445 = vunpack.c.l.b16 %v1435
        %v1446 = vunpack.c.l.b16 %v1436
        %v1447 = vpack.c.b16 %v1442, %v1441
        %v1448 = vpack.c.b16 %v1444, %v1443
        %v1449 = vpack.c.b16 %v1446, %v1445
        %vm1453 = vcmask 1043456
        %vm1454 = vcmask 457732
        %vm1455 = vmor %vm1454, %vm1453
        %1456 = vst.msk [vmem:[#allocation2] sm:$0xff] %vm1455, %v1447
        %1457 = vst.msk [vmem:[#allocation2 + $0x8] sm:$0xff] %vm1455, %v1448
        %vm1458 = vcmask 1043456
        %vm1459 = vsmask.f32 3328
        %vm1460 = vmand %vm1458, %vm1459
        %vm1461 = vcmask 457732
        %vm1462 = vmand %vm1461, %vm479
        %vm1463 = vmor %vm1462, %vm1460
        %v1464 = vld [vmem:[#allocation2 + $0x10] sm:$0xff]
        %v1465 = vsel %vm1463, %v1449, %v1464
        %1466 = vst [vmem:[#allocation2 + $0x10] sm:$0xff] %v1465
        %v1467 = vld [vmem:[#allocation2] sm:$0xff]
        %v1468 = vld [vmem:[#allocation2 + $0x8] sm:$0xff]
        %v1469 = vld [vmem:[#allocation2 + $0x10] sm:$0x33]
        %v1470 = vld [vmem:[%s3] sm:$0xff]
        %v1471 = vld [vmem:[%s3 + $0x8] sm:$0xff]
        %v1472 = vld [vmem:[%s3 + $0x10] sm:$0xff]
        %v1473 = vld [vmem:[%s3 + $0x18] sm:$0xff]
        %v1474 = vld [vmem:[%s3 + $0x20] sm:$0xff]
        %v1475 = vld [vmem:[%s3 + $0x28] sm:$0xff]
        %v1476 = vld [vmem:[%s3 + $0x30] sm:$0xff]
        %v1477 = vld [vmem:[%s3 + $0x38] sm:$0xff]
        %v1478 = vld [vmem:[%s3 + $0x40] sm:$0xff]
        %v1479 = vld [vmem:[%s3 + $0x48] sm:$0xff]
        %v1480 = vld [vmem:[%s3 + $0x50] sm:$0xff]
        %v1481 = vld [vmem:[%s3 + $0x58] sm:$0xff]
        %v1482 = vld [vmem:[%s3 + $0x60] sm:$0xff]
        %v1483 = vld [vmem:[%s3 + $0x68] sm:$0xff]
        %v1484 = vld [vmem:[%s3 + $0x70] sm:$0xff]
        %v1485 = vld [vmem:[%s3 + $0x78] sm:$0xff]
        %v1486 = vld [vmem:[%s3 + $0x80] sm:$0xff]
        %v1487 = vld [vmem:[%s3 + $0x88] sm:$0xff]
        %v1488 = vld [vmem:[%s3 + $0x90] sm:$0xff]
        %v1489 = vld [vmem:[%s3 + $0x98] sm:$0xff]
        %v1490 = vld [vmem:[%s3 + $0xa0] sm:$0xff]
        %v1491 = vld [vmem:[%s3 + $0xa8] sm:$0xff]
        %v1492 = vld [vmem:[%s3 + $0xb0] sm:$0xff]
        %s1493 = scalar_lea.vmem %s3, 184
        %v1494 = vld [vmem:[%s1493] sm:$0xff]
        %v1495 = vld [vmem:[%s1493 + $0x8] sm:$0xff]
        %v1496 = vld [vmem:[%s1493 + $0x10] sm:$0xff]
        %v1497 = vld [vmem:[%s1493 + $0x18] sm:$0xff]
        %v1498 = vld [vmem:[%s1493 + $0x20] sm:$0xff]
        %v1499 = vld [vmem:[%s1493 + $0x28] sm:$0xff]
        %v1500 = vld [vmem:[%s1493 + $0x30] sm:$0xff]
        %v1501 = vld [vmem:[%s1493 + $0x38] sm:$0xff]
        %v1502 = vld [vmem:[%s1493 + $0x40] sm:$0xff]
        %v1503 = vld [vmem:[%s1493 + $0x48] sm:$0xff]
        %v1504 = vld [vmem:[%s1493 + $0x50] sm:$0xff]
        %v1505 = vld [vmem:[%s1493 + $0x58] sm:$0xff]
        %v1506 = vld [vmem:[%s1493 + $0x60] sm:$0xff]
        %v1507 = vld [vmem:[%s1493 + $0x68] sm:$0xff]
        %v1508 = vld [vmem:[%s1493 + $0x70] sm:$0xff]
        %v1509 = vld [vmem:[%s1493 + $0x78] sm:$0xff]
        %v1510 = vld [vmem:[%s1493 + $0x80] sm:$0xff]
        %v1511 = vld [vmem:[%s1493 + $0x88] sm:$0xff]
        %v1512 = vld [vmem:[%s1493 + $0x90] sm:$0xff]
        %v1513 = vld [vmem:[%s1493 + $0x98] sm:$0xff]
        %v1514 = vld [vmem:[%s1493 + $0xa0] sm:$0xff]
        %v1515 = vld [vmem:[%s1493 + $0xa8] sm:$0xff]
        %v1516 = vld [vmem:[%s1493 + $0xb0] sm:$0xff]
        %v1520 = vunpack.c.l.b16 %v1467
        %v1521 = vunpack.c.h.b16 %v1467
        %v1522 = vunpack.c.l.b16 %v1468
        %v1523 = vunpack.c.h.b16 %v1468
        %v1524 = vunpack.c.l.b16 %v1469
        %v1525 = vunpack.c.h.b16 %v1469
        %v1526 = vpack.c.b16 %v1522, %v1520
        %v1527 = vpack.c.b16 %v1523, %v1521
        %v1528 = vpack.c.b16 %v1524, %v1524
        %v1529 = vpack.c.b16 %v1525, %v1525
        %v1531 = vshrl.u32 %v1526, 16
        %v1533 = vshll.u32 %v1526, 16
        %v1535 = vrot.slane %v1533, 1
        %v1536 = vor.u32 %v1531, %v1535
        %v1538 = vshll.u32 %v1528, 16
        %v1540 = vrot.slane %v1538, 1
        %v1541 = vsel %vm479, %v1536, %v1540
        %v1543 = vshrl.u32 %v1527, 16
        %v1545 = vshll.u32 %v1527, 16
        %v1547 = vrot.slane %v1545, 1
        %v1548 = vor.u32 %v1543, %v1547
        %v1550 = vshll.u32 %v1529, 16
        %v1552 = vrot.slane %v1550, 1
        %v1553 = vsel %vm479, %v1548, %v1552
        %v1554 = vshrl.u32 %v1528, 16
        %v1556 = vor.u32 %v1554, %v1540
        %v1557 = vshrl.u32 %v1529, 16
        %v1559 = vor.u32 %v1557, %v1552
        %v1585 = vunpack.c.l.b16 %v1494
        %v1586 = vunpack.c.h.b16 %v1494
        %v1587 = vunpack.c.l.b16 %v1495
        %v1588 = vunpack.c.h.b16 %v1495
        %v1589 = vunpack.c.l.b16 %v1496
        %v1590 = vunpack.c.h.b16 %v1496
        %v1591 = vunpack.c.l.b16 %v1497
        %v1592 = vunpack.c.h.b16 %v1497
        %v1593 = vunpack.c.l.b16 %v1498
        %v1594 = vunpack.c.h.b16 %v1498
        %v1595 = vunpack.c.l.b16 %v1499
        %v1596 = vunpack.c.h.b16 %v1499
        %v1597 = vunpack.c.l.b16 %v1500
        %v1598 = vunpack.c.h.b16 %v1500
        %v1599 = vunpack.c.l.b16 %v1501
        %v1600 = vunpack.c.h.b16 %v1501
        %v1601 = vunpack.c.l.b16 %v1502
        %v1602 = vunpack.c.h.b16 %v1502
        %v1603 = vunpack.c.l.b16 %v1503
        %v1604 = vunpack.c.h.b16 %v1503
        %v1605 = vunpack.c.l.b16 %v1504
        %v1606 = vunpack.c.h.b16 %v1504
        %v1607 = vunpack.c.l.b16 %v1505
        %v1608 = vunpack.c.h.b16 %v1505
        %v1609 = vunpack.c.l.b16 %v1506
        %v1610 = vunpack.c.h.b16 %v1506
        %v1611 = vunpack.c.l.b16 %v1507
        %v1612 = vunpack.c.h.b16 %v1507
        %v1613 = vunpack.c.l.b16 %v1508
        %v1614 = vunpack.c.h.b16 %v1508
        %v1615 = vunpack.c.l.b16 %v1509
        %v1616 = vunpack.c.h.b16 %v1509
        %v1617 = vunpack.c.l.b16 %v1510
        %v1618 = vunpack.c.h.b16 %v1510
        %v1619 = vunpack.c.l.b16 %v1511
        %v1620 = vunpack.c.h.b16 %v1511
        %v1621 = vunpack.c.l.b16 %v1512
        %v1622 = vunpack.c.h.b16 %v1512
        %v1623 = vunpack.c.l.b16 %v1513
        %v1624 = vunpack.c.h.b16 %v1513
        %v1625 = vunpack.c.l.b16 %v1514
        %v1626 = vunpack.c.h.b16 %v1514
        %v1627 = vunpack.c.l.b16 %v1515
        %v1628 = vunpack.c.h.b16 %v1515
        %v1629 = vunpack.c.l.b16 %v1516
        %v1630 = vunpack.c.h.b16 %v1516
        %v1631 = vpack.c.b16 %v1587, %v1585
        %v1632 = vpack.c.b16 %v1588, %v1586
        %v1633 = vpack.c.b16 %v1591, %v1589
        %v1634 = vpack.c.b16 %v1592, %v1590
        %v1635 = vpack.c.b16 %v1595, %v1593
        %v1636 = vpack.c.b16 %v1596, %v1594
        %v1637 = vpack.c.b16 %v1599, %v1597
        %v1638 = vpack.c.b16 %v1600, %v1598
        %v1639 = vpack.c.b16 %v1603, %v1601
        %v1640 = vpack.c.b16 %v1604, %v1602
        %v1641 = vpack.c.b16 %v1607, %v1605
        %v1642 = vpack.c.b16 %v1608, %v1606
        %v1643 = vpack.c.b16 %v1611, %v1609
        %v1644 = vpack.c.b16 %v1612, %v1610
        %v1645 = vpack.c.b16 %v1615, %v1613
        %v1646 = vpack.c.b16 %v1616, %v1614
        %v1647 = vpack.c.b16 %v1619, %v1617
        %v1648 = vpack.c.b16 %v1620, %v1618
        %v1649 = vpack.c.b16 %v1623, %v1621
        %v1650 = vpack.c.b16 %v1624, %v1622
        %v1651 = vpack.c.b16 %v1627, %v1625
        %v1652 = vpack.c.b16 %v1628, %v1626
        %v1653 = vpack.c.b16 %v1629, %v1629
        %v1654 = vpack.c.b16 %v1630, %v1630
        %vm1677 = vcmask 457728
        %v1679 = vsel %vm1677, %v1553, 0
        %v1682 = vsel %vm1677, %v1559, 0
        %v1685 = vsel %vm1453, %v1653, 0
        %v1688 = vsel %vm1453, %v1654, 0
        %1690 = vmatprep.subr.bf16.mxu0 %v1632
        %1691 = vmatpush1.bf16.msra.mxu0 %v1631
        %1692 = vmatprep.subr.bf16.mxu0 %v1634
        %1693 = vmatpush1.bf16.msra.mxu0 %v1633
        %1694 = vmatprep.subr.bf16.mxu0 %v1636
        %1695 = vmatpush1.bf16.msra.mxu0 %v1635
        %1696 = vmatprep.subr.bf16.mxu0 %v1638
        %1697 = vmatpush1.bf16.msra.mxu0 %v1637
        %1698 = vmatprep.subr.bf16.mxu0 %v1640
        %1699 = vmatpush1.bf16.msra.mxu0 %v1639
        %1700 = vmatprep.subr.bf16.mxu0 %v1642
        %1701 = vmatpush1.bf16.msra.mxu0 %v1641
        %1702 = vmatprep.subr.bf16.mxu0 %v1644
        %1703 = vmatpush1.bf16.msra.mxu0 %v1643
        %1704 = vmatprep.subr.bf16.mxu0 %v1646
        %1705 = vmatpush1.bf16.msra.mxu0 %v1645
        %1706 = vmatprep.subr.bf16.mxu0 %v1648
        %1707 = vmatpush1.bf16.msra.mxu0 %v1647
        %1708 = vmatprep.subr.bf16.mxu0 %v1650
        %1709 = vmatpush1.bf16.msra.mxu0 %v1649
        %1710 = vmatprep.subr.bf16.mxu0 %v1652
        %1711 = vmatpush1.bf16.msra.mxu0 %v1651
        %1712 = vmatprep.subr.bf16.mxu0 %v1688
        %1713 = vmatpush1.bf16.msra.mxu0 %v1685
        %1714 = vmatprep.subr.bf16.mxu0 0
        %1715 = vmatpush1.bf16.msra.mxu0 0
        %1716 = vmatprep.subr.bf16.mxu0 0
        %1717 = vmatpush1.bf16.msra.mxu0 0
        %1718 = vmatprep.subr.bf16.mxu0 0
        %1719 = vmatpush1.bf16.msra.mxu0 0
        %1720 = vmatprep.subr.bf16.mxu0 0
        %1721 = vmatpush1.bf16.msra.mxu0 0
        %1722 = vmatprep.mubr.bf16.mxu0 %v1679
        %1723 = vmatmul.mubr.bf16.gmra.mrb[0].mxu0 %v1541
        %v1724 = vpop.f32.mrb[0].mxu0
        %v1725 = vadd.f32 0.0, %v1724
        %v1726 = vpop.f32.mrb[0].mxu0
        %v1727 = vadd.f32 0.0, %v1726
        %v1728 = vpop.f32.mrb[0].mxu0
        %v1729 = vadd.f32 0.0, %v1728
        %v1730 = vpop.f32.mrb[0].mxu0
        %v1731 = vadd.f32 0.0, %v1730
        %1732 = vmatprep.mubr.bf16.mxu0 %v1682
        %1733 = vmatmul.mubr.bf16.gmra.mrb[0].mxu0 %v1556
        %v1734 = vpop.f32.mrb[0].mxu0
        %v1735 = vadd.f32 0.0, %v1734
        %v1736 = vpop.f32.mrb[0].mxu0
        %v1737 = vadd.f32 0.0, %v1736
        %v1738 = vpop.f32.mrb[0].mxu0
        %v1739 = vpop.f32.mrb[0].mxu0
        %1740 = vdwg.mxu0
        %v1766 = vunpack.c.l.b16 %v1470
        %v1767 = vunpack.c.h.b16 %v1470
        %v1768 = vunpack.c.l.b16 %v1471
        %v1769 = vunpack.c.h.b16 %v1471
        %v1770 = vunpack.c.l.b16 %v1472
        %v1771 = vunpack.c.h.b16 %v1472
        %v1772 = vunpack.c.l.b16 %v1473
        %v1773 = vunpack.c.h.b16 %v1473
        %v1774 = vunpack.c.l.b16 %v1474
        %v1775 = vunpack.c.h.b16 %v1474
        %v1776 = vunpack.c.l.b16 %v1475
        %v1777 = vunpack.c.h.b16 %v1475
        %v1778 = vunpack.c.l.b16 %v1476
        %v1779 = vunpack.c.h.b16 %v1476
        %v1780 = vunpack.c.l.b16 %v1477
        %v1781 = vunpack.c.h.b16 %v1477
        %v1782 = vunpack.c.l.b16 %v1478
        %v1783 = vunpack.c.h.b16 %v1478
        %v1784 = vunpack.c.l.b16 %v1479
        %v1785 = vunpack.c.h.b16 %v1479
        %v1786 = vunpack.c.l.b16 %v1480
        %v1787 = vunpack.c.h.b16 %v1480
        %v1788 = vunpack.c.l.b16 %v1481
        %v1789 = vunpack.c.h.b16 %v1481
        %v1790 = vunpack.c.l.b16 %v1482
        %v1791 = vunpack.c.h.b16 %v1482
        %v1792 = vunpack.c.l.b16 %v1483
        %v1793 = vunpack.c.h.b16 %v1483
        %v1794 = vunpack.c.l.b16 %v1484
        %v1795 = vunpack.c.h.b16 %v1484
        %v1796 = vunpack.c.l.b16 %v1485
        %v1797 = vunpack.c.h.b16 %v1485
        %v1798 = vunpack.c.l.b16 %v1486
        %v1799 = vunpack.c.h.b16 %v1486
        %v1800 = vunpack.c.l.b16 %v1487
        %v1801 = vunpack.c.h.b16 %v1487
        %v1802 = vunpack.c.l.b16 %v1488
        %v1803 = vunpack.c.h.b16 %v1488
        %v1804 = vunpack.c.l.b16 %v1489
        %v1805 = vunpack.c.h.b16 %v1489
        %v1806 = vunpack.c.l.b16 %v1490
        %v1807 = vunpack.c.h.b16 %v1490
        %v1808 = vunpack.c.l.b16 %v1491
        %v1809 = vunpack.c.h.b16 %v1491
        %v1810 = vunpack.c.l.b16 %v1492
        %v1811 = vunpack.c.h.b16 %v1492
        %v1812 = vpack.c.b16 %v1768, %v1766
        %v1813 = vpack.c.b16 %v1769, %v1767
        %v1814 = vpack.c.b16 %v1772, %v1770
        %v1815 = vpack.c.b16 %v1773, %v1771
        %v1816 = vpack.c.b16 %v1776, %v1774
        %v1817 = vpack.c.b16 %v1777, %v1775
        %v1818 = vpack.c.b16 %v1780, %v1778
        %v1819 = vpack.c.b16 %v1781, %v1779
        %v1820 = vpack.c.b16 %v1784, %v1782
        %v1821 = vpack.c.b16 %v1785, %v1783
        %v1822 = vpack.c.b16 %v1788, %v1786
        %v1823 = vpack.c.b16 %v1789, %v1787
        %v1824 = vpack.c.b16 %v1792, %v1790
        %v1825 = vpack.c.b16 %v1793, %v1791
        %v1826 = vpack.c.b16 %v1796, %v1794
        %v1827 = vpack.c.b16 %v1797, %v1795
        %v1828 = vpack.c.b16 %v1800, %v1798
        %v1829 = vpack.c.b16 %v1801, %v1799
        %v1830 = vpack.c.b16 %v1804, %v1802
        %v1831 = vpack.c.b16 %v1805, %v1803
        %v1832 = vpack.c.b16 %v1808, %v1806
        %v1833 = vpack.c.b16 %v1809, %v1807
        %v1834 = vpack.c.b16 %v1810, %v1810
        %v1835 = vpack.c.b16 %v1811, %v1811
        %v1858 = vsel %vm1677, %v1527, 0
        %v1860 = vsel %vm1677, %v1529, 0
        %v1863 = vsel %vm1453, %v1834, 0
        %v1866 = vsel %vm1453, %v1835, 0
        %1868 = vmatprep.subr.bf16.mxu0 %v1813
        %1869 = vmatpush1.bf16.msra.mxu0 %v1812
        %1870 = vmatprep.subr.bf16.mxu0 %v1815
        %1871 = vmatpush1.bf16.msra.mxu0 %v1814
        %1872 = vmatprep.subr.bf16.mxu0 %v1817
        %1873 = vmatpush1.bf16.msra.mxu0 %v1816
        %1874 = vmatprep.subr.bf16.mxu0 %v1819
        %1875 = vmatpush1.bf16.msra.mxu0 %v1818
        %1876 = vmatprep.subr.bf16.mxu0 %v1821
        %1877 = vmatpush1.bf16.msra.mxu0 %v1820
        %1878 = vmatprep.subr.bf16.mxu0 %v1823
        %1879 = vmatpush1.bf16.msra.mxu0 %v1822
        %1880 = vmatprep.subr.bf16.mxu0 %v1825
        %1881 = vmatpush1.bf16.msra.mxu0 %v1824
        %1882 = vmatprep.subr.bf16.mxu0 %v1827
        %1883 = vmatpush1.bf16.msra.mxu0 %v1826
        %1884 = vmatprep.subr.bf16.mxu0 %v1829
        %1885 = vmatpush1.bf16.msra.mxu0 %v1828
        %1886 = vmatprep.subr.bf16.mxu0 %v1831
        %1887 = vmatpush1.bf16.msra.mxu0 %v1830
        %1888 = vmatprep.subr.bf16.mxu0 %v1833
        %1889 = vmatpush1.bf16.msra.mxu0 %v1832
        %1890 = vmatprep.subr.bf16.mxu0 %v1866
        %1891 = vmatpush1.bf16.msra.mxu0 %v1863
        %1892 = vmatprep.subr.bf16.mxu0 0
        %1893 = vmatpush1.bf16.msra.mxu0 0
        %1894 = vmatprep.subr.bf16.mxu0 0
        %1895 = vmatpush1.bf16.msra.mxu0 0
        %1896 = vmatprep.subr.bf16.mxu0 0
        %1897 = vmatpush1.bf16.msra.mxu0 0
        %1898 = vmatprep.subr.bf16.mxu0 0
        %1899 = vmatpush1.bf16.msra.mxu0 0
        %1900 = vmatprep.mubr.bf16.mxu0 %v1858
        %1901 = vmatmul.mubr.bf16.gmra.mrb[0].mxu0 %v1526
        %v1902 = vpop.f32.mrb[0].mxu0
        %v1903 = vadd.f32 %v1725, %v1902
        %v1904 = vpop.f32.mrb[0].mxu0
        %v1905 = vadd.f32 %v1727, %v1904
        %v1906 = vpop.f32.mrb[0].mxu0
        %v1907 = vadd.f32 %v1729, %v1906
        %v1908 = vpop.f32.mrb[0].mxu0
        %v1909 = vadd.f32 %v1731, %v1908
        %1910 = vmatprep.mubr.bf16.mxu0 %v1860
        %1911 = vmatmul.mubr.bf16.gmra.mrb[0].mxu0 %v1528
        %v1912 = vpop.f32.mrb[0].mxu0
        %v1913 = vadd.f32 %v1735, %v1912
        %v1914 = vpop.f32.mrb[0].mxu0
        %v1915 = vadd.f32 %v1737, %v1914
        %v1916 = vpop.f32.mrb[0].mxu0
        %v1917 = vpop.f32.mrb[0].mxu0
        %1918 = vdwg.mxu0
        %v1919 = vld [vmem:[#allocation2] sm:$0xee]
        %v1920 = vld [vmem:[#allocation2 + $0x10] sm:$0x77]
        %s1921 = scalar_lea.vmem %s3, 368
        %v1922 = vld [vmem:[%s1921] sm:$0xff]
        %v1923 = vld [vmem:[%s1921 + $0x8] sm:$0xff]
        %v1924 = vld [vmem:[%s1921 + $0x10] sm:$0xff]
        %v1925 = vld [vmem:[%s1921 + $0x18] sm:$0xff]
        %v1926 = vld [vmem:[%s1921 + $0x20] sm:$0xff]
        %v1927 = vld [vmem:[%s1921 + $0x28] sm:$0xff]
        %v1928 = vld [vmem:[%s1921 + $0x30] sm:$0xff]
        %v1929 = vld [vmem:[%s1921 + $0x38] sm:$0xff]
        %v1930 = vld [vmem:[%s1921 + $0x40] sm:$0xff]
        %v1931 = vld [vmem:[%s1921 + $0x48] sm:$0xff]
        %v1932 = vld [vmem:[%s1921 + $0x50] sm:$0xff]
        %v1933 = vld [vmem:[%s1921 + $0x58] sm:$0xff]
        %v1934 = vld [vmem:[%s1921 + $0x60] sm:$0xff]
        %v1935 = vld [vmem:[%s1921 + $0x68] sm:$0xff]
        %v1936 = vld [vmem:[%s1921 + $0x70] sm:$0xff]
        %v1937 = vld [vmem:[%s1921 + $0x78] sm:$0xff]
        %v1938 = vld [vmem:[%s1921 + $0x80] sm:$0xff]
        %v1939 = vld [vmem:[%s1921 + $0x88] sm:$0xff]
        %v1940 = vld [vmem:[%s1921 + $0x90] sm:$0xff]
        %v1941 = vld [vmem:[%s1921 + $0x98] sm:$0xff]
        %v1942 = vld [vmem:[%s1921 + $0xa0] sm:$0xff]
        %v1943 = vld [vmem:[%s1921 + $0xa8] sm:$0xff]
        %v1944 = vld [vmem:[%s1921 + $0xb0] sm:$0xff]
        %v1947 = vunpack.c.l.b16 %v1919
        %v1948 = vunpack.c.h.b16 %v1919
        %v1949 = vunpack.c.l.b16 %v1920
        %v1950 = vunpack.c.h.b16 %v1920
        %v1951 = vpack.c.b16 %v1522, %v1947
        %v1952 = vpack.c.b16 %v1523, %v1948
        %v1953 = vpack.c.b16 %v1949, %v1949
        %v1954 = vpack.c.b16 %v1950, %v1950
        %v1955 = vrot.slane %v1951, 1
        %v1956 = vrot.slane %v1953, 1
        %v1957 = vsel %vm885, %v1955, %v1956
        %v1958 = vrot.slane %v1952, 1
        %v1959 = vrot.slane %v1954, 1
        %v1960 = vsel %vm885, %v1958, %v1959
        %v1986 = vunpack.c.l.b16 %v1922
        %v1987 = vunpack.c.h.b16 %v1922
        %v1988 = vunpack.c.l.b16 %v1923
        %v1989 = vunpack.c.h.b16 %v1923
        %v1990 = vunpack.c.l.b16 %v1924
        %v1991 = vunpack.c.h.b16 %v1924
        %v1992 = vunpack.c.l.b16 %v1925
        %v1993 = vunpack.c.h.b16 %v1925
        %v1994 = vunpack.c.l.b16 %v1926
        %v1995 = vunpack.c.h.b16 %v1926
        %v1996 = vunpack.c.l.b16 %v1927
        %v1997 = vunpack.c.h.b16 %v1927
        %v1998 = vunpack.c.l.b16 %v1928
        %v1999 = vunpack.c.h.b16 %v1928
        %v2000 = vunpack.c.l.b16 %v1929
        %v2001 = vunpack.c.h.b16 %v1929
        %v2002 = vunpack.c.l.b16 %v1930
        %v2003 = vunpack.c.h.b16 %v1930
        %v2004 = vunpack.c.l.b16 %v1931
        %v2005 = vunpack.c.h.b16 %v1931
        %v2006 = vunpack.c.l.b16 %v1932
        %v2007 = vunpack.c.h.b16 %v1932
        %v2008 = vunpack.c.l.b16 %v1933
        %v2009 = vunpack.c.h.b16 %v1933
        %v2010 = vunpack.c.l.b16 %v1934
        %v2011 = vunpack.c.h.b16 %v1934
        %v2012 = vunpack.c.l.b16 %v1935
        %v2013 = vunpack.c.h.b16 %v1935
        %v2014 = vunpack.c.l.b16 %v1936
        %v2015 = vunpack.c.h.b16 %v1936
        %v2016 = vunpack.c.l.b16 %v1937
        %v2017 = vunpack.c.h.b16 %v1937
        %v2018 = vunpack.c.l.b16 %v1938
        %v2019 = vunpack.c.h.b16 %v1938
        %v2020 = vunpack.c.l.b16 %v1939
        %v2021 = vunpack.c.h.b16 %v1939
        %v2022 = vunpack.c.l.b16 %v1940
        %v2023 = vunpack.c.h.b16 %v1940
        %v2024 = vunpack.c.l.b16 %v1941
        %v2025 = vunpack.c.h.b16 %v1941
        %v2026 = vunpack.c.l.b16 %v1942
        %v2027 = vunpack.c.h.b16 %v1942
        %v2028 = vunpack.c.l.b16 %v1943
        %v2029 = vunpack.c.h.b16 %v1943
        %v2030 = vunpack.c.l.b16 %v1944
        %v2031 = vunpack.c.h.b16 %v1944
        %v2032 = vpack.c.b16 %v1988, %v1986
        %v2033 = vpack.c.b16 %v1989, %v1987
        %v2034 = vpack.c.b16 %v1992, %v1990
        %v2035 = vpack.c.b16 %v1993, %v1991
        %v2036 = vpack.c.b16 %v1996, %v1994
        %v2037 = vpack.c.b16 %v1997, %v1995
        %v2038 = vpack.c.b16 %v2000, %v1998
        %v2039 = vpack.c.b16 %v2001, %v1999
        %v2040 = vpack.c.b16 %v2004, %v2002
        %v2041 = vpack.c.b16 %v2005, %v2003
        %v2042 = vpack.c.b16 %v2008, %v2006
        %v2043 = vpack.c.b16 %v2009, %v2007
        %v2044 = vpack.c.b16 %v2012, %v2010
        %v2045 = vpack.c.b16 %v2013, %v2011
        %v2046 = vpack.c.b16 %v2016, %v2014
        %v2047 = vpack.c.b16 %v2017, %v2015
        %v2048 = vpack.c.b16 %v2020, %v2018
        %v2049 = vpack.c.b16 %v2021, %v2019
        %v2050 = vpack.c.b16 %v2024, %v2022
        %v2051 = vpack.c.b16 %v2025, %v2023
        %v2052 = vpack.c.b16 %v2028, %v2026
        %v2053 = vpack.c.b16 %v2029, %v2027
        %v2054 = vpack.c.b16 %v2030, %v2030
        %v2055 = vpack.c.b16 %v2031, %v2031
        %v2079 = vsel %vm1677, %v1960, 0
        %v2082 = vsel %vm1677, %v1959, 0
        %v2085 = vsel %vm1453, %v2054, 0
        %v2088 = vsel %vm1453, %v2055, 0
        %2090 = vmatprep.subr.bf16.mxu0 %v2033
        %2091 = vmatpush1.bf16.msra.mxu0 %v2032
        %2092 = vmatprep.subr.bf16.mxu0 %v2035
        %2093 = vmatpush1.bf16.msra.mxu0 %v2034
        %2094 = vmatprep.subr.bf16.mxu0 %v2037
        %2095 = vmatpush1.bf16.msra.mxu0 %v2036
        %2096 = vmatprep.subr.bf16.mxu0 %v2039
        %2097 = vmatpush1.bf16.msra.mxu0 %v2038
        %2098 = vmatprep.subr.bf16.mxu0 %v2041
        %2099 = vmatpush1.bf16.msra.mxu0 %v2040
        %2100 = vmatprep.subr.bf16.mxu0 %v2043
        %2101 = vmatpush1.bf16.msra.mxu0 %v2042
        %2102 = vmatprep.subr.bf16.mxu0 %v2045
        %2103 = vmatpush1.bf16.msra.mxu0 %v2044
        %2104 = vmatprep.subr.bf16.mxu0 %v2047
        %2105 = vmatpush1.bf16.msra.mxu0 %v2046
        %2106 = vmatprep.subr.bf16.mxu0 %v2049
        %2107 = vmatpush1.bf16.msra.mxu0 %v2048
        %2108 = vmatprep.subr.bf16.mxu0 %v2051
        %2109 = vmatpush1.bf16.msra.mxu0 %v2050
        %2110 = vmatprep.subr.bf16.mxu0 %v2053
        %2111 = vmatpush1.bf16.msra.mxu0 %v2052
        %2112 = vmatprep.subr.bf16.mxu0 %v2088
        %2113 = vmatpush1.bf16.msra.mxu0 %v2085
        %2114 = vmatprep.subr.bf16.mxu0 0
        %2115 = vmatpush1.bf16.msra.mxu0 0
        %2116 = vmatprep.subr.bf16.mxu0 0
        %2117 = vmatpush1.bf16.msra.mxu0 0
        %2118 = vmatprep.subr.bf16.mxu0 0
        %2119 = vmatpush1.bf16.msra.mxu0 0
        %2120 = vmatprep.subr.bf16.mxu0 0
        %2121 = vmatpush1.bf16.msra.mxu0 0
        %2122 = vmatprep.mubr.bf16.mxu0 %v2079
        %2123 = vmatmul.mubr.bf16.gmra.mrb[0].mxu0 %v1957
        %v2124 = vpop.f32.mrb[0].mxu0
        %v2125 = vadd.f32 0.0, %v2124
        %v2126 = vpop.f32.mrb[0].mxu0
        %v2127 = vadd.f32 0.0, %v2126
        %v2128 = vpop.f32.mrb[0].mxu0
        %v2129 = vadd.f32 0.0, %v2128
        %v2130 = vpop.f32.mrb[0].mxu0
        %v2131 = vadd.f32 0.0, %v2130
        %2132 = vmatprep.mubr.bf16.mxu0 %v2082
        %2133 = vmatmul.mubr.bf16.gmra.mrb[0].mxu0 %v1956
        %v2134 = vpop.f32.mrb[0].mxu0
        %v2135 = vadd.f32 0.0, %v2134
        %v2136 = vpop.f32.mrb[0].mxu0
        %v2137 = vadd.f32 0.0, %v2136
        %v2138 = vpop.f32.mrb[0].mxu0
        %v2139 = vpop.f32.mrb[0].mxu0
        %2140 = vdwg.mxu0
        %v2141 = vadd.f32 %v1903, %v2125
        %v2142 = vadd.f32 %v1905, %v2127
        %v2143 = vadd.f32 %v1907, %v2129
        %v2144 = vadd.f32 %v1909, %v2131
        %v2145 = vadd.f32 %v1913, %v2135
        %v2146 = vadd.f32 %v1915, %v2137
        %s2147 = scalar_lea.vmem %s3, 552
        %v2148 = vld [vmem:[%s2147] sm:$0xff]
        %v2149 = vld [vmem:[%s2147 + $0x8] sm:$0xff]
        %v2150 = vld [vmem:[%s2147 + $0x10] sm:$0xff]
        %v2151 = vld [vmem:[%s2147 + $0x18] sm:$0xff]
        %v2152 = vld [vmem:[%s2147 + $0x20] sm:$0xff]
        %v2153 = vld [vmem:[%s2147 + $0x28] sm:$0xff]
        %v2154 = vld [vmem:[%s2147 + $0x30] sm:$0xff]
        %v2155 = vld [vmem:[%s2147 + $0x38] sm:$0xff]
        %v2156 = vld [vmem:[%s2147 + $0x40] sm:$0xff]
        %v2157 = vld [vmem:[%s2147 + $0x48] sm:$0xff]
        %v2158 = vld [vmem:[%s2147 + $0x50] sm:$0xff]
        %v2159 = vld [vmem:[%s2147 + $0x58] sm:$0xff]
        %v2160 = vld [vmem:[%s2147 + $0x60] sm:$0xff]
        %v2161 = vld [vmem:[%s2147 + $0x68] sm:$0xff]
        %v2162 = vld [vmem:[%s2147 + $0x70] sm:$0xff]
        %v2163 = vld [vmem:[%s2147 + $0x78] sm:$0xff]
        %v2164 = vld [vmem:[%s2147 + $0x80] sm:$0xff]
        %v2165 = vld [vmem:[%s2147 + $0x88] sm:$0xff]
        %v2166 = vld [vmem:[%s2147 + $0x90] sm:$0xff]
        %v2167 = vld [vmem:[%s2147 + $0x98] sm:$0xff]
        %v2168 = vld [vmem:[%s2147 + $0xa0] sm:$0xff]
        %v2169 = vld [vmem:[%s2147 + $0xa8] sm:$0xff]
        %v2170 = vld [vmem:[%s2147 + $0xb0] sm:$0xff]
        %v2172 = vshrl.u32 %v1951, 16
        %v2174 = vrot.slane %v2172, 1
        %v2175 = vshll.u32 %v1951, 16
        %v2177 = vrot.slane %v2175, 2
        %v2178 = vor.u32 %v2174, %v2177
        %v2180 = vshrl.u32 %v1953, 16
        %v2182 = vrot.slane %v2180, 1
        %v2183 = vshll.u32 %v1953, 16
        %v2185 = vrot.slane %v2183, 2
        %v2186 = vor.u32 %v2182, %v2185
        %v2187 = vsel %vm1092, %v2178, %v2186
        %v2189 = vshrl.u32 %v1952, 16
        %v2191 = vrot.slane %v2189, 1
        %v2192 = vshll.u32 %v1952, 16
        %v2194 = vrot.slane %v2192, 2
        %v2195 = vor.u32 %v2191, %v2194
        %v2197 = vshrl.u32 %v1954, 16
        %v2199 = vrot.slane %v2197, 1
        %v2200 = vshll.u32 %v1954, 16
        %v2202 = vrot.slane %v2200, 2
        %v2203 = vor.u32 %v2199, %v2202
        %v2204 = vsel %vm1092, %v2195, %v2203
        %v2230 = vunpack.c.l.b16 %v2148
        %v2231 = vunpack.c.h.b16 %v2148
        %v2232 = vunpack.c.l.b16 %v2149
        %v2233 = vunpack.c.h.b16 %v2149
        %v2234 = vunpack.c.l.b16 %v2150
        %v2235 = vunpack.c.h.b16 %v2150
        %v2236 = vunpack.c.l.b16 %v2151
        %v2237 = vunpack.c.h.b16 %v2151
        %v2238 = vunpack.c.l.b16 %v2152
        %v2239 = vunpack.c.h.b16 %v2152
        %v2240 = vunpack.c.l.b16 %v2153
        %v2241 = vunpack.c.h.b16 %v2153
        %v2242 = vunpack.c.l.b16 %v2154
        %v2243 = vunpack.c.h.b16 %v2154
        %v2244 = vunpack.c.l.b16 %v2155
        %v2245 = vunpack.c.h.b16 %v2155
        %v2246 = vunpack.c.l.b16 %v2156
        %v2247 = vunpack.c.h.b16 %v2156
        %v2248 = vunpack.c.l.b16 %v2157
        %v2249 = vunpack.c.h.b16 %v2157
        %v2250 = vunpack.c.l.b16 %v2158
        %v2251 = vunpack.c.h.b16 %v2158
        %v2252 = vunpack.c.l.b16 %v2159
        %v2253 = vunpack.c.h.b16 %v2159
        %v2254 = vunpack.c.l.b16 %v2160
        %v2255 = vunpack.c.h.b16 %v2160
        %v2256 = vunpack.c.l.b16 %v2161
        %v2257 = vunpack.c.h.b16 %v2161
        %v2258 = vunpack.c.l.b16 %v2162
        %v2259 = vunpack.c.h.b16 %v2162
        %v2260 = vunpack.c.l.b16 %v2163
        %v2261 = vunpack.c.h.b16 %v2163
        %v2262 = vunpack.c.l.b16 %v2164
        %v2263 = vunpack.c.h.b16 %v2164
        %v2264 = vunpack.c.l.b16 %v2165
        %v2265 = vunpack.c.h.b16 %v2165
        %v2266 = vunpack.c.l.b16 %v2166
        %v2267 = vunpack.c.h.b16 %v2166
        %v2268 = vunpack.c.l.b16 %v2167
        %v2269 = vunpack.c.h.b16 %v2167
        %v2270 = vunpack.c.l.b16 %v2168
        %v2271 = vunpack.c.h.b16 %v2168
        %v2272 = vunpack.c.l.b16 %v2169
        %v2273 = vunpack.c.h.b16 %v2169
        %v2274 = vunpack.c.l.b16 %v2170
        %v2275 = vunpack.c.h.b16 %v2170
        %v2276 = vpack.c.b16 %v2232, %v2230
        %v2277 = vpack.c.b16 %v2233, %v2231
        %v2278 = vpack.c.b16 %v2236, %v2234
        %v2279 = vpack.c.b16 %v2237, %v2235
        %v2280 = vpack.c.b16 %v2240, %v2238
        %v2281 = vpack.c.b16 %v2241, %v2239
        %v2282 = vpack.c.b16 %v2244, %v2242
        %v2283 = vpack.c.b16 %v2245, %v2243
        %v2284 = vpack.c.b16 %v2248, %v2246
        %v2285 = vpack.c.b16 %v2249, %v2247
        %v2286 = vpack.c.b16 %v2252, %v2250
        %v2287 = vpack.c.b16 %v2253, %v2251
        %v2288 = vpack.c.b16 %v2256, %v2254
        %v2289 = vpack.c.b16 %v2257, %v2255
        %v2290 = vpack.c.b16 %v2260, %v2258
        %v2291 = vpack.c.b16 %v2261, %v2259
        %v2292 = vpack.c.b16 %v2264, %v2262
        %v2293 = vpack.c.b16 %v2265, %v2263
        %v2294 = vpack.c.b16 %v2268, %v2266
        %v2295 = vpack.c.b16 %v2269, %v2267
        %v2296 = vpack.c.b16 %v2272, %v2270
        %v2297 = vpack.c.b16 %v2273, %v2271
        %v2298 = vpack.c.b16 %v2274, %v2274
        %v2299 = vpack.c.b16 %v2275, %v2275
        %v2323 = vsel %vm1677, %v2204, 0
        %v2326 = vsel %vm1677, %v2203, 0
        %v2329 = vsel %vm1453, %v2298, 0
        %v2332 = vsel %vm1453, %v2299, 0
        %2334 = vmatprep.subr.bf16.mxu0 %v2277
        %2335 = vmatpush1.bf16.msra.mxu0 %v2276
        %2336 = vmatprep.subr.bf16.mxu0 %v2279
        %2337 = vmatpush1.bf16.msra.mxu0 %v2278
        %2338 = vmatprep.subr.bf16.mxu0 %v2281
        %2339 = vmatpush1.bf16.msra.mxu0 %v2280
        %2340 = vmatprep.subr.bf16.mxu0 %v2283
        %2341 = vmatpush1.bf16.msra.mxu0 %v2282
        %2342 = vmatprep.subr.bf16.mxu0 %v2285
        %2343 = vmatpush1.bf16.msra.mxu0 %v2284
        %2344 = vmatprep.subr.bf16.mxu0 %v2287
        %2345 = vmatpush1.bf16.msra.mxu0 %v2286
        %2346 = vmatprep.subr.bf16.mxu0 %v2289
        %2347 = vmatpush1.bf16.msra.mxu0 %v2288
        %2348 = vmatprep.subr.bf16.mxu0 %v2291
        %2349 = vmatpush1.bf16.msra.mxu0 %v2290
        %2350 = vmatprep.subr.bf16.mxu0 %v2293
        %2351 = vmatpush1.bf16.msra.mxu0 %v2292
        %2352 = vmatprep.subr.bf16.mxu0 %v2295
        %2353 = vmatpush1.bf16.msra.mxu0 %v2294
        %2354 = vmatprep.subr.bf16.mxu0 %v2297
        %2355 = vmatpush1.bf16.msra.mxu0 %v2296
        %2356 = vmatprep.subr.bf16.mxu0 %v2332
        %2357 = vmatpush1.bf16.msra.mxu0 %v2329
        %2358 = vmatprep.subr.bf16.mxu0 0
        %2359 = vmatpush1.bf16.msra.mxu0 0
        %2360 = vmatprep.subr.bf16.mxu0 0
        %2361 = vmatpush1.bf16.msra.mxu0 0
        %2362 = vmatprep.subr.bf16.mxu0 0
        %2363 = vmatpush1.bf16.msra.mxu0 0
        %2364 = vmatprep.subr.bf16.mxu0 0
        %2365 = vmatpush1.bf16.msra.mxu0 0
        %2366 = vmatprep.mubr.bf16.mxu0 %v2323
        %2367 = vmatmul.mubr.bf16.gmra.mrb[0].mxu0 %v2187
        %v2368 = vpop.f32.mrb[0].mxu0
        %v2369 = vadd.f32 0.0, %v2368
        %v2370 = vpop.f32.mrb[0].mxu0
        %v2371 = vadd.f32 0.0, %v2370
        %v2372 = vpop.f32.mrb[0].mxu0
        %v2373 = vadd.f32 0.0, %v2372
        %v2374 = vpop.f32.mrb[0].mxu0
        %v2375 = vadd.f32 0.0, %v2374
        %2376 = vmatprep.mubr.bf16.mxu0 %v2326
        %2377 = vmatmul.mubr.bf16.gmra.mrb[0].mxu0 %v2186
        %v2378 = vpop.f32.mrb[0].mxu0
        %v2379 = vadd.f32 0.0, %v2378
        %v2380 = vpop.f32.mrb[0].mxu0
        %v2381 = vadd.f32 0.0, %v2380
        %v2382 = vpop.f32.mrb[0].mxu0
        %v2383 = vpop.f32.mrb[0].mxu0
        %2384 = vdwg.mxu0
        %v2385 = vadd.f32 %v2141, %v2369
        %v2386 = vadd.f32 %v2142, %v2371
        %v2387 = vadd.f32 %v2143, %v2373
        %v2388 = vadd.f32 %v2144, %v2375
        %v2389 = vadd.f32 %v2145, %v2379
        %v2390 = vadd.f32 %v2146, %v2381
        %v2391 = vld [vmem:[%s4] sm:$0x3]
        %v2393 = vlaneseq
        %v2394 = vshrl.u32 %v2393, 7
        %v2395 = vsub.s32 0, %v2394
        %v2396 = vrot.slane %v2391, %v2395
        %v2397 = vlaneseq
        %v2398 = vshrl.u32 %v2397, 7
        %v2399 = vsub.s32 1, %v2398
        %v2400 = vrot.slane %v2391, %v2399
        %v2403 = vadd.f32 %v2385, %v2396
        %v2404 = vadd.f32 %v2386, %v2400
        %v2405 = vadd.f32 %v2387, %v2396
        %v2406 = vadd.f32 %v2388, %v2400
        %v2407 = vadd.f32 %v2389, %v2396
        %v2408 = vadd.f32 %v2390, %v2400
        %v2409 = vmax.f32 %v2403, 0.0
        %v2410 = vmax.f32 %v2404, 0.0
        %v2411 = vmax.f32 %v2405, 0.0
        %v2412 = vmax.f32 %v2406, 0.0
        %v2413 = vmax.f32 %v2407, 0.0
        %v2414 = vmax.f32 %v2408, 0.0
        %v2415 = vpack.c.bf16 %v2411, %v2409
        %v2416 = vpack.c.bf16 %v2412, %v2410
        %v2417 = vpack.c.bf16 %v2413, %v2413
        %v2418 = vpack.c.bf16 %v2414, %v2414
        %v2419 = vld [vmem:[%s10] sm:$0xf]
        %v2420 = vld [vmem:[%s10 + $0x4] sm:$0x1]
        %v2423 = vunpack.c.l.b16 %v2419
        %v2424 = vunpack.c.l.b16 %v2420
        %v2425 = vpack.c.b16 %v2424, %v2423
        %vm2426 = vcmask 154624
        %v2428 = vsel %vm2426, %v2425, 0
        %vm2430 = vcmask 1040384
        %vm2431 = vcmask 1041408
        %v2432 = vsel %vm2430, 4294967295, 65535
        %v2433 = vsel %vm2431, %v2432, 0
        %v2435 = vand.u32 %v2417, %v2433
        %v2438 = vand.u32 %v2418, %v2433
        %2440 = vmatprep.subr.bf16.mxu0 %v2416
        %2441 = vmatpush1.bf16.msra.mxu0 %v2415
        %2442 = vmatprep.subr.bf16.mxu0 %v2438
        %2443 = vmatpush1.bf16.msra.mxu0 %v2435
        %2444 = vmatprep.subr.bf16.mxu0 0
        %2445 = vmatpush1.bf16.msra.mxu0 0
        %2446 = vmatprep.subr.bf16.mxu0 0
        %2447 = vmatpush1.bf16.msra.mxu0 0
        %2448 = vmatprep.subr.bf16.mxu0 0
        %2449 = vmatpush1.bf16.msra.mxu0 0
        %2450 = vmatprep.subr.bf16.mxu0 0
        %2451 = vmatpush1.bf16.msra.mxu0 0
        %2452 = vmatprep.subr.bf16.mxu0 0
        %2453 = vmatpush1.bf16.msra.mxu0 0
        %2454 = vmatprep.subr.bf16.mxu0 0
        %2455 = vmatpush1.bf16.msra.mxu0 0
        %2456 = vmatprep.subr.bf16.mxu0 0
        %2457 = vmatpush1.bf16.msra.mxu0 0
        %2458 = vmatprep.subr.bf16.mxu0 0
        %2459 = vmatpush1.bf16.msra.mxu0 0
        %2460 = vmatprep.subr.bf16.mxu0 0
        %2461 = vmatpush1.bf16.msra.mxu0 0
        %2462 = vmatprep.subr.bf16.mxu0 0
        %2463 = vmatpush1.bf16.msra.mxu0 0
        %2464 = vmatprep.subr.bf16.mxu0 0
        %2465 = vmatpush1.bf16.msra.mxu0 0
        %2466 = vmatprep.subr.bf16.mxu0 0
        %2467 = vmatpush1.bf16.msra.mxu0 0
        %2468 = vmatprep.subr.bf16.mxu0 0
        %2469 = vmatpush1.bf16.msra.mxu0 0
        %2470 = vmatprep.subr.bf16.mxu0 0
        %2471 = vmatpush1.bf16.msra.mxu0 0
        %2472 = vmatprep.mubr.bf16.mxu0 0
        %2473 = vmatmul.mubr.bf16.gmra.mrb[0].mxu0 %v2428
        %v2474 = vpop.f32.mrb[0].mxu0
        %v2475 = vadd.f32 0.0, %v2474
        %v2476 = vpop.f32.mrb[0].mxu0
        %v2477 = vadd.f32 0.0, %v2476
        %v2478 = vpop.f32.mrb[0].mxu0
        %v2479 = vadd.f32 0.0, %v2478
        %v2480 = vpop.f32.mrb[0].mxu0
        %v2481 = vadd.f32 0.0, %v2480
        %2482 = vdwg.mxu0
        %v2483 = vpack.c.bf16 %v2479, %v2475
        %v2484 = vpack.c.bf16 %v2481, %v2477
        %v2487 = vunpack.c.l.b16 %v2483
        %v2488 = vunpack.c.l.b16 %v2484
        %v2489 = vunpack.c.h.b16 %v2483
        %v2490 = vunpack.c.h.b16 %v2484
        %v2491 = vpack.c.b16 %v2488, %v2487
        %v2492 = vpack.c.b16 %v2490, %v2489
        %vm2495 = vcmask 261124
        %vm2496 = vmor %vm2495, %vm1453
        %2497 = vst.msk [vmem:[#allocation3] sm:$0xff] %vm2496, %v2491
        %vm2498 = vcmask 258052
        %vm2499 = vmor %vm2498, %vm2430
        %2500 = vst.msk [vmem:[#allocation3 + $0x8] sm:$0x11] %vm2499, %v2492
        %v2501 = vld [vmem:[#allocation3] sm:$0xff]
        %v2502 = vld [vmem:[%s5] sm:$0xf]
        %v2503 = vld [vmem:[%s5 + $0x4] sm:$0xf]
        %v2504 = vld [vmem:[%s5 + $0x8] sm:$0xf]
        %v2505 = vld [vmem:[%s5 + $0xc] sm:$0xf]
        %v2506 = vld [vmem:[%s5 + $0x10] sm:$0xf]
        %v2507 = vld [vmem:[%s5 + $0x14] sm:$0xf]
        %v2508 = vld [vmem:[%s5 + $0x18] sm:$0xf]
        %v2509 = vld [vmem:[%s5 + $0x1c] sm:$0xf]
        %v2510 = vld [vmem:[%s5 + $0x20] sm:$0xf]
        %v2511 = vld [vmem:[%s5 + $0x24] sm:$0xf]
        %v2512 = vld [vmem:[%s5 + $0x28] sm:$0xf]
        %v2513 = vld [vmem:[%s5 + $0x2c] sm:$0xf]
        %v2514 = vld [vmem:[%s5 + $0x30] sm:$0xf]
        %v2515 = vld [vmem:[%s5 + $0x34] sm:$0xf]
        %v2516 = vld [vmem:[%s5 + $0x38] sm:$0xf]
        %v2517 = vld [vmem:[%s5 + $0x3c] sm:$0xf]
        %v2518 = vld [vmem:[%s5 + $0x40] sm:$0xf]
        %v2519 = vld [vmem:[%s5 + $0x44] sm:$0xf]
        %v2520 = vld [vmem:[%s5 + $0x48] sm:$0xf]
        %v2521 = vld [vmem:[%s5 + $0x4c] sm:$0xf]
        %s2522 = scalar_lea.vmem %s5, 80
        %v2523 = vld [vmem:[%s2522] sm:$0xf]
        %v2524 = vld [vmem:[%s2522 + $0x4] sm:$0xf]
        %v2525 = vld [vmem:[%s2522 + $0x8] sm:$0xf]
        %v2526 = vld [vmem:[%s2522 + $0xc] sm:$0xf]
        %v2527 = vld [vmem:[%s2522 + $0x10] sm:$0xf]
        %v2528 = vld [vmem:[%s2522 + $0x14] sm:$0xf]
        %v2529 = vld [vmem:[%s2522 + $0x18] sm:$0xf]
        %v2530 = vld [vmem:[%s2522 + $0x1c] sm:$0xf]
        %v2531 = vld [vmem:[%s2522 + $0x20] sm:$0xf]
        %v2532 = vld [vmem:[%s2522 + $0x24] sm:$0xf]
        %v2533 = vld [vmem:[%s2522 + $0x28] sm:$0xf]
        %v2534 = vld [vmem:[%s2522 + $0x2c] sm:$0xf]
        %v2535 = vld [vmem:[%s2522 + $0x30] sm:$0xf]
        %v2536 = vld [vmem:[%s2522 + $0x34] sm:$0xf]
        %v2537 = vld [vmem:[%s2522 + $0x38] sm:$0xf]
        %v2538 = vld [vmem:[%s2522 + $0x3c] sm:$0xf]
        %v2539 = vld [vmem:[%s2522 + $0x40] sm:$0xf]
        %v2540 = vld [vmem:[%s2522 + $0x44] sm:$0xf]
        %v2541 = vld [vmem:[%s2522 + $0x48] sm:$0xf]
        %v2542 = vld [vmem:[%s2522 + $0x4c] sm:$0xf]
        %v2544 = vunpack.c.l.b16 %v2501
        %v2545 = vunpack.c.h.b16 %v2501
        %v2546 = vpack.c.b16 %v2544, %v2544
        %v2547 = vpack.c.b16 %v2545, %v2545
        %v2549 = vshrl.u32 %v2546, 16
        %v2551 = vshll.u32 %v2546, 16
        %v2553 = vrot.slane %v2551, 1
        %v2554 = vor.u32 %v2549, %v2553
        %v2556 = vshrl.u32 %v2547, 16
        %v2558 = vshll.u32 %v2547, 16
        %v2560 = vrot.slane %v2558, 1
        %v2561 = vor.u32 %v2556, %v2560
        %v2583 = vunpack.c.l.b16 %v2523
        %v2584 = vunpack.c.l.b16 %v2524
        %v2585 = vunpack.c.l.b16 %v2525
        %v2586 = vunpack.c.l.b16 %v2526
        %v2587 = vunpack.c.l.b16 %v2527
        %v2588 = vunpack.c.l.b16 %v2528
        %v2589 = vunpack.c.l.b16 %v2529
        %v2590 = vunpack.c.l.b16 %v2530
        %v2591 = vunpack.c.l.b16 %v2531
        %v2592 = vunpack.c.l.b16 %v2532
        %v2593 = vunpack.c.l.b16 %v2533
        %v2594 = vunpack.c.l.b16 %v2534
        %v2595 = vunpack.c.l.b16 %v2535
        %v2596 = vunpack.c.l.b16 %v2536
        %v2597 = vunpack.c.l.b16 %v2537
        %v2598 = vunpack.c.l.b16 %v2538
        %v2599 = vunpack.c.l.b16 %v2539
        %v2600 = vunpack.c.l.b16 %v2540
        %v2601 = vunpack.c.l.b16 %v2541
        %v2602 = vunpack.c.l.b16 %v2542
        %v2603 = vpack.c.b16 %v2584, %v2583
        %v2604 = vpack.c.b16 %v2586, %v2585
        %v2605 = vpack.c.b16 %v2588, %v2587
        %v2606 = vpack.c.b16 %v2590, %v2589
        %v2607 = vpack.c.b16 %v2592, %v2591
        %v2608 = vpack.c.b16 %v2594, %v2593
        %v2609 = vpack.c.b16 %v2596, %v2595
        %v2610 = vpack.c.b16 %v2598, %v2597
        %v2611 = vpack.c.b16 %v2600, %v2599
        %v2612 = vpack.c.b16 %v2602, %v2601
        %vm2623 = vcmask 261120
        %v2625 = vsel %vm2623, %v2561, 0
        %2627 = vmatprep.subr.bf16.mxu0 0
        %2628 = vmatpush1.bf16.msra.mxu0 %v2603
        %2629 = vmatprep.subr.bf16.mxu0 0
        %2630 = vmatpush1.bf16.msra.mxu0 %v2604
        %2631 = vmatprep.subr.bf16.mxu0 0
        %2632 = vmatpush1.bf16.msra.mxu0 %v2605
        %2633 = vmatprep.subr.bf16.mxu0 0
        %2634 = vmatpush1.bf16.msra.mxu0 %v2606
        %2635 = vmatprep.subr.bf16.mxu0 0
        %2636 = vmatpush1.bf16.msra.mxu0 %v2607
        %2637 = vmatprep.subr.bf16.mxu0 0
        %2638 = vmatpush1.bf16.msra.mxu0 %v2608
        %2639 = vmatprep.subr.bf16.mxu0 0
        %2640 = vmatpush1.bf16.msra.mxu0 %v2609
        %2641 = vmatprep.subr.bf16.mxu0 0
        %2642 = vmatpush1.bf16.msra.mxu0 %v2610
        %2643 = vmatprep.subr.bf16.mxu0 0
        %2644 = vmatpush1.bf16.msra.mxu0 %v2611
        %2645 = vmatprep.subr.bf16.mxu0 0
        %2646 = vmatpush1.bf16.msra.mxu0 %v2612
        %2647 = vmatprep.subr.bf16.mxu0 0
        %2648 = vmatpush1.bf16.msra.mxu0 0
        %2649 = vmatprep.subr.bf16.mxu0 0
        %2650 = vmatpush1.bf16.msra.mxu0 0
        %2651 = vmatprep.subr.bf16.mxu0 0
        %2652 = vmatpush1.bf16.msra.mxu0 0
        %2653 = vmatprep.subr.bf16.mxu0 0
        %2654 = vmatpush1.bf16.msra.mxu0 0
        %2655 = vmatprep.subr.bf16.mxu0 0
        %2656 = vmatpush1.bf16.msra.mxu0 0
        %2657 = vmatprep.subr.bf16.mxu0 0
        %2658 = vmatpush1.bf16.msra.mxu0 0
        %2659 = vmatprep.mubr.bf16.mxu0 %v2625
        %2660 = vmatmul.mubr.bf16.gmra.mrb[0].mxu0 %v2554
        %v2661 = vpop.f32.mrb[0].mxu0
        %v2662 = vadd.f32 0.0, %v2661
        %v2663 = vpop.f32.mrb[0].mxu0
        %v2664 = vpop.f32.mrb[0].mxu0
        %v2665 = vpop.f32.mrb[0].mxu0
        %2666 = vdwg.mxu0
        %v2688 = vunpack.c.l.b16 %v2502
        %v2689 = vunpack.c.l.b16 %v2503
        %v2690 = vunpack.c.l.b16 %v2504
        %v2691 = vunpack.c.l.b16 %v2505
        %v2692 = vunpack.c.l.b16 %v2506
        %v2693 = vunpack.c.l.b16 %v2507
        %v2694 = vunpack.c.l.b16 %v2508
        %v2695 = vunpack.c.l.b16 %v2509
        %v2696 = vunpack.c.l.b16 %v2510
        %v2697 = vunpack.c.l.b16 %v2511
        %v2698 = vunpack.c.l.b16 %v2512
        %v2699 = vunpack.c.l.b16 %v2513
        %v2700 = vunpack.c.l.b16 %v2514
        %v2701 = vunpack.c.l.b16 %v2515
        %v2702 = vunpack.c.l.b16 %v2516
        %v2703 = vunpack.c.l.b16 %v2517
        %v2704 = vunpack.c.l.b16 %v2518
        %v2705 = vunpack.c.l.b16 %v2519
        %v2706 = vunpack.c.l.b16 %v2520
        %v2707 = vunpack.c.l.b16 %v2521
        %v2708 = vpack.c.b16 %v2689, %v2688
        %v2709 = vpack.c.b16 %v2691, %v2690
        %v2710 = vpack.c.b16 %v2693, %v2692
        %v2711 = vpack.c.b16 %v2695, %v2694
        %v2712 = vpack.c.b16 %v2697, %v2696
        %v2713 = vpack.c.b16 %v2699, %v2698
        %v2714 = vpack.c.b16 %v2701, %v2700
        %v2715 = vpack.c.b16 %v2703, %v2702
        %v2716 = vpack.c.b16 %v2705, %v2704
        %v2717 = vpack.c.b16 %v2707, %v2706
        %v2728 = vsel %vm2623, %v2547, 0
        %2730 = vmatprep.subr.bf16.mxu0 0
        %2731 = vmatpush1.bf16.msra.mxu0 %v2708
        %2732 = vmatprep.subr.bf16.mxu0 0
        %2733 = vmatpush1.bf16.msra.mxu0 %v2709
        %2734 = vmatprep.subr.bf16.mxu0 0
        %2735 = vmatpush1.bf16.msra.mxu0 %v2710
        %2736 = vmatprep.subr.bf16.mxu0 0
        %2737 = vmatpush1.bf16.msra.mxu0 %v2711
        %2738 = vmatprep.subr.bf16.mxu0 0
        %2739 = vmatpush1.bf16.msra.mxu0 %v2712
        %2740 = vmatprep.subr.bf16.mxu0 0
        %2741 = vmatpush1.bf16.msra.mxu0 %v2713
        %2742 = vmatprep.subr.bf16.mxu0 0
        %2743 = vmatpush1.bf16.msra.mxu0 %v2714
        %2744 = vmatprep.subr.bf16.mxu0 0
        %2745 = vmatpush1.bf16.msra.mxu0 %v2715
        %2746 = vmatprep.subr.bf16.mxu0 0
        %2747 = vmatpush1.bf16.msra.mxu0 %v2716
        %2748 = vmatprep.subr.bf16.mxu0 0
        %2749 = vmatpush1.bf16.msra.mxu0 %v2717
        %2750 = vmatprep.subr.bf16.mxu0 0
        %2751 = vmatpush1.bf16.msra.mxu0 0
        %2752 = vmatprep.subr.bf16.mxu0 0
        %2753 = vmatpush1.bf16.msra.mxu0 0
        %2754 = vmatprep.subr.bf16.mxu0 0
        %2755 = vmatpush1.bf16.msra.mxu0 0
        %2756 = vmatprep.subr.bf16.mxu0 0
        %2757 = vmatpush1.bf16.msra.mxu0 0
        %2758 = vmatprep.subr.bf16.mxu0 0
        %2759 = vmatpush1.bf16.msra.mxu0 0
        %2760 = vmatprep.subr.bf16.mxu0 0
        %2761 = vmatpush1.bf16.msra.mxu0 0
        %2762 = vmatprep.mubr.bf16.mxu0 %v2728
        %2763 = vmatmul.mubr.bf16.gmra.mrb[0].mxu0 %v2546
        %v2764 = vpop.f32.mrb[0].mxu0
        %v2765 = vadd.f32 %v2662, %v2764
        %v2766 = vpop.f32.mrb[0].mxu0
        %v2767 = vpop.f32.mrb[0].mxu0
        %v2768 = vpop.f32.mrb[0].mxu0
        %2769 = vdwg.mxu0
        %v2770 = vld [vmem:[#allocation3] sm:$0xee]
        %v2771 = vld [vmem:[#allocation3 + $0x8] sm:$0x11]
        %s2772 = scalar_lea.vmem %s5, 160
        %v2773 = vld [vmem:[%s2772] sm:$0xf]
        %v2774 = vld [vmem:[%s2772 + $0x4] sm:$0xf]
        %v2775 = vld [vmem:[%s2772 + $0x8] sm:$0xf]
        %v2776 = vld [vmem:[%s2772 + $0xc] sm:$0xf]
        %v2777 = vld [vmem:[%s2772 + $0x10] sm:$0xf]
        %v2778 = vld [vmem:[%s2772 + $0x14] sm:$0xf]
        %v2779 = vld [vmem:[%s2772 + $0x18] sm:$0xf]
        %v2780 = vld [vmem:[%s2772 + $0x1c] sm:$0xf]
        %v2781 = vld [vmem:[%s2772 + $0x20] sm:$0xf]
        %v2782 = vld [vmem:[%s2772 + $0x24] sm:$0xf]
        %v2783 = vld [vmem:[%s2772 + $0x28] sm:$0xf]
        %v2784 = vld [vmem:[%s2772 + $0x2c] sm:$0xf]
        %v2785 = vld [vmem:[%s2772 + $0x30] sm:$0xf]
        %v2786 = vld [vmem:[%s2772 + $0x34] sm:$0xf]
        %v2787 = vld [vmem:[%s2772 + $0x38] sm:$0xf]
        %v2788 = vld [vmem:[%s2772 + $0x3c] sm:$0xf]
        %v2789 = vld [vmem:[%s2772 + $0x40] sm:$0xf]
        %v2790 = vld [vmem:[%s2772 + $0x44] sm:$0xf]
        %v2791 = vld [vmem:[%s2772 + $0x48] sm:$0xf]
        %v2792 = vld [vmem:[%s2772 + $0x4c] sm:$0xf]
        %v2795 = vunpack.c.l.b16 %v2770
        %v2796 = vunpack.c.h.b16 %v2770
        %v2797 = vunpack.c.l.b16 %v2771
        %v2798 = vunpack.c.h.b16 %v2771
        %v2799 = vpack.c.b16 %v2797, %v2795
        %v2800 = vpack.c.b16 %v2798, %v2796
        %v2801 = vrot.slane %v2799, 1
        %v2802 = vrot.slane %v2800, 1
        %v2824 = vunpack.c.l.b16 %v2773
        %v2825 = vunpack.c.l.b16 %v2774
        %v2826 = vunpack.c.l.b16 %v2775
        %v2827 = vunpack.c.l.b16 %v2776
        %v2828 = vunpack.c.l.b16 %v2777
        %v2829 = vunpack.c.l.b16 %v2778
        %v2830 = vunpack.c.l.b16 %v2779
        %v2831 = vunpack.c.l.b16 %v2780
        %v2832 = vunpack.c.l.b16 %v2781
        %v2833 = vunpack.c.l.b16 %v2782
        %v2834 = vunpack.c.l.b16 %v2783
        %v2835 = vunpack.c.l.b16 %v2784
        %v2836 = vunpack.c.l.b16 %v2785
        %v2837 = vunpack.c.l.b16 %v2786
        %v2838 = vunpack.c.l.b16 %v2787
        %v2839 = vunpack.c.l.b16 %v2788
        %v2840 = vunpack.c.l.b16 %v2789
        %v2841 = vunpack.c.l.b16 %v2790
        %v2842 = vunpack.c.l.b16 %v2791
        %v2843 = vunpack.c.l.b16 %v2792
        %v2844 = vpack.c.b16 %v2825, %v2824
        %v2845 = vpack.c.b16 %v2827, %v2826
        %v2846 = vpack.c.b16 %v2829, %v2828
        %v2847 = vpack.c.b16 %v2831, %v2830
        %v2848 = vpack.c.b16 %v2833, %v2832
        %v2849 = vpack.c.b16 %v2835, %v2834
        %v2850 = vpack.c.b16 %v2837, %v2836
        %v2851 = vpack.c.b16 %v2839, %v2838
        %v2852 = vpack.c.b16 %v2841, %v2840
        %v2853 = vpack.c.b16 %v2843, %v2842
        %v2865 = vsel %vm2623, %v2802, 0
        %2867 = vmatprep.subr.bf16.mxu0 0
        %2868 = vmatpush1.bf16.msra.mxu0 %v2844
        %2869 = vmatprep.subr.bf16.mxu0 0
        %2870 = vmatpush1.bf16.msra.mxu0 %v2845
        %2871 = vmatprep.subr.bf16.mxu0 0
        %2872 = vmatpush1.bf16.msra.mxu0 %v2846
        %2873 = vmatprep.subr.bf16.mxu0 0
        %2874 = vmatpush1.bf16.msra.mxu0 %v2847
        %2875 = vmatprep.subr.bf16.mxu0 0
        %2876 = vmatpush1.bf16.msra.mxu0 %v2848
        %2877 = vmatprep.subr.bf16.mxu0 0
        %2878 = vmatpush1.bf16.msra.mxu0 %v2849
        %2879 = vmatprep.subr.bf16.mxu0 0
        %2880 = vmatpush1.bf16.msra.mxu0 %v2850
        %2881 = vmatprep.subr.bf16.mxu0 0
        %2882 = vmatpush1.bf16.msra.mxu0 %v2851
        %2883 = vmatprep.subr.bf16.mxu0 0
        %2884 = vmatpush1.bf16.msra.mxu0 %v2852
        %2885 = vmatprep.subr.bf16.mxu0 0
        %2886 = vmatpush1.bf16.msra.mxu0 %v2853
        %2887 = vmatprep.subr.bf16.mxu0 0
        %2888 = vmatpush1.bf16.msra.mxu0 0
        %2889 = vmatprep.subr.bf16.mxu0 0
        %2890 = vmatpush1.bf16.msra.mxu0 0
        %2891 = vmatprep.subr.bf16.mxu0 0
        %2892 = vmatpush1.bf16.msra.mxu0 0
        %2893 = vmatprep.subr.bf16.mxu0 0
        %2894 = vmatpush1.bf16.msra.mxu0 0
        %2895 = vmatprep.subr.bf16.mxu0 0
        %2896 = vmatpush1.bf16.msra.mxu0 0
        %2897 = vmatprep.subr.bf16.mxu0 0
        %2898 = vmatpush1.bf16.msra.mxu0 0
        %2899 = vmatprep.mubr.bf16.mxu0 %v2865
        %2900 = vmatmul.mubr.bf16.gmra.mrb[0].mxu0 %v2801
        %v2901 = vpop.f32.mrb[0].mxu0
        %v2902 = vadd.f32 0.0, %v2901
        %v2903 = vpop.f32.mrb[0].mxu0
        %v2904 = vpop.f32.mrb[0].mxu0
        %v2905 = vpop.f32.mrb[0].mxu0
        %2906 = vdwg.mxu0
        %v2907 = vadd.f32 %v2765, %v2902
        %s2908 = scalar_lea.vmem %s5, 240
        %v2909 = vld [vmem:[%s2908] sm:$0xf]
        %v2910 = vld [vmem:[%s2908 + $0x4] sm:$0xf]
        %v2911 = vld [vmem:[%s2908 + $0x8] sm:$0xf]
        %v2912 = vld [vmem:[%s2908 + $0xc] sm:$0xf]
        %v2913 = vld [vmem:[%s2908 + $0x10] sm:$0xf]
        %v2914 = vld [vmem:[%s2908 + $0x14] sm:$0xf]
        %v2915 = vld [vmem:[%s2908 + $0x18] sm:$0xf]
        %v2916 = vld [vmem:[%s2908 + $0x1c] sm:$0xf]
        %v2917 = vld [vmem:[%s2908 + $0x20] sm:$0xf]
        %v2918 = vld [vmem:[%s2908 + $0x24] sm:$0xf]
        %v2919 = vld [vmem:[%s2908 + $0x28] sm:$0xf]
        %v2920 = vld [vmem:[%s2908 + $0x2c] sm:$0xf]
        %v2921 = vld [vmem:[%s2908 + $0x30] sm:$0xf]
        %v2922 = vld [vmem:[%s2908 + $0x34] sm:$0xf]
        %v2923 = vld [vmem:[%s2908 + $0x38] sm:$0xf]
        %v2924 = vld [vmem:[%s2908 + $0x3c] sm:$0xf]
        %v2925 = vld [vmem:[%s2908 + $0x40] sm:$0xf]
        %v2926 = vld [vmem:[%s2908 + $0x44] sm:$0xf]
        %v2927 = vld [vmem:[%s2908 + $0x48] sm:$0xf]
        %v2928 = vld [vmem:[%s2908 + $0x4c] sm:$0xf]
        %v2930 = vshrl.u32 %v2799, 16
        %v2932 = vrot.slane %v2930, 1
        %v2933 = vshll.u32 %v2799, 16
        %v2935 = vrot.slane %v2933, 2
        %v2936 = vor.u32 %v2932, %v2935
        %v2938 = vshrl.u32 %v2800, 16
        %v2940 = vrot.slane %v2938, 1
        %v2941 = vshll.u32 %v2800, 16
        %v2943 = vrot.slane %v2941, 2
        %v2944 = vor.u32 %v2940, %v2943
        %v2966 = vunpack.c.l.b16 %v2909
        %v2967 = vunpack.c.l.b16 %v2910
        %v2968 = vunpack.c.l.b16 %v2911
        %v2969 = vunpack.c.l.b16 %v2912
        %v2970 = vunpack.c.l.b16 %v2913
        %v2971 = vunpack.c.l.b16 %v2914
        %v2972 = vunpack.c.l.b16 %v2915
        %v2973 = vunpack.c.l.b16 %v2916
        %v2974 = vunpack.c.l.b16 %v2917
        %v2975 = vunpack.c.l.b16 %v2918
        %v2976 = vunpack.c.l.b16 %v2919
        %v2977 = vunpack.c.l.b16 %v2920
        %v2978 = vunpack.c.l.b16 %v2921
        %v2979 = vunpack.c.l.b16 %v2922
        %v2980 = vunpack.c.l.b16 %v2923
        %v2981 = vunpack.c.l.b16 %v2924
        %v2982 = vunpack.c.l.b16 %v2925
        %v2983 = vunpack.c.l.b16 %v2926
        %v2984 = vunpack.c.l.b16 %v2927
        %v2985 = vunpack.c.l.b16 %v2928
        %v2986 = vpack.c.b16 %v2967, %v2966
        %v2987 = vpack.c.b16 %v2969, %v2968
        %v2988 = vpack.c.b16 %v2971, %v2970
        %v2989 = vpack.c.b16 %v2973, %v2972
        %v2990 = vpack.c.b16 %v2975, %v2974
        %v2991 = vpack.c.b16 %v2977, %v2976
        %v2992 = vpack.c.b16 %v2979, %v2978
        %v2993 = vpack.c.b16 %v2981, %v2980
        %v2994 = vpack.c.b16 %v2983, %v2982
        %v2995 = vpack.c.b16 %v2985, %v2984
        %v3007 = vsel %vm2623, %v2944, 0
        %3009 = vmatprep.subr.bf16.mxu0 0
        %3010 = vmatpush1.bf16.msra.mxu0 %v2986
        %3011 = vmatprep.subr.bf16.mxu0 0
        %3012 = vmatpush1.bf16.msra.mxu0 %v2987
        %3013 = vmatprep.subr.bf16.mxu0 0
        %3014 = vmatpush1.bf16.msra.mxu0 %v2988
        %3015 = vmatprep.subr.bf16.mxu0 0
        %3016 = vmatpush1.bf16.msra.mxu0 %v2989
        %3017 = vmatprep.subr.bf16.mxu0 0
        %3018 = vmatpush1.bf16.msra.mxu0 %v2990
        %3019 = vmatprep.subr.bf16.mxu0 0
        %3020 = vmatpush1.bf16.msra.mxu0 %v2991
        %3021 = vmatprep.subr.bf16.mxu0 0
        %3022 = vmatpush1.bf16.msra.mxu0 %v2992
        %3023 = vmatprep.subr.bf16.mxu0 0
        %3024 = vmatpush1.bf16.msra.mxu0 %v2993
        %3025 = vmatprep.subr.bf16.mxu0 0
        %3026 = vmatpush1.bf16.msra.mxu0 %v2994
        %3027 = vmatprep.subr.bf16.mxu0 0
        %3028 = vmatpush1.bf16.msra.mxu0 %v2995
        %3029 = vmatprep.subr.bf16.mxu0 0
        %3030 = vmatpush1.bf16.msra.mxu0 0
        %3031 = vmatprep.subr.bf16.mxu0 0
        %3032 = vmatpush1.bf16.msra.mxu0 0
        %3033 = vmatprep.subr.bf16.mxu0 0
        %3034 = vmatpush1.bf16.msra.mxu0 0
        %3035 = vmatprep.subr.bf16.mxu0 0
        %3036 = vmatpush1.bf16.msra.mxu0 0
        %3037 = vmatprep.subr.bf16.mxu0 0
        %3038 = vmatpush1.bf16.msra.mxu0 0
        %3039 = vmatprep.subr.bf16.mxu0 0
        %3040 = vmatpush1.bf16.msra.mxu0 0
        %3041 = vmatprep.mubr.bf16.mxu0 %v3007
        %3042 = vmatmul.mubr.bf16.gmra.mrb[0].mxu0 %v2936
        %v3043 = vpop.f32.mrb[0].mxu0
        %v3044 = vadd.f32 0.0, %v3043
        %v3045 = vpop.f32.mrb[0].mxu0
        %v3046 = vpop.f32.mrb[0].mxu0
        %v3047 = vpop.f32.mrb[0].mxu0
        %3048 = vdwg.mxu0
        %v3049 = vadd.f32 %v2907, %v3044
        %v3050 = vld [vmem:[%s6] sm:$0x1]
        %v3052 = vlaneseq
        %v3053 = vshrl.u32 %v3052, 7
        %v3054 = vsub.s32 0, %v3053
        %v3055 = vrot.slane %v3050, %v3054
        %v3057 = vadd.f32 %v3049, %v3055
        %v3058 = vmax.f32 %v3057, 0.0
        %v3059 = vpack.c.bf16 %v3058, %v3058
        %v3060 = vld [vmem:[%s11] sm:$0x3]
        %vm3061 = vcmask 56320
        %v3063 = vsel %vm3061, %v3060, 0
        %vm3065 = vcmask 1042432
        %v3066 = vsel %vm3065, 4294967295, 65535
        %v3067 = vsel %vm1453, %v3066, 0
        %v3069 = vand.u32 %v3059, %v3067
        %3071 = vmatprep.subr.bf16.mxu0 0
        %3072 = vmatpush1.bf16.msra.mxu0 %v3069
        %3073 = vmatprep.subr.bf16.mxu0 0
        %3074 = vmatpush1.bf16.msra.mxu0 0
        %3075 = vmatprep.subr.bf16.mxu0 0
        %3076 = vmatpush1.bf16.msra.mxu0 0
        %3077 = vmatprep.subr.bf16.mxu0 0
        %3078 = vmatpush1.bf16.msra.mxu0 0
        %3079 = vmatprep.subr.bf16.mxu0 0
        %3080 = vmatpush1.bf16.msra.mxu0 0
        %3081 = vmatprep.subr.bf16.mxu0 0
        %3082 = vmatpush1.bf16.msra.mxu0 0
        %3083 = vmatprep.subr.bf16.mxu0 0
        %3084 = vmatpush1.bf16.msra.mxu0 0
        %3085 = vmatprep.subr.bf16.mxu0 0
        %3086 = vmatpush1.bf16.msra.mxu0 0
        %3087 = vmatprep.subr.bf16.mxu0 0
        %3088 = vmatpush1.bf16.msra.mxu0 0
        %3089 = vmatprep.subr.bf16.mxu0 0
        %3090 = vmatpush1.bf16.msra.mxu0 0
        %3091 = vmatprep.subr.bf16.mxu0 0
        %3092 = vmatpush1.bf16.msra.mxu0 0
        %3093 = vmatprep.subr.bf16.mxu0 0
        %3094 = vmatpush1.bf16.msra.mxu0 0
        %3095 = vmatprep.subr.bf16.mxu0 0
        %3096 = vmatpush1.bf16.msra.mxu0 0
        %3097 = vmatprep.subr.bf16.mxu0 0
        %3098 = vmatpush1.bf16.msra.mxu0 0
        %3099 = vmatprep.subr.bf16.mxu0 0
        %3100 = vmatpush1.bf16.msra.mxu0 0
        %3101 = vmatprep.subr.bf16.mxu0 0
        %3102 = vmatpush1.bf16.msra.mxu0 0
        %3103 = vmatprep.mubr.bf16.mxu0 0
        %3104 = vmatmul.mubr.bf16.gmra.mrb[0].mxu0 %v3063
        %v3105 = vpop.f32.mrb[0].mxu0
        %v3106 = vadd.f32 0.0, %v3105
        %v3107 = vpop.f32.mrb[0].mxu0
        %v3108 = vpop.f32.mrb[0].mxu0
        %v3109 = vpop.f32.mrb[0].mxu0
        %3110 = vdwg.mxu0
        %v3111 = vpack.c.bf16 %v3106, %v3106
        %3112 = vst [vmem:[#allocation4] sm:$0x3] %v3111
        %v3113 = vld [vmem:[#allocation4] sm:$0x1]
        %v3114 = vld [vmem:[%s7] sm:$0xf]
        %v3115 = vld [vmem:[%s7 + $0x4] sm:$0xf]
        %v3116 = vld [vmem:[%s7 + $0x8] sm:$0xf]
        %v3117 = vld [vmem:[%s7 + $0xc] sm:$0xf]
        %v3118 = vld [vmem:[%s7 + $0x10] sm:$0xf]
        %v3119 = vld [vmem:[%s7 + $0x14] sm:$0xf]
        %v3120 = vld [vmem:[%s7 + $0x18] sm:$0xf]
        %v3121 = vld [vmem:[%s7 + $0x1c] sm:$0xf]
        %v3122 = vld [vmem:[%s7 + $0x20] sm:$0xf]
        %v3123 = vld [vmem:[%s7 + $0x24] sm:$0xf]
        %v3124 = vld [vmem:[%s7 + $0x28] sm:$0xf]
        %v3125 = vld [vmem:[%s7 + $0x2c] sm:$0xf]
        %v3126 = vld [vmem:[%s7 + $0x30] sm:$0xf]
        %v3127 = vld [vmem:[%s7 + $0x34] sm:$0xf]
        %v3128 = vld [vmem:[%s7 + $0x38] sm:$0xf]
        %v3129 = vld [vmem:[%s7 + $0x3c] sm:$0xf]
        %s3130 = scalar_lea.vmem %s7, 64
        %v3131 = vld [vmem:[%s3130] sm:$0xf]
        %v3132 = vld [vmem:[%s3130 + $0x4] sm:$0xf]
        %v3133 = vld [vmem:[%s3130 + $0x8] sm:$0xf]
        %v3134 = vld [vmem:[%s3130 + $0xc] sm:$0xf]
        %v3135 = vld [vmem:[%s3130 + $0x10] sm:$0xf]
        %v3136 = vld [vmem:[%s3130 + $0x14] sm:$0xf]
        %v3137 = vld [vmem:[%s3130 + $0x18] sm:$0xf]
        %v3138 = vld [vmem:[%s3130 + $0x1c] sm:$0xf]
        %v3139 = vld [vmem:[%s3130 + $0x20] sm:$0xf]
        %v3140 = vld [vmem:[%s3130 + $0x24] sm:$0xf]
        %v3141 = vld [vmem:[%s3130 + $0x28] sm:$0xf]
        %v3142 = vld [vmem:[%s3130 + $0x2c] sm:$0xf]
        %v3143 = vld [vmem:[%s3130 + $0x30] sm:$0xf]
        %v3144 = vld [vmem:[%s3130 + $0x34] sm:$0xf]
        %v3145 = vld [vmem:[%s3130 + $0x38] sm:$0xf]
        %v3146 = vld [vmem:[%s3130 + $0x3c] sm:$0xf]
        %v3149 = vunpack.c.l.s4 1983009808
        %v3150 = vunpack.c.0.s8 %v3149
        %v3151 = vlaneseq
        %v3152 = vshrl.u32 %v3151, 7
        %v3153 = vsub.s32 %v3150, %v3152
        %v3154 = vrot.slane %v3113, %v3153
        %v3156 = vshrl.u32 %v3154, 16
        %v3175 = vunpack.c.l.b16 %v3131
        %v3176 = vunpack.c.l.b16 %v3132
        %v3177 = vunpack.c.l.b16 %v3133
        %v3178 = vunpack.c.l.b16 %v3134
        %v3179 = vunpack.c.l.b16 %v3135
        %v3180 = vunpack.c.l.b16 %v3136
        %v3181 = vunpack.c.l.b16 %v3137
        %v3182 = vunpack.c.l.b16 %v3138
        %v3183 = vunpack.c.l.b16 %v3139
        %v3184 = vunpack.c.l.b16 %v3140
        %v3185 = vunpack.c.l.b16 %v3141
        %v3186 = vunpack.c.l.b16 %v3142
        %v3187 = vunpack.c.l.b16 %v3143
        %v3188 = vunpack.c.l.b16 %v3144
        %v3189 = vunpack.c.l.b16 %v3145
        %v3190 = vunpack.c.l.b16 %v3146
        %v3191 = vpack.c.b16 %v3176, %v3175
        %v3192 = vpack.c.b16 %v3178, %v3177
        %v3193 = vpack.c.b16 %v3180, %v3179
        %v3194 = vpack.c.b16 %v3182, %v3181
        %v3195 = vpack.c.b16 %v3184, %v3183
        %v3196 = vpack.c.b16 %v3186, %v3185
        %v3197 = vpack.c.b16 %v3188, %v3187
        %v3198 = vpack.c.b16 %v3190, %v3189
        %3207 = vmatprep.subr.bf16.mxu0 0
        %3208 = vmatpush1.bf16.msra.mxu0 %v3191
        %3209 = vmatprep.subr.bf16.mxu0 0
        %3210 = vmatpush1.bf16.msra.mxu0 %v3192
        %3211 = vmatprep.subr.bf16.mxu0 0
        %3212 = vmatpush1.bf16.msra.mxu0 %v3193
        %3213 = vmatprep.subr.bf16.mxu0 0
        %3214 = vmatpush1.bf16.msra.mxu0 %v3194
        %3215 = vmatprep.subr.bf16.mxu0 0
        %3216 = vmatpush1.bf16.msra.mxu0 %v3195
        %3217 = vmatprep.subr.bf16.mxu0 0
        %3218 = vmatpush1.bf16.msra.mxu0 %v3196
        %3219 = vmatprep.subr.bf16.mxu0 0
        %3220 = vmatpush1.bf16.msra.mxu0 %v3197
        %3221 = vmatprep.subr.bf16.mxu0 0
        %3222 = vmatpush1.bf16.msra.mxu0 %v3198
        %3223 = vmatprep.subr.bf16.mxu0 0
        %3224 = vmatpush1.bf16.msra.mxu0 0
        %3225 = vmatprep.subr.bf16.mxu0 0
        %3226 = vmatpush1.bf16.msra.mxu0 0
        %3227 = vmatprep.subr.bf16.mxu0 0
        %3228 = vmatpush1.bf16.msra.mxu0 0
        %3229 = vmatprep.subr.bf16.mxu0 0
        %3230 = vmatpush1.bf16.msra.mxu0 0
        %3231 = vmatprep.subr.bf16.mxu0 0
        %3232 = vmatpush1.bf16.msra.mxu0 0
        %3233 = vmatprep.subr.bf16.mxu0 0
        %3234 = vmatpush1.bf16.msra.mxu0 0
        %3235 = vmatprep.subr.bf16.mxu0 0
        %3236 = vmatpush1.bf16.msra.mxu0 0
        %3237 = vmatprep.subr.bf16.mxu0 0
        %3238 = vmatpush1.bf16.msra.mxu0 0
        %3239 = vmatprep.mubr.bf16.mxu0 0
        %3240 = vmatmul.mubr.bf16.gmra.mrb[0].mxu0 %v3156
        %v3241 = vpop.f32.mrb[0].mxu0
        %v3242 = vadd.f32 0.0, %v3241
        %v3243 = vpop.f32.mrb[0].mxu0
        %v3244 = vpop.f32.mrb[0].mxu0
        %v3245 = vpop.f32.mrb[0].mxu0
        %3246 = vdwg.mxu0
        %v3263 = vunpack.c.l.b16 %v3114
        %v3264 = vunpack.c.l.b16 %v3115
        %v3265 = vunpack.c.l.b16 %v3116
        %v3266 = vunpack.c.l.b16 %v3117
        %v3267 = vunpack.c.l.b16 %v3118
        %v3268 = vunpack.c.l.b16 %v3119
        %v3269 = vunpack.c.l.b16 %v3120
        %v3270 = vunpack.c.l.b16 %v3121
        %v3271 = vunpack.c.l.b16 %v3122
        %v3272 = vunpack.c.l.b16 %v3123
        %v3273 = vunpack.c.l.b16 %v3124
        %v3274 = vunpack.c.l.b16 %v3125
        %v3275 = vunpack.c.l.b16 %v3126
        %v3276 = vunpack.c.l.b16 %v3127
        %v3277 = vunpack.c.l.b16 %v3128
        %v3278 = vunpack.c.l.b16 %v3129
        %v3279 = vpack.c.b16 %v3264, %v3263
        %v3280 = vpack.c.b16 %v3266, %v3265
        %v3281 = vpack.c.b16 %v3268, %v3267
        %v3282 = vpack.c.b16 %v3270, %v3269
        %v3283 = vpack.c.b16 %v3272, %v3271
        %v3284 = vpack.c.b16 %v3274, %v3273
        %v3285 = vpack.c.b16 %v3276, %v3275
        %v3286 = vpack.c.b16 %v3278, %v3277
        %3295 = vmatprep.subr.bf16.mxu0 0
        %3296 = vmatpush1.bf16.msra.mxu0 %v3279
        %3297 = vmatprep.subr.bf16.mxu0 0
        %3298 = vmatpush1.bf16.msra.mxu0 %v3280
        %3299 = vmatprep.subr.bf16.mxu0 0
        %3300 = vmatpush1.bf16.msra.mxu0 %v3281
        %3301 = vmatprep.subr.bf16.mxu0 0
        %3302 = vmatpush1.bf16.msra.mxu0 %v3282
        %3303 = vmatprep.subr.bf16.mxu0 0
        %3304 = vmatpush1.bf16.msra.mxu0 %v3283
        %3305 = vmatprep.subr.bf16.mxu0 0
        %3306 = vmatpush1.bf16.msra.mxu0 %v3284
        %3307 = vmatprep.subr.bf16.mxu0 0
        %3308 = vmatpush1.bf16.msra.mxu0 %v3285
        %3309 = vmatprep.subr.bf16.mxu0 0
        %3310 = vmatpush1.bf16.msra.mxu0 %v3286
        %3311 = vmatprep.subr.bf16.mxu0 0
        %3312 = vmatpush1.bf16.msra.mxu0 0
        %3313 = vmatprep.subr.bf16.mxu0 0
        %3314 = vmatpush1.bf16.msra.mxu0 0
        %3315 = vmatprep.subr.bf16.mxu0 0
        %3316 = vmatpush1.bf16.msra.mxu0 0
        %3317 = vmatprep.subr.bf16.mxu0 0
        %3318 = vmatpush1.bf16.msra.mxu0 0
        %3319 = vmatprep.subr.bf16.mxu0 0
        %3320 = vmatpush1.bf16.msra.mxu0 0
        %3321 = vmatprep.subr.bf16.mxu0 0
        %3322 = vmatpush1.bf16.msra.mxu0 0
        %3323 = vmatprep.subr.bf16.mxu0 0
        %3324 = vmatpush1.bf16.msra.mxu0 0
        %3325 = vmatprep.subr.bf16.mxu0 0
        %3326 = vmatpush1.bf16.msra.mxu0 0
        %3327 = vmatprep.mubr.bf16.mxu0 0
        %3328 = vmatmul.mubr.bf16.gmra.mrb[0].mxu0 %v3113
        %v3329 = vpop.f32.mrb[0].mxu0
        %v3330 = vadd.f32 %v3242, %v3329
        %v3331 = vpop.f32.mrb[0].mxu0
        %v3332 = vpop.f32.mrb[0].mxu0
        %v3333 = vpop.f32.mrb[0].mxu0
        %3334 = vdwg.mxu0
        %v3335 = vld [vmem:[#allocation4] sm:$0x2]
        %s3336 = scalar_lea.vmem %s7, 128
        %v3337 = vld [vmem:[%s3336] sm:$0xf]
        %v3338 = vld [vmem:[%s3336 + $0x4] sm:$0xf]
        %v3339 = vld [vmem:[%s3336 + $0x8] sm:$0xf]
        %v3340 = vld [vmem:[%s3336 + $0xc] sm:$0xf]
        %v3341 = vld [vmem:[%s3336 + $0x10] sm:$0xf]
        %v3342 = vld [vmem:[%s3336 + $0x14] sm:$0xf]
        %v3343 = vld [vmem:[%s3336 + $0x18] sm:$0xf]
        %v3344 = vld [vmem:[%s3336 + $0x1c] sm:$0xf]
        %v3345 = vld [vmem:[%s3336 + $0x20] sm:$0xf]
        %v3346 = vld [vmem:[%s3336 + $0x24] sm:$0xf]
        %v3347 = vld [vmem:[%s3336 + $0x28] sm:$0xf]
        %v3348 = vld [vmem:[%s3336 + $0x2c] sm:$0xf]
        %v3349 = vld [vmem:[%s3336 + $0x30] sm:$0xf]
        %v3350 = vld [vmem:[%s3336 + $0x34] sm:$0xf]
        %v3351 = vld [vmem:[%s3336 + $0x38] sm:$0xf]
        %v3352 = vld [vmem:[%s3336 + $0x3c] sm:$0xf]
        %v3355 = vunpack.c.l.s4 1983009808
        %v3356 = vunpack.c.0.s8 %v3355
        %v3357 = vlaneseq
        %v3358 = vshrl.u32 %v3357, 7
        %v3359 = vsub.s32 %v3356, %v3358
        %v3360 = vrot.slane %v3335, %v3359
        %v3361 = vrot.slane %v3360, 1
        %v3379 = vunpack.c.l.b16 %v3337
        %v3380 = vunpack.c.l.b16 %v3338
        %v3381 = vunpack.c.l.b16 %v3339
        %v3382 = vunpack.c.l.b16 %v3340
        %v3383 = vunpack.c.l.b16 %v3341
        %v3384 = vunpack.c.l.b16 %v3342
        %v3385 = vunpack.c.l.b16 %v3343
        %v3386 = vunpack.c.l.b16 %v3344
        %v3387 = vunpack.c.l.b16 %v3345
        %v3388 = vunpack.c.l.b16 %v3346
        %v3389 = vunpack.c.l.b16 %v3347
        %v3390 = vunpack.c.l.b16 %v3348
        %v3391 = vunpack.c.l.b16 %v3349
        %v3392 = vunpack.c.l.b16 %v3350
        %v3393 = vunpack.c.l.b16 %v3351
        %v3394 = vunpack.c.l.b16 %v3352
        %v3395 = vpack.c.b16 %v3380, %v3379
        %v3396 = vpack.c.b16 %v3382, %v3381
        %v3397 = vpack.c.b16 %v3384, %v3383
        %v3398 = vpack.c.b16 %v3386, %v3385
        %v3399 = vpack.c.b16 %v3388, %v3387
        %v3400 = vpack.c.b16 %v3390, %v3389
        %v3401 = vpack.c.b16 %v3392, %v3391
        %v3402 = vpack.c.b16 %v3394, %v3393
        %3411 = vmatprep.subr.bf16.mxu0 0
        %3412 = vmatpush1.bf16.msra.mxu0 %v3395
        %3413 = vmatprep.subr.bf16.mxu0 0
        %3414 = vmatpush1.bf16.msra.mxu0 %v3396
        %3415 = vmatprep.subr.bf16.mxu0 0
        %3416 = vmatpush1.bf16.msra.mxu0 %v3397
        %3417 = vmatprep.subr.bf16.mxu0 0
        %3418 = vmatpush1.bf16.msra.mxu0 %v3398
        %3419 = vmatprep.subr.bf16.mxu0 0
        %3420 = vmatpush1.bf16.msra.mxu0 %v3399
        %3421 = vmatprep.subr.bf16.mxu0 0
        %3422 = vmatpush1.bf16.msra.mxu0 %v3400
        %3423 = vmatprep.subr.bf16.mxu0 0
        %3424 = vmatpush1.bf16.msra.mxu0 %v3401
        %3425 = vmatprep.subr.bf16.mxu0 0
        %3426 = vmatpush1.bf16.msra.mxu0 %v3402
        %3427 = vmatprep.subr.bf16.mxu0 0
        %3428 = vmatpush1.bf16.msra.mxu0 0
        %3429 = vmatprep.subr.bf16.mxu0 0
        %3430 = vmatpush1.bf16.msra.mxu0 0
        %3431 = vmatprep.subr.bf16.mxu0 0
        %3432 = vmatpush1.bf16.msra.mxu0 0
        %3433 = vmatprep.subr.bf16.mxu0 0
        %3434 = vmatpush1.bf16.msra.mxu0 0
        %3435 = vmatprep.subr.bf16.mxu0 0
        %3436 = vmatpush1.bf16.msra.mxu0 0
        %3437 = vmatprep.subr.bf16.mxu0 0
        %3438 = vmatpush1.bf16.msra.mxu0 0
        %3439 = vmatprep.subr.bf16.mxu0 0
        %3440 = vmatpush1.bf16.msra.mxu0 0
        %3441 = vmatprep.subr.bf16.mxu0 0
        %3442 = vmatpush1.bf16.msra.mxu0 0
        %3443 = vmatprep.mubr.bf16.mxu0 0
        %3444 = vmatmul.mubr.bf16.gmra.mrb[0].mxu0 %v3361
        %v3445 = vpop.f32.mrb[0].mxu0
        %v3446 = vadd.f32 0.0, %v3445
        %v3447 = vpop.f32.mrb[0].mxu0
        %v3448 = vpop.f32.mrb[0].mxu0
        %v3449 = vpop.f32.mrb[0].mxu0
        %3450 = vdwg.mxu0
        %v3451 = vadd.f32 %v3330, %v3446
        %v3452 = vld [vmem:[#allocation4] sm:$0x2]
        %s3453 = scalar_lea.vmem %s7, 192
        %v3454 = vld [vmem:[%s3453] sm:$0xf]
        %v3455 = vld [vmem:[%s3453 + $0x4] sm:$0xf]
        %v3456 = vld [vmem:[%s3453 + $0x8] sm:$0xf]
        %v3457 = vld [vmem:[%s3453 + $0xc] sm:$0xf]
        %v3458 = vld [vmem:[%s3453 + $0x10] sm:$0xf]
        %v3459 = vld [vmem:[%s3453 + $0x14] sm:$0xf]
        %v3460 = vld [vmem:[%s3453 + $0x18] sm:$0xf]
        %v3461 = vld [vmem:[%s3453 + $0x1c] sm:$0xf]
        %v3462 = vld [vmem:[%s3453 + $0x20] sm:$0xf]
        %v3463 = vld [vmem:[%s3453 + $0x24] sm:$0xf]
        %v3464 = vld [vmem:[%s3453 + $0x28] sm:$0xf]
        %v3465 = vld [vmem:[%s3453 + $0x2c] sm:$0xf]
        %v3466 = vld [vmem:[%s3453 + $0x30] sm:$0xf]
        %v3467 = vld [vmem:[%s3453 + $0x34] sm:$0xf]
        %v3468 = vld [vmem:[%s3453 + $0x38] sm:$0xf]
        %v3469 = vld [vmem:[%s3453 + $0x3c] sm:$0xf]
        %v3472 = vunpack.c.l.s4 1983009808
        %v3473 = vunpack.c.0.s8 %v3472
        %v3474 = vlaneseq
        %v3475 = vshrl.u32 %v3474, 7
        %v3476 = vsub.s32 %v3473, %v3475
        %v3477 = vrot.slane %v3452, %v3476
        %v3479 = vshrl.u32 %v3477, 16
        %v3481 = vrot.slane %v3479, 1
        %v3499 = vunpack.c.l.b16 %v3454
        %v3500 = vunpack.c.l.b16 %v3455
        %v3501 = vunpack.c.l.b16 %v3456
        %v3502 = vunpack.c.l.b16 %v3457
        %v3503 = vunpack.c.l.b16 %v3458
        %v3504 = vunpack.c.l.b16 %v3459
        %v3505 = vunpack.c.l.b16 %v3460
        %v3506 = vunpack.c.l.b16 %v3461
        %v3507 = vunpack.c.l.b16 %v3462
        %v3508 = vunpack.c.l.b16 %v3463
        %v3509 = vunpack.c.l.b16 %v3464
        %v3510 = vunpack.c.l.b16 %v3465
        %v3511 = vunpack.c.l.b16 %v3466
        %v3512 = vunpack.c.l.b16 %v3467
        %v3513 = vunpack.c.l.b16 %v3468
        %v3514 = vunpack.c.l.b16 %v3469
        %v3515 = vpack.c.b16 %v3500, %v3499
        %v3516 = vpack.c.b16 %v3502, %v3501
        %v3517 = vpack.c.b16 %v3504, %v3503
        %v3518 = vpack.c.b16 %v3506, %v3505
        %v3519 = vpack.c.b16 %v3508, %v3507
        %v3520 = vpack.c.b16 %v3510, %v3509
        %v3521 = vpack.c.b16 %v3512, %v3511
        %v3522 = vpack.c.b16 %v3514, %v3513
        %3531 = vmatprep.subr.bf16.mxu0 0
        %3532 = vmatpush1.bf16.msra.mxu0 %v3515
        %3533 = vmatprep.subr.bf16.mxu0 0
        %3534 = vmatpush1.bf16.msra.mxu0 %v3516
        %3535 = vmatprep.subr.bf16.mxu0 0
        %3536 = vmatpush1.bf16.msra.mxu0 %v3517
        %3537 = vmatprep.subr.bf16.mxu0 0
        %3538 = vmatpush1.bf16.msra.mxu0 %v3518
        %3539 = vmatprep.subr.bf16.mxu0 0
        %3540 = vmatpush1.bf16.msra.mxu0 %v3519
        %3541 = vmatprep.subr.bf16.mxu0 0
        %3542 = vmatpush1.bf16.msra.mxu0 %v3520
        %3543 = vmatprep.subr.bf16.mxu0 0
        %3544 = vmatpush1.bf16.msra.mxu0 %v3521
        %3545 = vmatprep.subr.bf16.mxu0 0
        %3546 = vmatpush1.bf16.msra.mxu0 %v3522
        %3547 = vmatprep.subr.bf16.mxu0 0
        %3548 = vmatpush1.bf16.msra.mxu0 0
        %3549 = vmatprep.subr.bf16.mxu0 0
        %3550 = vmatpush1.bf16.msra.mxu0 0
        %3551 = vmatprep.subr.bf16.mxu0 0
        %3552 = vmatpush1.bf16.msra.mxu0 0
        %3553 = vmatprep.subr.bf16.mxu0 0
        %3554 = vmatpush1.bf16.msra.mxu0 0
        %3555 = vmatprep.subr.bf16.mxu0 0
        %3556 = vmatpush1.bf16.msra.mxu0 0
        %3557 = vmatprep.subr.bf16.mxu0 0
        %3558 = vmatpush1.bf16.msra.mxu0 0
        %3559 = vmatprep.subr.bf16.mxu0 0
        %3560 = vmatpush1.bf16.msra.mxu0 0
        %3561 = vmatprep.subr.bf16.mxu0 0
        %3562 = vmatpush1.bf16.msra.mxu0 0
        %3563 = vmatprep.mubr.bf16.mxu0 0
        %3564 = vmatmul.mubr.bf16.gmra.mrb[0].mxu0 %v3481
        %v3565 = vpop.f32.mrb[0].mxu0
        %v3566 = vadd.f32 0.0, %v3565
        %v3567 = vpop.f32.mrb[0].mxu0
        %v3568 = vpop.f32.mrb[0].mxu0
        %v3569 = vpop.f32.mrb[0].mxu0
        %3570 = vdwg.mxu0
        %v3571 = vadd.f32 %v3451, %v3566
        %v3572 = vld [vmem:[%s8] sm:$0x1]
        %v3573 = vadd.f32 %v3571, %v3572
        %v3574 = vmax.f32 %v3573, 0.0
        %vm3575 = vcmask 516096
        %3576 = vst.msk [vmem:[%s405] sm:$0x1] %vm3575, %v3574
        %s3577 = sand.u32 %s291, 1
        %s3578 = scalar_lea.sflag [#allocation6], %s3577
        %s3579 = sand.u32 %s291, 1
        %s3580 = scalar_lea.vmem [#allocation5], %s3579
        // Predicated region
        $region69: #{_forward.1} parent=67 // pred_check
          %p3581 = pneg %p301
        $region70: #{_forward.1} parent=67 // pred_check_branch
          %3583 = sbr.rel (%p3581) target = $region72
        $region71: #{_forward.1} parent=67 // pred_region
          %s3585 = ssub.s32 16, 16
          %3586 = vsyncadd %s3578, %s3585
          %s3587 = smul.addr %s26, 16
          %s3588 = scalar_lea.hbm %s12, %s3587
          %s3590 = sshll.u32 %s3580, 4
          %s3591 = int_to_ptr.vmem [resolvable:$true] %s3590
          %3593 = dma.vmem_to_hbm [thread:$0]  %s3591, 16, %s3588, %s3578
        $region72: #{_forward.1} parent=67 // pred_fallthru
          _
      $region68: #{_forward.1} parent=5 // pred_fallthru
        _
      %p3594 = scmp.le.s32.totalorder 2, %s21
      // Predicated region
      $region73: #{_forward.1} parent=5 // pred_check
        %p3595 = pneg %p3594
      $region74: #{_forward.1} parent=5 // pred_check_branch
        %3597 = sbr.rel (%p3595) target = $region76
      $region75: #{_forward.1} parent=5 // pred_region
        %s3598 = ssub.s32 %s21, 2
        // Predicated region
        $region77: #{_forward.1} parent=75 // pred_check
          %p3599 = pneg %p307
        $region78: #{_forward.1} parent=75 // pred_check_branch
          %3601 = sbr.rel (%p3599) target = $region80
        $region79: #{_forward.1} parent=75 // pred_region
          %s3602 = sand.u32 %s292, 1
          %s3603 = scalar_lea.sflag [#allocation6], %s3602
          %s3604 = sand.u32 %s292, 1
          %s3605 = scalar_lea.vmem [#allocation5], %s3604
          %3606 = dma.done %s3603, 16
        $region80: #{_forward.1} parent=75 // pred_fallthru
          _
      $region76: #{_forward.1} parent=5 // pred_fallthru
        _
    $region6: #{_forward.1} parent=1 // loop_footer
      %s25 = sadd.s32 1, %s21
    $region7: #{_forward.1} parent=1 // loop_footer_branch
      %20 = sbr.rel target = $region3
    $region8: #{_forward.1} parent=1 // loop_exit
      _
    %3607 = vsyncpa [#allocation6], 1
    %s3608 = scalar_lea.sflag [#allocation6], 1
    %3609 = vsyncpa %s3608, 1

</llo_original>
